<compile_context>
chip_gen: v7x
topology: tpu7x:2x2x1
jax: 0.10.0
libtpu: 0.0.40
codegen_flags: <defaults>
</compile_context>

<pallas_src>
import jax
import jax.numpy as jnp
from jax import lax
from jax.experimental import pallas as pl
from jax.experimental.pallas import tpu as pltpu

# ------------------------- model hyper-parameters (small) -------------------
B = 2            # batch
S = 8            # historical_action_sequence_length (sequence length)
D = 64           # embedding_dim
F = 4 * D        # MLP hidden
NUM_LAYERS = 2   # num_layers
HEAD_DIM = 32    # transformer_head_dim
N_HEADS = D // HEAD_DIM
NUM_BINS = 10    # num_bins (token vocabulary)
NUM_CLASS = 8    # num_output_class (== n_actions)
BS = B * S
HEAD_OUT = 128   # fused head output width (8 pi + 8 Q + 1 win + padding), lane-dense


# ------------------------- Pallas kernel -------------------------------------
def _layernorm(h, gamma, beta):
    mu = jnp.mean(h, axis=-1, keepdims=True)
    var = jnp.mean((h - mu) ** 2, axis=-1, keepdims=True)
    return (h - mu) * lax.rsqrt(var + 1e-5) * gamma + beta


def fused_forward_kernel(tok_ref, tok_emb_ref, pos_ref, ln1_ref,
                         wq_ref, bq_ref, wk_ref, bk_ref, wv_ref, bv_ref,
                         wo_ref, bo_ref, ln2_ref, w1_ref, b1_ref,
                         w2_ref, b2_ref, lnf_ref, wh_ref, bh_ref, out_ref):
    """Whole forward pass: embedding -> NUM_LAYERS transformer layers -> heads."""

    # ---- token embedding via one-hot matmul (no in-kernel gather) ----
    tok = tok_ref[...]                                          # (BS, 1) int32
    bins = lax.broadcasted_iota(jnp.int32, (BS, NUM_BINS), 1)
    onehot = (tok == bins).astype(jnp.float32)                  # (BS, NUM_BINS)
    x = jnp.dot(onehot, tok_emb_ref[...],
                preferred_element_type=jnp.float32)             # (BS, D)
    # add learned positional embedding (broadcast over batch)
    x = (x.reshape(B, S, D) + pos_ref[...][None, :, :]).reshape(BS, D)

    scale = 1.0 / (HEAD_DIM ** 0.5)

    # ---- transformer layers (static unroll; weights resident in VMEM) ----
    for l in range(NUM_LAYERS):
        ln1 = ln1_ref[l]                                        # (2, D)
        xn = _layernorm(x, ln1[0], ln1[1])                      # (BS, D)

        wq_l, bq_l = wq_ref[l], bq_ref[l]                       # (H,D,Hd), (H,1,Hd)
        wk_l, bk_l = wk_ref[l], bk_ref[l]
        wv_l, bv_l = wv_ref[l], bv_ref[l]
        wo_l = wo_ref[l]                                        # (H, Hd, D)

        attn = None
        for h in range(N_HEADS):
            qh = jnp.dot(xn, wq_l[h],
                         preferred_element_type=jnp.float32) + bq_l[h]
            kh = jnp.dot(xn, wk_l[h],
                         preferred_element_type=jnp.float32) + bk_l[h]
            vh = jnp.dot(xn, wv_l[h],
                         preferred_element_type=jnp.float32) + bv_l[h]
            qb = qh.reshape(B, S, HEAD_DIM)
            kb = kh.reshape(B, S, HEAD_DIM)
            vb = vh.reshape(B, S, HEAD_DIM)
            s = jnp.einsum("bqe,bke->bqk", qb, kb,
                           preferred_element_type=jnp.float32) * scale
            s = s - jnp.max(s, axis=-1, keepdims=True)
            p = jnp.exp(s)
            p = p * pl.reciprocal(jnp.sum(p, axis=-1, keepdims=True),
                                  approx=True)
            ctx = jnp.einsum("bqk,bke->bqe", p, vb,
                             preferred_element_type=jnp.float32)
            # sum head contributions through the output projection
            # (no concatenate, no lane-misaligned slicing)
            oh = jnp.dot(ctx.reshape(BS, HEAD_DIM), wo_l[h],
                         preferred_element_type=jnp.float32)
            attn = oh if attn is None else attn + oh
        x = x + attn + bo_ref[l]

        # ---- MLP (pre-LN) ----
        ln2 = ln2_ref[l]
        xn = _layernorm(x, ln2[0], ln2[1])
        h1 = jnp.maximum(
            jnp.dot(xn, w1_ref[l],
                    preferred_element_type=jnp.float32) + b1_ref[l], 0.0)
        x = x + jnp.dot(h1, w2_ref[l],
                        preferred_element_type=jnp.float32) + b2_ref[l]

    # ---- mean-pool over sequence, final LN, fused lane-dense heads ----
    pooled = jnp.mean(x.reshape(B, S, D), axis=1)               # (B, D)
    lnf = lnf_ref[...]                                          # (2, D)
    pn = _layernorm(pooled, lnf[0], lnf[1])
    out_ref[...] = (jnp.dot(pn, wh_ref[...],
                            preferred_element_type=jnp.float32) + bh_ref[...])


# ------------------------- wrapper --------------------------------------------
@jax.jit
def alphago_zero_forward(params, x_tokens):
    tok2d = x_tokens.reshape(BS, 1).astype(jnp.int32)

    def vspec():
        return pl.BlockSpec(memory_space=pltpu.MemorySpace.VMEM)

    out = pl.pallas_call(
        fused_forward_kernel,
        out_shape=jax.ShapeDtypeStruct((B, HEAD_OUT), jnp.float32),
        in_specs=[vspec() for _ in range(20)],
        out_specs=vspec(),
    )(tok2d, params["tok_emb"], params["pos_emb"], params["ln1"],
      params["wq"], params["bq"], params["wk"], params["bk"],
      params["wv"], params["bv"], params["wo"], params["bo"],
      params["ln2"], params["w1"], params["b1"], params["w2"], params["b2"],
      params["lnf"], params["w_heads"], params["b_heads"])

    action_prob_logits = out[:, :NUM_CLASS]
    action_Q_logits = out[:, NUM_CLASS:2 * NUM_CLASS]
    winning_prob_logits = out[:, 2 * NUM_CLASS]
    return action_prob_logits, action_Q_logits, winning_prob_logits


def init_params(key):
    ks = jax.random.split(key, 12)
    std = 0.02

    def nrm(k, shape):
        return (std * jax.random.normal(k, shape)).astype(jnp.float32)

    ln = jnp.stack([jnp.ones((NUM_LAYERS, D), jnp.float32),
                    jnp.zeros((NUM_LAYERS, D), jnp.float32)], axis=1)  # (L,2,D)

    # fused, lane-dense head weights: cols [0:8]=pi, [8:16]=Q, [16]=winning prob
    w_heads = jnp.zeros((D, HEAD_OUT), jnp.float32)
    w_heads = w_heads.at[:, :NUM_CLASS].set(nrm(ks[6], (D, NUM_CLASS)))
    w_heads = w_heads.at[:, NUM_CLASS:2 * NUM_CLASS].set(nrm(ks[7], (D, NUM_CLASS)))
    w_heads = w_heads.at[:, 2 * NUM_CLASS:2 * NUM_CLASS + 1].set(nrm(ks[8], (D, 1)))

    params = {
        "tok_emb": nrm(ks[0], (NUM_BINS, D)),
        "pos_emb": nrm(ks[1], (S, D)),
        "ln1": ln,
        # per-head Q/K/V/O weights so the kernel never slices lanes
        "wq": nrm(ks[2], (NUM_LAYERS, N_HEADS, D, HEAD_DIM)),
        "bq": jnp.zeros((NUM_LAYERS, N_HEADS, 1, HEAD_DIM), jnp.float32),
        "wk": nrm(ks[3], (NUM_LAYERS, N_HEADS, D, HEAD_DIM)),
        "bk": jnp.zeros((NUM_LAYERS, N_HEADS, 1, HEAD_DIM), jnp.float32),
        "wv": nrm(ks[9], (NUM_LAYERS, N_HEADS, D, HEAD_DIM)),
        "bv": jnp.zeros((NUM_LAYERS, N_HEADS, 1, HEAD_DIM), jnp.float32),
        "wo": nrm(ks[10], (NUM_LAYERS, N_HEADS, HEAD_DIM, D)),
        "bo": jnp.zeros((NUM_LAYERS, 1, D), jnp.float32),
        "ln2": ln,
        "w1": nrm(ks[4], (NUM_LAYERS, D, F)),
        "b1": jnp.zeros((NUM_LAYERS, 1, F), jnp.float32),
        "w2": nrm(ks[5], (NUM_LAYERS, F, D)),
        "b2": jnp.zeros((NUM_LAYERS, 1, D), jnp.float32),
        "lnf": jnp.stack([jnp.ones((D,), jnp.float32),
                          jnp.zeros((D,), jnp.float32)], axis=0),       # (2,D)
        "w_heads": w_heads,
        "b_heads": jnp.zeros((1, HEAD_OUT), jnp.float32),
    }
    return params


if __name__ == "__main__":
    key = jax.random.PRNGKey(0)
    k_param, k_obs = jax.random.split(key)
    params = init_params(k_param)
    # observation: (B, S) int32 token ids in [0, num_bins)
    x = jax.random.randint(k_obs, (B, S), 0, NUM_BINS, dtype=jnp.int32)

    action_prob_logits, action_Q_logits, winning_prob_logits = (
        alphago_zero_forward(params, x))
    jax.block_until_ready((action_prob_logits, action_Q_logits,
                           winning_prob_logits))

    assert action_prob_logits.shape == (B, NUM_CLASS)
    assert action_Q_logits.shape == (B, NUM_CLASS)
    assert winning_prob_logits.shape == (B,)
    finite = (jnp.all(jnp.isfinite(action_prob_logits))
              & jnp.all(jnp.isfinite(action_Q_logits))
              & jnp.all(jnp.isfinite(winning_prob_logits)))
    assert bool(finite)
    print("KERNEL_OK")
</pallas_src>

<mosaic_0001>
module attributes {stable_mosaic.version = 11 : i64} {
  func.func @fused_forward_kernel(%arg0: memref<16x1xi32, #tpu.memory_space<vmem>>, %arg1: memref<10x64xf32, #tpu.memory_space<vmem>>, %arg2: memref<8x64xf32, #tpu.memory_space<vmem>>, %arg3: memref<2x2x64xf32, #tpu.memory_space<vmem>>, %arg4: memref<2x2x64x32xf32, #tpu.memory_space<vmem>>, %arg5: memref<2x2x1x32xf32, #tpu.memory_space<vmem>>, %arg6: memref<2x2x64x32xf32, #tpu.memory_space<vmem>>, %arg7: memref<2x2x1x32xf32, #tpu.memory_space<vmem>>, %arg8: memref<2x2x64x32xf32, #tpu.memory_space<vmem>>, %arg9: memref<2x2x1x32xf32, #tpu.memory_space<vmem>>, %arg10: memref<2x2x32x64xf32, #tpu.memory_space<vmem>>, %arg11: memref<2x1x64xf32, #tpu.memory_space<vmem>>, %arg12: memref<2x2x64xf32, #tpu.memory_space<vmem>>, %arg13: memref<2x64x256xf32, #tpu.memory_space<vmem>>, %arg14: memref<2x1x256xf32, #tpu.memory_space<vmem>>, %arg15: memref<2x256x64xf32, #tpu.memory_space<vmem>>, %arg16: memref<2x1x64xf32, #tpu.memory_space<vmem>>, %arg17: memref<2x64xf32, #tpu.memory_space<vmem>>, %arg18: memref<64x128xf32, #tpu.memory_space<vmem>>, %arg19: memref<1x128xf32, #tpu.memory_space<vmem>>, %arg20: memref<2x128xf32, #tpu.memory_space<vmem>>) attributes {dimension_semantics = [], scalar_prefetch = 0 : i64, scratch_operands = 0 : i64, tpu.core_type = #tpu.core_type<tc>} {
    %c0 = arith.constant 0 : index
    %c0_0 = arith.constant 0 : index
    %0 = vector.load %arg0[%c0, %c0_0] : memref<16x1xi32, #tpu.memory_space<vmem>>, vector<16x1xi32>
    %1 = tpu.iota {dimensions = array<i32: 1>} : vector<16x10xi32>
    %2 = vector.broadcast %0 : vector<16x1xi32> to vector<16x10xi32>
    %3 = arith.cmpi eq, %2, %1 : vector<16x10xi32>
    %4 = arith.extui %3 : vector<16x10xi1> to vector<16x10xi32>
    %5 = arith.sitofp %4 : vector<16x10xi32> to vector<16x10xf32>
    %c0_1 = arith.constant 0 : index
    %c0_2 = arith.constant 0 : index
    %6 = vector.load %arg1[%c0_1, %c0_2] : memref<10x64xf32, #tpu.memory_space<vmem>>, vector<10x64xf32>
    %cst = arith.constant dense<0.000000e+00> : vector<16x64xf32>
    %7 = tpu.matmul %5, %6, %cst {dimension_numbers = #tpu.dot_dimension_numbers<[1], [0], [0], [1], [0, 0, 1, 1], [], []>} : vector<16x10xf32>, vector<10x64xf32>, vector<16x64xf32> -> vector<16x64xf32>
    %8 = vector.shape_cast %7 : vector<16x64xf32> to vector<2x8x64xf32>
    %c0_3 = arith.constant 0 : index
    %c0_4 = arith.constant 0 : index
    %9 = vector.load %arg2[%c0_3, %c0_4] : memref<8x64xf32, #tpu.memory_space<vmem>>, vector<8x64xf32>
    %10 = vector.shape_cast %9 : vector<8x64xf32> to vector<1x8x64xf32>
    %11 = vector.broadcast %10 : vector<1x8x64xf32> to vector<2x8x64xf32>
    %12 = arith.addf %8, %11 : vector<2x8x64xf32>
    %13 = vector.shape_cast %12 : vector<2x8x64xf32> to vector<16x64xf32>
    %c0_5 = arith.constant 0 : index
    %c0_6 = arith.constant 0 : index
    %c0_7 = arith.constant 0 : index
    %14 = vector.load %arg3[%c0_5, %c0_6, %c0_7] : memref<2x2x64xf32, #tpu.memory_space<vmem>>, vector<1x2x64xf32>
    %15 = vector.shape_cast %14 : vector<1x2x64xf32> to vector<2x64xf32>
    %16 = vector.extract_strided_slice %15 {offsets = [0, 0], sizes = [1, 64], strides = [1, 1]} : vector<2x64xf32> to vector<1x64xf32>
    %17 = vector.shape_cast %16 : vector<1x64xf32> to vector<64xf32>
    %18 = vector.extract_strided_slice %15 {offsets = [1, 0], sizes = [1, 64], strides = [1, 1]} : vector<2x64xf32> to vector<1x64xf32>
    %19 = vector.shape_cast %18 : vector<1x64xf32> to vector<64xf32>
    %cst_8 = arith.constant dense<0.000000e+00> : vector<16xf32>
    %20 = vector.multi_reduction <add>, %13, %cst_8 [1] : vector<16x64xf32> to vector<16xf32>
    %21 = vector.shape_cast %20 : vector<16xf32> to vector<16x1xf32>
    %cst_9 = arith.constant 6.400000e+01 : f32
    %22 = vector.broadcast %cst_9 : f32 to vector<16x1xf32>
    %23 = arith.divf %21, %22 : vector<16x1xf32>
    %24 = vector.broadcast %23 : vector<16x1xf32> to vector<16x64xf32>
    %25 = arith.subf %13, %24 : vector<16x64xf32>
    %26 = arith.mulf %25, %25 : vector<16x64xf32>
    %cst_10 = arith.constant dense<0.000000e+00> : vector<16xf32>
    %27 = vector.multi_reduction <add>, %26, %cst_10 [1] : vector<16x64xf32> to vector<16xf32>
    %28 = vector.shape_cast %27 : vector<16xf32> to vector<16x1xf32>
    %cst_11 = arith.constant 6.400000e+01 : f32
    %29 = vector.broadcast %cst_11 : f32 to vector<16x1xf32>
    %30 = arith.divf %28, %29 : vector<16x1xf32>
    %31 = vector.broadcast %23 : vector<16x1xf32> to vector<16x64xf32>
    %32 = arith.subf %13, %31 : vector<16x64xf32>
    %cst_12 = arith.constant 9.99999974E-6 : f32
    %33 = vector.broadcast %cst_12 : f32 to vector<16x1xf32>
    %34 = arith.addf %30, %33 : vector<16x1xf32>
    %35 = math.rsqrt %34 : vector<16x1xf32>
    %36 = vector.broadcast %35 : vector<16x1xf32> to vector<16x64xf32>
    %37 = arith.mulf %32, %36 : vector<16x64xf32>
    %38 = vector.shape_cast %17 : vector<64xf32> to vector<1x64xf32>
    %39 = vector.broadcast %38 : vector<1x64xf32> to vector<16x64xf32>
    %40 = arith.mulf %37, %39 : vector<16x64xf32>
    %41 = vector.shape_cast %19 : vector<64xf32> to vector<1x64xf32>
    %42 = vector.broadcast %41 : vector<1x64xf32> to vector<16x64xf32>
    %43 = arith.addf %40, %42 : vector<16x64xf32>
    %c0_13 = arith.constant 0 : index
    %c0_14 = arith.constant 0 : index
    %c0_15 = arith.constant 0 : index
    %c0_16 = arith.constant 0 : index
    %44 = vector.load %arg4[%c0_13, %c0_14, %c0_15, %c0_16] : memref<2x2x64x32xf32, #tpu.memory_space<vmem>>, vector<1x2x64x32xf32>
    %45 = vector.shape_cast %44 : vector<1x2x64x32xf32> to vector<2x64x32xf32>
    %c0_17 = arith.constant 0 : index
    %c0_18 = arith.constant 0 : index
    %c0_19 = arith.constant 0 : index
    %c0_20 = arith.constant 0 : index
    %46 = vector.load %arg5[%c0_17, %c0_18, %c0_19, %c0_20] : memref<2x2x1x32xf32, #tpu.memory_space<vmem>>, vector<1x2x1x32xf32>
    %47 = vector.shape_cast %46 : vector<1x2x1x32xf32> to vector<2x1x32xf32>
    %c0_21 = arith.constant 0 : index
    %c0_22 = arith.constant 0 : index
    %c0_23 = arith.constant 0 : index
    %c0_24 = arith.constant 0 : index
    %48 = vector.load %arg6[%c0_21, %c0_22, %c0_23, %c0_24] : memref<2x2x64x32xf32, #tpu.memory_space<vmem>>, vector<1x2x64x32xf32>
    %49 = vector.shape_cast %48 : vector<1x2x64x32xf32> to vector<2x64x32xf32>
    %c0_25 = arith.constant 0 : index
    %c0_26 = arith.constant 0 : index
    %c0_27 = arith.constant 0 : index
    %c0_28 = arith.constant 0 : index
    %50 = vector.load %arg7[%c0_25, %c0_26, %c0_27, %c0_28] : memref<2x2x1x32xf32, #tpu.memory_space<vmem>>, vector<1x2x1x32xf32>
    %51 = vector.shape_cast %50 : vector<1x2x1x32xf32> to vector<2x1x32xf32>
    %c0_29 = arith.constant 0 : index
    %c0_30 = arith.constant 0 : index
    %c0_31 = arith.constant 0 : index
    %c0_32 = arith.constant 0 : index
    %52 = vector.load %arg8[%c0_29, %c0_30, %c0_31, %c0_32] : memref<2x2x64x32xf32, #tpu.memory_space<vmem>>, vector<1x2x64x32xf32>
    %53 = vector.shape_cast %52 : vector<1x2x64x32xf32> to vector<2x64x32xf32>
    %c0_33 = arith.constant 0 : index
    %c0_34 = arith.constant 0 : index
    %c0_35 = arith.constant 0 : index
    %c0_36 = arith.constant 0 : index
    %54 = vector.load %arg9[%c0_33, %c0_34, %c0_35, %c0_36] : memref<2x2x1x32xf32, #tpu.memory_space<vmem>>, vector<1x2x1x32xf32>
    %55 = vector.shape_cast %54 : vector<1x2x1x32xf32> to vector<2x1x32xf32>
    %c0_37 = arith.constant 0 : index
    %c0_38 = arith.constant 0 : index
    %c0_39 = arith.constant 0 : index
    %c0_40 = arith.constant 0 : index
    %56 = vector.load %arg10[%c0_37, %c0_38, %c0_39, %c0_40] : memref<2x2x32x64xf32, #tpu.memory_space<vmem>>, vector<1x2x32x64xf32>
    %57 = vector.shape_cast %56 : vector<1x2x32x64xf32> to vector<2x32x64xf32>
    %58 = vector.extract_strided_slice %45 {offsets = [0, 0, 0], sizes = [1, 64, 32], strides = [1, 1, 1]} : vector<2x64x32xf32> to vector<1x64x32xf32>
    %59 = vector.shape_cast %58 : vector<1x64x32xf32> to vector<64x32xf32>
    %cst_41 = arith.constant dense<0.000000e+00> : vector<16x32xf32>
    %60 = tpu.matmul %43, %59, %cst_41 {dimension_numbers = #tpu.dot_dimension_numbers<[1], [0], [0], [1], [0, 0, 1, 1], [], []>} : vector<16x64xf32>, vector<64x32xf32>, vector<16x32xf32> -> vector<16x32xf32>
    %61 = vector.extract_strided_slice %47 {offsets = [0, 0, 0], sizes = [1, 1, 32], strides = [1, 1, 1]} : vector<2x1x32xf32> to vector<1x1x32xf32>
    %62 = vector.shape_cast %61 : vector<1x1x32xf32> to vector<1x32xf32>
    %63 = vector.broadcast %62 : vector<1x32xf32> to vector<16x32xf32>
    %64 = arith.addf %60, %63 : vector<16x32xf32>
    %65 = vector.extract_strided_slice %49 {offsets = [0, 0, 0], sizes = [1, 64, 32], strides = [1, 1, 1]} : vector<2x64x32xf32> to vector<1x64x32xf32>
    %66 = vector.shape_cast %65 : vector<1x64x32xf32> to vector<64x32xf32>
    %cst_42 = arith.constant dense<0.000000e+00> : vector<16x32xf32>
    %67 = tpu.matmul %43, %66, %cst_42 {dimension_numbers = #tpu.dot_dimension_numbers<[1], [0], [0], [1], [0, 0, 1, 1], [], []>} : vector<16x64xf32>, vector<64x32xf32>, vector<16x32xf32> -> vector<16x32xf32>
    %68 = vector.extract_strided_slice %51 {offsets = [0, 0, 0], sizes = [1, 1, 32], strides = [1, 1, 1]} : vector<2x1x32xf32> to vector<1x1x32xf32>
    %69 = vector.shape_cast %68 : vector<1x1x32xf32> to vector<1x32xf32>
    %70 = vector.broadcast %69 : vector<1x32xf32> to vector<16x32xf32>
    %71 = arith.addf %67, %70 : vector<16x32xf32>
    %72 = vector.extract_strided_slice %53 {offsets = [0, 0, 0], sizes = [1, 64, 32], strides = [1, 1, 1]} : vector<2x64x32xf32> to vector<1x64x32xf32>
    %73 = vector.shape_cast %72 : vector<1x64x32xf32> to vector<64x32xf32>
    %cst_43 = arith.constant dense<0.000000e+00> : vector<16x32xf32>
    %74 = tpu.matmul %43, %73, %cst_43 {dimension_numbers = #tpu.dot_dimension_numbers<[1], [0], [0], [1], [0, 0, 1, 1], [], []>} : vector<16x64xf32>, vector<64x32xf32>, vector<16x32xf32> -> vector<16x32xf32>
    %75 = vector.extract_strided_slice %55 {offsets = [0, 0, 0], sizes = [1, 1, 32], strides = [1, 1, 1]} : vector<2x1x32xf32> to vector<1x1x32xf32>
    %76 = vector.shape_cast %75 : vector<1x1x32xf32> to vector<1x32xf32>
    %77 = vector.broadcast %76 : vector<1x32xf32> to vector<16x32xf32>
    %78 = arith.addf %74, %77 : vector<16x32xf32>
    %79 = vector.shape_cast %64 : vector<16x32xf32> to vector<2x8x32xf32>
    %80 = vector.shape_cast %71 : vector<16x32xf32> to vector<2x8x32xf32>
    %81 = vector.shape_cast %78 : vector<16x32xf32> to vector<2x8x32xf32>
    "tpu.trace_start"() <{level = 10 : i32, message = "bqe,bke->bqk"}> : () -> ()
    %cst_44 = arith.constant dense<0.000000e+00> : vector<2x8x8xf32>
    %82 = tpu.matmul %79, %80, %cst_44 {dimension_numbers = #tpu.dot_dimension_numbers<[2], [2], [1], [1], [0, 0, 0, 1, 1, 1], [0], [0]>} : vector<2x8x32xf32>, vector<2x8x32xf32>, vector<2x8x8xf32> -> vector<2x8x8xf32>
    "tpu.trace_stop"() : () -> ()
    %cst_45 = arith.constant 0.176776692 : f32
    %83 = vector.broadcast %cst_45 : f32 to vector<2x8x8xf32>
    %84 = arith.mulf %82, %83 : vector<2x8x8xf32>
    %cst_46 = arith.constant dense<0xFF800000> : vector<2x8xf32>
    %85 = vector.multi_reduction <maximumf>, %84, %cst_46 [2] : vector<2x8x8xf32> to vector<2x8xf32>
    %86 = vector.shape_cast %85 : vector<2x8xf32> to vector<2x8x1xf32>
    %87 = vector.broadcast %86 : vector<2x8x1xf32> to vector<2x8x8xf32>
    %88 = arith.subf %84, %87 : vector<2x8x8xf32>
    %89 = math.exp %88 : vector<2x8x8xf32>
    %cst_47 = arith.constant dense<0.000000e+00> : vector<2x8xf32>
    %90 = vector.multi_reduction <add>, %89, %cst_47 [2] : vector<2x8x8xf32> to vector<2x8xf32>
    %91 = vector.shape_cast %90 : vector<2x8xf32> to vector<2x8x1xf32>
    %92 = tpu.reciprocal %91 {approx = true} : vector<2x8x1xf32> -> vector<2x8x1xf32>
    %93 = vector.broadcast %92 : vector<2x8x1xf32> to vector<2x8x8xf32>
    %94 = arith.mulf %89, %93 : vector<2x8x8xf32>
    "tpu.trace_start"() <{level = 10 : i32, message = "bqk,bke->bqe"}> : () -> ()
    %cst_48 = arith.constant dense<0.000000e+00> : vector<2x8x32xf32>
    %95 = tpu.matmul %94, %81, %cst_48 {dimension_numbers = #tpu.dot_dimension_numbers<[2], [1], [1], [2], [0, 0, 0, 1, 1, 2], [0], [0]>} : vector<2x8x8xf32>, vector<2x8x32xf32>, vector<2x8x32xf32> -> vector<2x8x32xf32>
    "tpu.trace_stop"() : () -> ()
    %96 = vector.shape_cast %95 : vector<2x8x32xf32> to vector<16x32xf32>
    %97 = vector.extract_strided_slice %57 {offsets = [0, 0, 0], sizes = [1, 32, 64], strides = [1, 1, 1]} : vector<2x32x64xf32> to vector<1x32x64xf32>
    %98 = vector.shape_cast %97 : vector<1x32x64xf32> to vector<32x64xf32>
    %cst_49 = arith.constant dense<0.000000e+00> : vector<16x64xf32>
    %99 = tpu.matmul %96, %98, %cst_49 {dimension_numbers = #tpu.dot_dimension_numbers<[1], [0], [0], [1], [0, 0, 1, 1], [], []>} : vector<16x32xf32>, vector<32x64xf32>, vector<16x64xf32> -> vector<16x64xf32>
    %100 = vector.extract_strided_slice %45 {offsets = [1, 0, 0], sizes = [1, 64, 32], strides = [1, 1, 1]} : vector<2x64x32xf32> to vector<1x64x32xf32>
    %101 = vector.shape_cast %100 : vector<1x64x32xf32> to vector<64x32xf32>
    %cst_50 = arith.constant dense<0.000000e+00> : vector<16x32xf32>
    %102 = tpu.matmul %43, %101, %cst_50 {dimension_numbers = #tpu.dot_dimension_numbers<[1], [0], [0], [1], [0, 0, 1, 1], [], []>} : vector<16x64xf32>, vector<64x32xf32>, vector<16x32xf32> -> vector<16x32xf32>
    %103 = vector.extract_strided_slice %47 {offsets = [1, 0, 0], sizes = [1, 1, 32], strides = [1, 1, 1]} : vector<2x1x32xf32> to vector<1x1x32xf32>
    %104 = vector.shape_cast %103 : vector<1x1x32xf32> to vector<1x32xf32>
    %105 = vector.broadcast %104 : vector<1x32xf32> to vector<16x32xf32>
    %106 = arith.addf %102, %105 : vector<16x32xf32>
    %107 = vector.extract_strided_slice %49 {offsets = [1, 0, 0], sizes = [1, 64, 32], strides = [1, 1, 1]} : vector<2x64x32xf32> to vector<1x64x32xf32>
    %108 = vector.shape_cast %107 : vector<1x64x32xf32> to vector<64x32xf32>
    %cst_51 = arith.constant dense<0.000000e+00> : vector<16x32xf32>
    %109 = tpu.matmul %43, %108, %cst_51 {dimension_numbers = #tpu.dot_dimension_numbers<[1], [0], [0], [1], [0, 0, 1, 1], [], []>} : vector<16x64xf32>, vector<64x32xf32>, vector<16x32xf32> -> vector<16x32xf32>
    %110 = vector.extract_strided_slice %51 {offsets = [1, 0, 0], sizes = [1, 1, 32], strides = [1, 1, 1]} : vector<2x1x32xf32> to vector<1x1x32xf32>
    %111 = vector.shape_cast %110 : vector<1x1x32xf32> to vector<1x32xf32>
    %112 = vector.broadcast %111 : vector<1x32xf32> to vector<16x32xf32>
    %113 = arith.addf %109, %112 : vector<16x32xf32>
    %114 = vector.extract_strided_slice %53 {offsets = [1, 0, 0], sizes = [1, 64, 32], strides = [1, 1, 1]} : vector<2x64x32xf32> to vector<1x64x32xf32>
    %115 = vector.shape_cast %114 : vector<1x64x32xf32> to vector<64x32xf32>
    %cst_52 = arith.constant dense<0.000000e+00> : vector<16x32xf32>
    %116 = tpu.matmul %43, %115, %cst_52 {dimension_numbers = #tpu.dot_dimension_numbers<[1], [0], [0], [1], [0, 0, 1, 1], [], []>} : vector<16x64xf32>, vector<64x32xf32>, vector<16x32xf32> -> vector<16x32xf32>
    %117 = vector.extract_strided_slice %55 {offsets = [1, 0, 0], sizes = [1, 1, 32], strides = [1, 1, 1]} : vector<2x1x32xf32> to vector<1x1x32xf32>
    %118 = vector.shape_cast %117 : vector<1x1x32xf32> to vector<1x32xf32>
    %119 = vector.broadcast %118 : vector<1x32xf32> to vector<16x32xf32>
    %120 = arith.addf %116, %119 : vector<16x32xf32>
    %121 = vector.shape_cast %106 : vector<16x32xf32> to vector<2x8x32xf32>
    %122 = vector.shape_cast %113 : vector<16x32xf32> to vector<2x8x32xf32>
    %123 = vector.shape_cast %120 : vector<16x32xf32> to vector<2x8x32xf32>
    "tpu.trace_start"() <{level = 10 : i32, message = "bqe,bke->bqk"}> : () -> ()
    %cst_53 = arith.constant dense<0.000000e+00> : vector<2x8x8xf32>
    %124 = tpu.matmul %121, %122, %cst_53 {dimension_numbers = #tpu.dot_dimension_numbers<[2], [2], [1], [1], [0, 0, 0, 1, 1, 1], [0], [0]>} : vector<2x8x32xf32>, vector<2x8x32xf32>, vector<2x8x8xf32> -> vector<2x8x8xf32>
    "tpu.trace_stop"() : () -> ()
    %cst_54 = arith.constant 0.176776692 : f32
    %125 = vector.broadcast %cst_54 : f32 to vector<2x8x8xf32>
    %126 = arith.mulf %124, %125 : vector<2x8x8xf32>
    %cst_55 = arith.constant dense<0xFF800000> : vector<2x8xf32>
    %127 = vector.multi_reduction <maximumf>, %126, %cst_55 [2] : vector<2x8x8xf32> to vector<2x8xf32>
    %128 = vector.shape_cast %127 : vector<2x8xf32> to vector<2x8x1xf32>
    %129 = vector.broadcast %128 : vector<2x8x1xf32> to vector<2x8x8xf32>
    %130 = arith.subf %126, %129 : vector<2x8x8xf32>
    %131 = math.exp %130 : vector<2x8x8xf32>
    %cst_56 = arith.constant dense<0.000000e+00> : vector<2x8xf32>
    %132 = vector.multi_reduction <add>, %131, %cst_56 [2] : vector<2x8x8xf32> to vector<2x8xf32>
    %133 = vector.shape_cast %132 : vector<2x8xf32> to vector<2x8x1xf32>
    %134 = tpu.reciprocal %133 {approx = true} : vector<2x8x1xf32> -> vector<2x8x1xf32>
    %135 = vector.broadcast %134 : vector<2x8x1xf32> to vector<2x8x8xf32>
    %136 = arith.mulf %131, %135 : vector<2x8x8xf32>
    "tpu.trace_start"() <{level = 10 : i32, message = "bqk,bke->bqe"}> : () -> ()
    %cst_57 = arith.constant dense<0.000000e+00> : vector<2x8x32xf32>
    %137 = tpu.matmul %136, %123, %cst_57 {dimension_numbers = #tpu.dot_dimension_numbers<[2], [1], [1], [2], [0, 0, 0, 1, 1, 2], [0], [0]>} : vector<2x8x8xf32>, vector<2x8x32xf32>, vector<2x8x32xf32> -> vector<2x8x32xf32>
    "tpu.trace_stop"() : () -> ()
    %138 = vector.shape_cast %137 : vector<2x8x32xf32> to vector<16x32xf32>
    %139 = vector.extract_strided_slice %57 {offsets = [1, 0, 0], sizes = [1, 32, 64], strides = [1, 1, 1]} : vector<2x32x64xf32> to vector<1x32x64xf32>
    %140 = vector.shape_cast %139 : vector<1x32x64xf32> to vector<32x64xf32>
    %cst_58 = arith.constant dense<0.000000e+00> : vector<16x64xf32>
    %141 = tpu.matmul %138, %140, %cst_58 {dimension_numbers = #tpu.dot_dimension_numbers<[1], [0], [0], [1], [0, 0, 1, 1], [], []>} : vector<16x32xf32>, vector<32x64xf32>, vector<16x64xf32> -> vector<16x64xf32>
    %142 = arith.addf %99, %141 : vector<16x64xf32>
    %143 = arith.addf %13, %142 : vector<16x64xf32>
    %c0_59 = arith.constant 0 : index
    %c0_60 = arith.constant 0 : index
    %c0_61 = arith.constant 0 : index
    %144 = vector.load %arg11[%c0_59, %c0_60, %c0_61] : memref<2x1x64xf32, #tpu.memory_space<vmem>>, vector<1x1x64xf32>
    %145 = vector.shape_cast %144 : vector<1x1x64xf32> to vector<1x64xf32>
    %146 = vector.broadcast %145 : vector<1x64xf32> to vector<16x64xf32>
    %147 = arith.addf %143, %146 : vector<16x64xf32>
    %c0_62 = arith.constant 0 : index
    %c0_63 = arith.constant 0 : index
    %c0_64 = arith.constant 0 : index
    %148 = vector.load %arg12[%c0_62, %c0_63, %c0_64] : memref<2x2x64xf32, #tpu.memory_space<vmem>>, vector<1x2x64xf32>
    %149 = vector.shape_cast %148 : vector<1x2x64xf32> to vector<2x64xf32>
    %150 = vector.extract_strided_slice %149 {offsets = [0, 0], sizes = [1, 64], strides = [1, 1]} : vector<2x64xf32> to vector<1x64xf32>
    %151 = vector.shape_cast %150 : vector<1x64xf32> to vector<64xf32>
    %152 = vector.extract_strided_slice %149 {offsets = [1, 0], sizes = [1, 64], strides = [1, 1]} : vector<2x64xf32> to vector<1x64xf32>
    %153 = vector.shape_cast %152 : vector<1x64xf32> to vector<64xf32>
    %cst_65 = arith.constant dense<0.000000e+00> : vector<16xf32>
    %154 = vector.multi_reduction <add>, %147, %cst_65 [1] : vector<16x64xf32> to vector<16xf32>
    %155 = vector.shape_cast %154 : vector<16xf32> to vector<16x1xf32>
    %cst_66 = arith.constant 6.400000e+01 : f32
    %156 = vector.broadcast %cst_66 : f32 to vector<16x1xf32>
    %157 = arith.divf %155, %156 : vector<16x1xf32>
    %158 = vector.broadcast %157 : vector<16x1xf32> to vector<16x64xf32>
    %159 = arith.subf %147, %158 : vector<16x64xf32>
    %160 = arith.mulf %159, %159 : vector<16x64xf32>
    %cst_67 = arith.constant dense<0.000000e+00> : vector<16xf32>
    %161 = vector.multi_reduction <add>, %160, %cst_67 [1] : vector<16x64xf32> to vector<16xf32>
    %162 = vector.shape_cast %161 : vector<16xf32> to vector<16x1xf32>
    %cst_68 = arith.constant 6.400000e+01 : f32
    %163 = vector.broadcast %cst_68 : f32 to vector<16x1xf32>
    %164 = arith.divf %162, %163 : vector<16x1xf32>
    %165 = vector.broadcast %157 : vector<16x1xf32> to vector<16x64xf32>
    %166 = arith.subf %147, %165 : vector<16x64xf32>
    %cst_69 = arith.constant 9.99999974E-6 : f32
    %167 = vector.broadcast %cst_69 : f32 to vector<16x1xf32>
    %168 = arith.addf %164, %167 : vector<16x1xf32>
    %169 = math.rsqrt %168 : vector<16x1xf32>
    %170 = vector.broadcast %169 : vector<16x1xf32> to vector<16x64xf32>
    %171 = arith.mulf %166, %170 : vector<16x64xf32>
    %172 = vector.shape_cast %151 : vector<64xf32> to vector<1x64xf32>
    %173 = vector.broadcast %172 : vector<1x64xf32> to vector<16x64xf32>
    %174 = arith.mulf %171, %173 : vector<16x64xf32>
    %175 = vector.shape_cast %153 : vector<64xf32> to vector<1x64xf32>
    %176 = vector.broadcast %175 : vector<1x64xf32> to vector<16x64xf32>
    %177 = arith.addf %174, %176 : vector<16x64xf32>
    %c0_70 = arith.constant 0 : index
    %c0_71 = arith.constant 0 : index
    %c0_72 = arith.constant 0 : index
    %178 = vector.load %arg13[%c0_70, %c0_71, %c0_72] : memref<2x64x256xf32, #tpu.memory_space<vmem>>, vector<1x64x256xf32>
    %179 = vector.shape_cast %178 : vector<1x64x256xf32> to vector<64x256xf32>
    %cst_73 = arith.constant dense<0.000000e+00> : vector<16x256xf32>
    %180 = tpu.matmul %177, %179, %cst_73 {dimension_numbers = #tpu.dot_dimension_numbers<[1], [0], [0], [1], [0, 0, 1, 1], [], []>} : vector<16x64xf32>, vector<64x256xf32>, vector<16x256xf32> -> vector<16x256xf32>
    %c0_74 = arith.constant 0 : index
    %c0_75 = arith.constant 0 : index
    %c0_76 = arith.constant 0 : index
    %181 = vector.load %arg14[%c0_74, %c0_75, %c0_76] : memref<2x1x256xf32, #tpu.memory_space<vmem>>, vector<1x1x256xf32>
    %182 = vector.shape_cast %181 : vector<1x1x256xf32> to vector<1x256xf32>
    %183 = vector.broadcast %182 : vector<1x256xf32> to vector<16x256xf32>
    %184 = arith.addf %180, %183 : vector<16x256xf32>
    %cst_77 = arith.constant 0.000000e+00 : f32
    %185 = vector.broadcast %cst_77 : f32 to vector<16x256xf32>
    %186 = arith.maximumf %184, %185 : vector<16x256xf32>
    %c0_78 = arith.constant 0 : index
    %c0_79 = arith.constant 0 : index
    %c0_80 = arith.constant 0 : index
    %187 = vector.load %arg15[%c0_78, %c0_79, %c0_80] : memref<2x256x64xf32, #tpu.memory_space<vmem>>, vector<1x256x64xf32>
    %188 = vector.shape_cast %187 : vector<1x256x64xf32> to vector<256x64xf32>
    %cst_81 = arith.constant dense<0.000000e+00> : vector<16x64xf32>
    %189 = tpu.matmul %186, %188, %cst_81 {dimension_numbers = #tpu.dot_dimension_numbers<[1], [0], [0], [1], [0, 0, 1, 1], [], []>} : vector<16x256xf32>, vector<256x64xf32>, vector<16x64xf32> -> vector<16x64xf32>
    %190 = arith.addf %147, %189 : vector<16x64xf32>
    %c0_82 = arith.constant 0 : index
    %c0_83 = arith.constant 0 : index
    %c0_84 = arith.constant 0 : index
    %191 = vector.load %arg16[%c0_82, %c0_83, %c0_84] : memref<2x1x64xf32, #tpu.memory_space<vmem>>, vector<1x1x64xf32>
    %192 = vector.shape_cast %191 : vector<1x1x64xf32> to vector<1x64xf32>
    %193 = vector.broadcast %192 : vector<1x64xf32> to vector<16x64xf32>
    %194 = arith.addf %190, %193 : vector<16x64xf32>
    %c1 = arith.constant 1 : index
    %c0_85 = arith.constant 0 : index
    %c0_86 = arith.constant 0 : index
    %195 = vector.load %arg3[%c1, %c0_85, %c0_86] : memref<2x2x64xf32, #tpu.memory_space<vmem>>, vector<1x2x64xf32>
    %196 = vector.shape_cast %195 : vector<1x2x64xf32> to vector<2x64xf32>
    %197 = vector.extract_strided_slice %196 {offsets = [0, 0], sizes = [1, 64], strides = [1, 1]} : vector<2x64xf32> to vector<1x64xf32>
    %198 = vector.shape_cast %197 : vector<1x64xf32> to vector<64xf32>
    %199 = vector.extract_strided_slice %196 {offsets = [1, 0], sizes = [1, 64], strides = [1, 1]} : vector<2x64xf32> to vector<1x64xf32>
    %200 = vector.shape_cast %199 : vector<1x64xf32> to vector<64xf32>
    %cst_87 = arith.constant dense<0.000000e+00> : vector<16xf32>
    %201 = vector.multi_reduction <add>, %194, %cst_87 [1] : vector<16x64xf32> to vector<16xf32>
    %202 = vector.shape_cast %201 : vector<16xf32> to vector<16x1xf32>
    %cst_88 = arith.constant 6.400000e+01 : f32
    %203 = vector.broadcast %cst_88 : f32 to vector<16x1xf32>
    %204 = arith.divf %202, %203 : vector<16x1xf32>
    %205 = vector.broadcast %204 : vector<16x1xf32> to vector<16x64xf32>
    %206 = arith.subf %194, %205 : vector<16x64xf32>
    %207 = arith.mulf %206, %206 : vector<16x64xf32>
    %cst_89 = arith.constant dense<0.000000e+00> : vector<16xf32>
    %208 = vector.multi_reduction <add>, %207, %cst_89 [1] : vector<16x64xf32> to vector<16xf32>
    %209 = vector.shape_cast %208 : vector<16xf32> to vector<16x1xf32>
    %cst_90 = arith.constant 6.400000e+01 : f32
    %210 = vector.broadcast %cst_90 : f32 to vector<16x1xf32>
    %211 = arith.divf %209, %210 : vector<16x1xf32>
    %212 = vector.broadcast %204 : vector<16x1xf32> to vector<16x64xf32>
    %213 = arith.subf %194, %212 : vector<16x64xf32>
    %cst_91 = arith.constant 9.99999974E-6 : f32
    %214 = vector.broadcast %cst_91 : f32 to vector<16x1xf32>
    %215 = arith.addf %211, %214 : vector<16x1xf32>
    %216 = math.rsqrt %215 : vector<16x1xf32>
    %217 = vector.broadcast %216 : vector<16x1xf32> to vector<16x64xf32>
    %218 = arith.mulf %213, %217 : vector<16x64xf32>
    %219 = vector.shape_cast %198 : vector<64xf32> to vector<1x64xf32>
    %220 = vector.broadcast %219 : vector<1x64xf32> to vector<16x64xf32>
    %221 = arith.mulf %218, %220 : vector<16x64xf32>
    %222 = vector.shape_cast %200 : vector<64xf32> to vector<1x64xf32>
    %223 = vector.broadcast %222 : vector<1x64xf32> to vector<16x64xf32>
    %224 = arith.addf %221, %223 : vector<16x64xf32>
    %c1_92 = arith.constant 1 : index
    %c0_93 = arith.constant 0 : index
    %c0_94 = arith.constant 0 : index
    %c0_95 = arith.constant 0 : index
    %225 = vector.load %arg4[%c1_92, %c0_93, %c0_94, %c0_95] : memref<2x2x64x32xf32, #tpu.memory_space<vmem>>, vector<1x2x64x32xf32>
    %226 = vector.shape_cast %225 : vector<1x2x64x32xf32> to vector<2x64x32xf32>
    %c1_96 = arith.constant 1 : index
    %c0_97 = arith.constant 0 : index
    %c0_98 = arith.constant 0 : index
    %c0_99 = arith.constant 0 : index
    %227 = vector.load %arg5[%c1_96, %c0_97, %c0_98, %c0_99] : memref<2x2x1x32xf32, #tpu.memory_space<vmem>>, vector<1x2x1x32xf32>
    %228 = vector.shape_cast %227 : vector<1x2x1x32xf32> to vector<2x1x32xf32>
    %c1_100 = arith.constant 1 : index
    %c0_101 = arith.constant 0 : index
    %c0_102 = arith.constant 0 : index
    %c0_103 = arith.constant 0 : index
    %229 = vector.load %arg6[%c1_100, %c0_101, %c0_102, %c0_103] : memref<2x2x64x32xf32, #tpu.memory_space<vmem>>, vector<1x2x64x32xf32>
    %230 = vector.shape_cast %229 : vector<1x2x64x32xf32> to vector<2x64x32xf32>
    %c1_104 = arith.constant 1 : index
    %c0_105 = arith.constant 0 : index
    %c0_106 = arith.constant 0 : index
    %c0_107 = arith.constant 0 : index
    %231 = vector.load %arg7[%c1_104, %c0_105, %c0_106, %c0_107] : memref<2x2x1x32xf32, #tpu.memory_space<vmem>>, vector<1x2x1x32xf32>
    %232 = vector.shape_cast %231 : vector<1x2x1x32xf32> to vector<2x1x32xf32>
    %c1_108 = arith.constant 1 : index
    %c0_109 = arith.constant 0 : index
    %c0_110 = arith.constant 0 : index
    %c0_111 = arith.constant 0 : index
    %233 = vector.load %arg8[%c1_108, %c0_109, %c0_110, %c0_111] : memref<2x2x64x32xf32, #tpu.memory_space<vmem>>, vector<1x2x64x32xf32>
    %234 = vector.shape_cast %233 : vector<1x2x64x32xf32> to vector<2x64x32xf32>
    %c1_112 = arith.constant 1 : index
    %c0_113 = arith.constant 0 : index
    %c0_114 = arith.constant 0 : index
    %c0_115 = arith.constant 0 : index
    %235 = vector.load %arg9[%c1_112, %c0_113, %c0_114, %c0_115] : memref<2x2x1x32xf32, #tpu.memory_space<vmem>>, vector<1x2x1x32xf32>
    %236 = vector.shape_cast %235 : vector<1x2x1x32xf32> to vector<2x1x32xf32>
    %c1_116 = arith.constant 1 : index
    %c0_117 = arith.constant 0 : index
    %c0_118 = arith.constant 0 : index
    %c0_119 = arith.constant 0 : index
    %237 = vector.load %arg10[%c1_116, %c0_117, %c0_118, %c0_119] : memref<2x2x32x64xf32, #tpu.memory_space<vmem>>, vector<1x2x32x64xf32>
    %238 = vector.shape_cast %237 : vector<1x2x32x64xf32> to vector<2x32x64xf32>
    %239 = vector.extract_strided_slice %226 {offsets = [0, 0, 0], sizes = [1, 64, 32], strides = [1, 1, 1]} : vector<2x64x32xf32> to vector<1x64x32xf32>
    %240 = vector.shape_cast %239 : vector<1x64x32xf32> to vector<64x32xf32>
    %cst_120 = arith.constant dense<0.000000e+00> : vector<16x32xf32>
    %241 = tpu.matmul %224, %240, %cst_120 {dimension_numbers = #tpu.dot_dimension_numbers<[1], [0], [0], [1], [0, 0, 1, 1], [], []>} : vector<16x64xf32>, vector<64x32xf32>, vector<16x32xf32> -> vector<16x32xf32>
    %242 = vector.extract_strided_slice %228 {offsets = [0, 0, 0], sizes = [1, 1, 32], strides = [1, 1, 1]} : vector<2x1x32xf32> to vector<1x1x32xf32>
    %243 = vector.shape_cast %242 : vector<1x1x32xf32> to vector<1x32xf32>
    %244 = vector.broadcast %243 : vector<1x32xf32> to vector<16x32xf32>
    %245 = arith.addf %241, %244 : vector<16x32xf32>
    %246 = vector.extract_strided_slice %230 {offsets = [0, 0, 0], sizes = [1, 64, 32], strides = [1, 1, 1]} : vector<2x64x32xf32> to vector<1x64x32xf32>
    %247 = vector.shape_cast %246 : vector<1x64x32xf32> to vector<64x32xf32>
    %cst_121 = arith.constant dense<0.000000e+00> : vector<16x32xf32>
    %248 = tpu.matmul %224, %247, %cst_121 {dimension_numbers = #tpu.dot_dimension_numbers<[1], [0], [0], [1], [0, 0, 1, 1], [], []>} : vector<16x64xf32>, vector<64x32xf32>, vector<16x32xf32> -> vector<16x32xf32>
    %249 = vector.extract_strided_slice %232 {offsets = [0, 0, 0], sizes = [1, 1, 32], strides = [1, 1, 1]} : vector<2x1x32xf32> to vector<1x1x32xf32>
    %250 = vector.shape_cast %249 : vector<1x1x32xf32> to vector<1x32xf32>
    %251 = vector.broadcast %250 : vector<1x32xf32> to vector<16x32xf32>
    %252 = arith.addf %248, %251 : vector<16x32xf32>
    %253 = vector.extract_strided_slice %234 {offsets = [0, 0, 0], sizes = [1, 64, 32], strides = [1, 1, 1]} : vector<2x64x32xf32> to vector<1x64x32xf32>
    %254 = vector.shape_cast %253 : vector<1x64x32xf32> to vector<64x32xf32>
    %cst_122 = arith.constant dense<0.000000e+00> : vector<16x32xf32>
    %255 = tpu.matmul %224, %254, %cst_122 {dimension_numbers = #tpu.dot_dimension_numbers<[1], [0], [0], [1], [0, 0, 1, 1], [], []>} : vector<16x64xf32>, vector<64x32xf32>, vector<16x32xf32> -> vector<16x32xf32>
    %256 = vector.extract_strided_slice %236 {offsets = [0, 0, 0], sizes = [1, 1, 32], strides = [1, 1, 1]} : vector<2x1x32xf32> to vector<1x1x32xf32>
    %257 = vector.shape_cast %256 : vector<1x1x32xf32> to vector<1x32xf32>
    %258 = vector.broadcast %257 : vector<1x32xf32> to vector<16x32xf32>
    %259 = arith.addf %255, %258 : vector<16x32xf32>
    %260 = vector.shape_cast %245 : vector<16x32xf32> to vector<2x8x32xf32>
    %261 = vector.shape_cast %252 : vector<16x32xf32> to vector<2x8x32xf32>
    %262 = vector.shape_cast %259 : vector<16x32xf32> to vector<2x8x32xf32>
    "tpu.trace_start"() <{level = 10 : i32, message = "bqe,bke->bqk"}> : () -> ()
    %cst_123 = arith.constant dense<0.000000e+00> : vector<2x8x8xf32>
    %263 = tpu.matmul %260, %261, %cst_123 {dimension_numbers = #tpu.dot_dimension_numbers<[2], [2], [1], [1], [0, 0, 0, 1, 1, 1], [0], [0]>} : vector<2x8x32xf32>, vector<2x8x32xf32>, vector<2x8x8xf32> -> vector<2x8x8xf32>
    "tpu.trace_stop"() : () -> ()
    %cst_124 = arith.constant 0.176776692 : f32
    %264 = vector.broadcast %cst_124 : f32 to vector<2x8x8xf32>
    %265 = arith.mulf %263, %264 : vector<2x8x8xf32>
    %cst_125 = arith.constant dense<0xFF800000> : vector<2x8xf32>
    %266 = vector.multi_reduction <maximumf>, %265, %cst_125 [2] : vector<2x8x8xf32> to vector<2x8xf32>
    %267 = vector.shape_cast %266 : vector<2x8xf32> to vector<2x8x1xf32>
    %268 = vector.broadcast %267 : vector<2x8x1xf32> to vector<2x8x8xf32>
    %269 = arith.subf %265, %268 : vector<2x8x8xf32>
    %270 = math.exp %269 : vector<2x8x8xf32>
    %cst_126 = arith.constant dense<0.000000e+00> : vector<2x8xf32>
    %271 = vector.multi_reduction <add>, %270, %cst_126 [2] : vector<2x8x8xf32> to vector<2x8xf32>
    %272 = vector.shape_cast %271 : vector<2x8xf32> to vector<2x8x1xf32>
    %273 = tpu.reciprocal %272 {approx = true} : vector<2x8x1xf32> -> vector<2x8x1xf32>
    %274 = vector.broadcast %273 : vector<2x8x1xf32> to vector<2x8x8xf32>
    %275 = arith.mulf %270, %274 : vector<2x8x8xf32>
    "tpu.trace_start"() <{level = 10 : i32, message = "bqk,bke->bqe"}> : () -> ()
    %cst_127 = arith.constant dense<0.000000e+00> : vector<2x8x32xf32>
    %276 = tpu.matmul %275, %262, %cst_127 {dimension_numbers = #tpu.dot_dimension_numbers<[2], [1], [1], [2], [0, 0, 0, 1, 1, 2], [0], [0]>} : vector<2x8x8xf32>, vector<2x8x32xf32>, vector<2x8x32xf32> -> vector<2x8x32xf32>
    "tpu.trace_stop"() : () -> ()
    %277 = vector.shape_cast %276 : vector<2x8x32xf32> to vector<16x32xf32>
    %278 = vector.extract_strided_slice %238 {offsets = [0, 0, 0], sizes = [1, 32, 64], strides = [1, 1, 1]} : vector<2x32x64xf32> to vector<1x32x64xf32>
    %279 = vector.shape_cast %278 : vector<1x32x64xf32> to vector<32x64xf32>
    %cst_128 = arith.constant dense<0.000000e+00> : vector<16x64xf32>
    %280 = tpu.matmul %277, %279, %cst_128 {dimension_numbers = #tpu.dot_dimension_numbers<[1], [0], [0], [1], [0, 0, 1, 1], [], []>} : vector<16x32xf32>, vector<32x64xf32>, vector<16x64xf32> -> vector<16x64xf32>
    %281 = vector.extract_strided_slice %226 {offsets = [1, 0, 0], sizes = [1, 64, 32], strides = [1, 1, 1]} : vector<2x64x32xf32> to vector<1x64x32xf32>
    %282 = vector.shape_cast %281 : vector<1x64x32xf32> to vector<64x32xf32>
    %cst_129 = arith.constant dense<0.000000e+00> : vector<16x32xf32>
    %283 = tpu.matmul %224, %282, %cst_129 {dimension_numbers = #tpu.dot_dimension_numbers<[1], [0], [0], [1], [0, 0, 1, 1], [], []>} : vector<16x64xf32>, vector<64x32xf32>, vector<16x32xf32> -> vector<16x32xf32>
    %284 = vector.extract_strided_slice %228 {offsets = [1, 0, 0], sizes = [1, 1, 32], strides = [1, 1, 1]} : vector<2x1x32xf32> to vector<1x1x32xf32>
    %285 = vector.shape_cast %284 : vector<1x1x32xf32> to vector<1x32xf32>
    %286 = vector.broadcast %285 : vector<1x32xf32> to vector<16x32xf32>
    %287 = arith.addf %283, %286 : vector<16x32xf32>
    %288 = vector.extract_strided_slice %230 {offsets = [1, 0, 0], sizes = [1, 64, 32], strides = [1, 1, 1]} : vector<2x64x32xf32> to vector<1x64x32xf32>
    %289 = vector.shape_cast %288 : vector<1x64x32xf32> to vector<64x32xf32>
    %cst_130 = arith.constant dense<0.000000e+00> : vector<16x32xf32>
    %290 = tpu.matmul %224, %289, %cst_130 {dimension_numbers = #tpu.dot_dimension_numbers<[1], [0], [0], [1], [0, 0, 1, 1], [], []>} : vector<16x64xf32>, vector<64x32xf32>, vector<16x32xf32> -> vector<16x32xf32>
    %291 = vector.extract_strided_slice %232 {offsets = [1, 0, 0], sizes = [1, 1, 32], strides = [1, 1, 1]} : vector<2x1x32xf32> to vector<1x1x32xf32>
    %292 = vector.shape_cast %291 : vector<1x1x32xf32> to vector<1x32xf32>
    %293 = vector.broadcast %292 : vector<1x32xf32> to vector<16x32xf32>
    %294 = arith.addf %290, %293 : vector<16x32xf32>
    %295 = vector.extract_strided_slice %234 {offsets = [1, 0, 0], sizes = [1, 64, 32], strides = [1, 1, 1]} : vector<2x64x32xf32> to vector<1x64x32xf32>
    %296 = vector.shape_cast %295 : vector<1x64x32xf32> to vector<64x32xf32>
    %cst_131 = arith.constant dense<0.000000e+00> : vector<16x32xf32>
    %297 = tpu.matmul %224, %296, %cst_131 {dimension_numbers = #tpu.dot_dimension_numbers<[1], [0], [0], [1], [0, 0, 1, 1], [], []>} : vector<16x64xf32>, vector<64x32xf32>, vector<16x32xf32> -> vector<16x32xf32>
    %298 = vector.extract_strided_slice %236 {offsets = [1, 0, 0], sizes = [1, 1, 32], strides = [1, 1, 1]} : vector<2x1x32xf32> to vector<1x1x32xf32>
    %299 = vector.shape_cast %298 : vector<1x1x32xf32> to vector<1x32xf32>
    %300 = vector.broadcast %299 : vector<1x32xf32> to vector<16x32xf32>
    %301 = arith.addf %297, %300 : vector<16x32xf32>
    %302 = vector.shape_cast %287 : vector<16x32xf32> to vector<2x8x32xf32>
    %303 = vector.shape_cast %294 : vector<16x32xf32> to vector<2x8x32xf32>
    %304 = vector.shape_cast %301 : vector<16x32xf32> to vector<2x8x32xf32>
    "tpu.trace_start"() <{level = 10 : i32, message = "bqe,bke->bqk"}> : () -> ()
    %cst_132 = arith.constant dense<0.000000e+00> : vector<2x8x8xf32>
    %305 = tpu.matmul %302, %303, %cst_132 {dimension_numbers = #tpu.dot_dimension_numbers<[2], [2], [1], [1], [0, 0, 0, 1, 1, 1], [0], [0]>} : vector<2x8x32xf32>, vector<2x8x32xf32>, vector<2x8x8xf32> -> vector<2x8x8xf32>
    "tpu.trace_stop"() : () -> ()
    %cst_133 = arith.constant 0.176776692 : f32
    %306 = vector.broadcast %cst_133 : f32 to vector<2x8x8xf32>
    %307 = arith.mulf %305, %306 : vector<2x8x8xf32>
    %cst_134 = arith.constant dense<0xFF800000> : vector<2x8xf32>
    %308 = vector.multi_reduction <maximumf>, %307, %cst_134 [2] : vector<2x8x8xf32> to vector<2x8xf32>
    %309 = vector.shape_cast %308 : vector<2x8xf32> to vector<2x8x1xf32>
    %310 = vector.broadcast %309 : vector<2x8x1xf32> to vector<2x8x8xf32>
    %311 = arith.subf %307, %310 : vector<2x8x8xf32>
    %312 = math.exp %311 : vector<2x8x8xf32>
    %cst_135 = arith.constant dense<0.000000e+00> : vector<2x8xf32>
    %313 = vector.multi_reduction <add>, %312, %cst_135 [2] : vector<2x8x8xf32> to vector<2x8xf32>
    %314 = vector.shape_cast %313 : vector<2x8xf32> to vector<2x8x1xf32>
    %315 = tpu.reciprocal %314 {approx = true} : vector<2x8x1xf32> -> vector<2x8x1xf32>
    %316 = vector.broadcast %315 : vector<2x8x1xf32> to vector<2x8x8xf32>
    %317 = arith.mulf %312, %316 : vector<2x8x8xf32>
    "tpu.trace_start"() <{level = 10 : i32, message = "bqk,bke->bqe"}> : () -> ()
    %cst_136 = arith.constant dense<0.000000e+00> : vector<2x8x32xf32>
    %318 = tpu.matmul %317, %304, %cst_136 {dimension_numbers = #tpu.dot_dimension_numbers<[2], [1], [1], [2], [0, 0, 0, 1, 1, 2], [0], [0]>} : vector<2x8x8xf32>, vector<2x8x32xf32>, vector<2x8x32xf32> -> vector<2x8x32xf32>
    "tpu.trace_stop"() : () -> ()
    %319 = vector.shape_cast %318 : vector<2x8x32xf32> to vector<16x32xf32>
    %320 = vector.extract_strided_slice %238 {offsets = [1, 0, 0], sizes = [1, 32, 64], strides = [1, 1, 1]} : vector<2x32x64xf32> to vector<1x32x64xf32>
    %321 = vector.shape_cast %320 : vector<1x32x64xf32> to vector<32x64xf32>
    %cst_137 = arith.constant dense<0.000000e+00> : vector<16x64xf32>
    %322 = tpu.matmul %319, %321, %cst_137 {dimension_numbers = #tpu.dot_dimension_numbers<[1], [0], [0], [1], [0, 0, 1, 1], [], []>} : vector<16x32xf32>, vector<32x64xf32>, vector<16x64xf32> -> vector<16x64xf32>
    %323 = arith.addf %280, %322 : vector<16x64xf32>
    %324 = arith.addf %194, %323 : vector<16x64xf32>
    %c1_138 = arith.constant 1 : index
    %c0_139 = arith.constant 0 : index
    %c0_140 = arith.constant 0 : index
    %325 = vector.load %arg11[%c1_138, %c0_139, %c0_140] : memref<2x1x64xf32, #tpu.memory_space<vmem>>, vector<1x1x64xf32>
    %326 = vector.shape_cast %325 : vector<1x1x64xf32> to vector<1x64xf32>
    %327 = vector.broadcast %326 : vector<1x64xf32> to vector<16x64xf32>
    %328 = arith.addf %324, %327 : vector<16x64xf32>
    %c1_141 = arith.constant 1 : index
    %c0_142 = arith.constant 0 : index
    %c0_143 = arith.constant 0 : index
    %329 = vector.load %arg12[%c1_141, %c0_142, %c0_143] : memref<2x2x64xf32, #tpu.memory_space<vmem>>, vector<1x2x64xf32>
    %330 = vector.shape_cast %329 : vector<1x2x64xf32> to vector<2x64xf32>
    %331 = vector.extract_strided_slice %330 {offsets = [0, 0], sizes = [1, 64], strides = [1, 1]} : vector<2x64xf32> to vector<1x64xf32>
    %332 = vector.shape_cast %331 : vector<1x64xf32> to vector<64xf32>
    %333 = vector.extract_strided_slice %330 {offsets = [1, 0], sizes = [1, 64], strides = [1, 1]} : vector<2x64xf32> to vector<1x64xf32>
    %334 = vector.shape_cast %333 : vector<1x64xf32> to vector<64xf32>
    %cst_144 = arith.constant dense<0.000000e+00> : vector<16xf32>
    %335 = vector.multi_reduction <add>, %328, %cst_144 [1] : vector<16x64xf32> to vector<16xf32>
    %336 = vector.shape_cast %335 : vector<16xf32> to vector<16x1xf32>
    %cst_145 = arith.constant 6.400000e+01 : f32
    %337 = vector.broadcast %cst_145 : f32 to vector<16x1xf32>
    %338 = arith.divf %336, %337 : vector<16x1xf32>
    %339 = vector.broadcast %338 : vector<16x1xf32> to vector<16x64xf32>
    %340 = arith.subf %328, %339 : vector<16x64xf32>
    %341 = arith.mulf %340, %340 : vector<16x64xf32>
    %cst_146 = arith.constant dense<0.000000e+00> : vector<16xf32>
    %342 = vector.multi_reduction <add>, %341, %cst_146 [1] : vector<16x64xf32> to vector<16xf32>
    %343 = vector.shape_cast %342 : vector<16xf32> to vector<16x1xf32>
    %cst_147 = arith.constant 6.400000e+01 : f32
    %344 = vector.broadcast %cst_147 : f32 to vector<16x1xf32>
    %345 = arith.divf %343, %344 : vector<16x1xf32>
    %346 = vector.broadcast %338 : vector<16x1xf32> to vector<16x64xf32>
    %347 = arith.subf %328, %346 : vector<16x64xf32>
    %cst_148 = arith.constant 9.99999974E-6 : f32
    %348 = vector.broadcast %cst_148 : f32 to vector<16x1xf32>
    %349 = arith.addf %345, %348 : vector<16x1xf32>
    %350 = math.rsqrt %349 : vector<16x1xf32>
    %351 = vector.broadcast %350 : vector<16x1xf32> to vector<16x64xf32>
    %352 = arith.mulf %347, %351 : vector<16x64xf32>
    %353 = vector.shape_cast %332 : vector<64xf32> to vector<1x64xf32>
    %354 = vector.broadcast %353 : vector<1x64xf32> to vector<16x64xf32>
    %355 = arith.mulf %352, %354 : vector<16x64xf32>
    %356 = vector.shape_cast %334 : vector<64xf32> to vector<1x64xf32>
    %357 = vector.broadcast %356 : vector<1x64xf32> to vector<16x64xf32>
    %358 = arith.addf %355, %357 : vector<16x64xf32>
    %c1_149 = arith.constant 1 : index
    %c0_150 = arith.constant 0 : index
    %c0_151 = arith.constant 0 : index
    %359 = vector.load %arg13[%c1_149, %c0_150, %c0_151] : memref<2x64x256xf32, #tpu.memory_space<vmem>>, vector<1x64x256xf32>
    %360 = vector.shape_cast %359 : vector<1x64x256xf32> to vector<64x256xf32>
    %cst_152 = arith.constant dense<0.000000e+00> : vector<16x256xf32>
    %361 = tpu.matmul %358, %360, %cst_152 {dimension_numbers = #tpu.dot_dimension_numbers<[1], [0], [0], [1], [0, 0, 1, 1], [], []>} : vector<16x64xf32>, vector<64x256xf32>, vector<16x256xf32> -> vector<16x256xf32>
    %c1_153 = arith.constant 1 : index
    %c0_154 = arith.constant 0 : index
    %c0_155 = arith.constant 0 : index
    %362 = vector.load %arg14[%c1_153, %c0_154, %c0_155] : memref<2x1x256xf32, #tpu.memory_space<vmem>>, vector<1x1x256xf32>
    %363 = vector.shape_cast %362 : vector<1x1x256xf32> to vector<1x256xf32>
    %364 = vector.broadcast %363 : vector<1x256xf32> to vector<16x256xf32>
    %365 = arith.addf %361, %364 : vector<16x256xf32>
    %cst_156 = arith.constant 0.000000e+00 : f32
    %366 = vector.broadcast %cst_156 : f32 to vector<16x256xf32>
    %367 = arith.maximumf %365, %366 : vector<16x256xf32>
    %c1_157 = arith.constant 1 : index
    %c0_158 = arith.constant 0 : index
    %c0_159 = arith.constant 0 : index
    %368 = vector.load %arg15[%c1_157, %c0_158, %c0_159] : memref<2x256x64xf32, #tpu.memory_space<vmem>>, vector<1x256x64xf32>
    %369 = vector.shape_cast %368 : vector<1x256x64xf32> to vector<256x64xf32>
    %cst_160 = arith.constant dense<0.000000e+00> : vector<16x64xf32>
    %370 = tpu.matmul %367, %369, %cst_160 {dimension_numbers = #tpu.dot_dimension_numbers<[1], [0], [0], [1], [0, 0, 1, 1], [], []>} : vector<16x256xf32>, vector<256x64xf32>, vector<16x64xf32> -> vector<16x64xf32>
    %371 = arith.addf %328, %370 : vector<16x64xf32>
    %c1_161 = arith.constant 1 : index
    %c0_162 = arith.constant 0 : index
    %c0_163 = arith.constant 0 : index
    %372 = vector.load %arg16[%c1_161, %c0_162, %c0_163] : memref<2x1x64xf32, #tpu.memory_space<vmem>>, vector<1x1x64xf32>
    %373 = vector.shape_cast %372 : vector<1x1x64xf32> to vector<1x64xf32>
    %374 = vector.broadcast %373 : vector<1x64xf32> to vector<16x64xf32>
    %375 = arith.addf %371, %374 : vector<16x64xf32>
    %376 = vector.shape_cast %375 : vector<16x64xf32> to vector<2x8x64xf32>
    %cst_164 = arith.constant dense<0.000000e+00> : vector<2x64xf32>
    %377 = vector.multi_reduction <add>, %376, %cst_164 [1] : vector<2x8x64xf32> to vector<2x64xf32>
    %cst_165 = arith.constant 8.000000e+00 : f32
    %378 = vector.broadcast %cst_165 : f32 to vector<2x64xf32>
    %379 = arith.divf %377, %378 : vector<2x64xf32>
    %c0_166 = arith.constant 0 : index
    %c0_167 = arith.constant 0 : index
    %380 = vector.load %arg17[%c0_166, %c0_167] : memref<2x64xf32, #tpu.memory_space<vmem>>, vector<2x64xf32>
    %381 = vector.extract_strided_slice %380 {offsets = [0, 0], sizes = [1, 64], strides = [1, 1]} : vector<2x64xf32> to vector<1x64xf32>
    %382 = vector.shape_cast %381 : vector<1x64xf32> to vector<64xf32>
    %383 = vector.extract_strided_slice %380 {offsets = [1, 0], sizes = [1, 64], strides = [1, 1]} : vector<2x64xf32> to vector<1x64xf32>
    %384 = vector.shape_cast %383 : vector<1x64xf32> to vector<64xf32>
    %cst_168 = arith.constant dense<0.000000e+00> : vector<2xf32>
    %385 = vector.multi_reduction <add>, %379, %cst_168 [1] : vector<2x64xf32> to vector<2xf32>
    %386 = vector.shape_cast %385 : vector<2xf32> to vector<2x1xf32>
    %cst_169 = arith.constant 6.400000e+01 : f32
    %387 = vector.broadcast %cst_169 : f32 to vector<2x1xf32>
    %388 = arith.divf %386, %387 : vector<2x1xf32>
    %389 = vector.broadcast %388 : vector<2x1xf32> to vector<2x64xf32>
    %390 = arith.subf %379, %389 : vector<2x64xf32>
    %391 = arith.mulf %390, %390 : vector<2x64xf32>
    %cst_170 = arith.constant dense<0.000000e+00> : vector<2xf32>
    %392 = vector.multi_reduction <add>, %391, %cst_170 [1] : vector<2x64xf32> to vector<2xf32>
    %393 = vector.shape_cast %392 : vector<2xf32> to vector<2x1xf32>
    %cst_171 = arith.constant 6.400000e+01 : f32
    %394 = vector.broadcast %cst_171 : f32 to vector<2x1xf32>
    %395 = arith.divf %393, %394 : vector<2x1xf32>
    %396 = vector.broadcast %388 : vector<2x1xf32> to vector<2x64xf32>
    %397 = arith.subf %379, %396 : vector<2x64xf32>
    %cst_172 = arith.constant 9.99999974E-6 : f32
    %398 = vector.broadcast %cst_172 : f32 to vector<2x1xf32>
    %399 = arith.addf %395, %398 : vector<2x1xf32>
    %400 = math.rsqrt %399 : vector<2x1xf32>
    %401 = vector.broadcast %400 : vector<2x1xf32> to vector<2x64xf32>
    %402 = arith.mulf %397, %401 : vector<2x64xf32>
    %403 = vector.shape_cast %382 : vector<64xf32> to vector<1x64xf32>
    %404 = vector.broadcast %403 : vector<1x64xf32> to vector<2x64xf32>
    %405 = arith.mulf %402, %404 : vector<2x64xf32>
    %406 = vector.shape_cast %384 : vector<64xf32> to vector<1x64xf32>
    %407 = vector.broadcast %406 : vector<1x64xf32> to vector<2x64xf32>
    %408 = arith.addf %405, %407 : vector<2x64xf32>
    %c0_173 = arith.constant 0 : index
    %c0_174 = arith.constant 0 : index
    %409 = vector.load %arg18[%c0_173, %c0_174] : memref<64x128xf32, #tpu.memory_space<vmem>>, vector<64x128xf32>
    %cst_175 = arith.constant dense<0.000000e+00> : vector<2x128xf32>
    %410 = tpu.matmul %408, %409, %cst_175 {dimension_numbers = #tpu.dot_dimension_numbers<[1], [0], [0], [1], [0, 0, 1, 1], [], []>} : vector<2x64xf32>, vector<64x128xf32>, vector<2x128xf32> -> vector<2x128xf32>
    %c0_176 = arith.constant 0 : index
    %c0_177 = arith.constant 0 : index
    %411 = vector.load %arg19[%c0_176, %c0_177] : memref<1x128xf32, #tpu.memory_space<vmem>>, vector<1x128xf32>
    %412 = vector.broadcast %411 : vector<1x128xf32> to vector<2x128xf32>
    %413 = arith.addf %410, %412 : vector<2x128xf32>
    %c0_178 = arith.constant 0 : index
    %c0_179 = arith.constant 0 : index
    %414 = vector.load %arg20[%c0_178, %c0_179] : memref<2x128xf32, #tpu.memory_space<vmem>>, vector<2x128xf32>
    tpu.vector_store %arg20[%c0_178, %c0_179], %413 {strides = array<i32>} : memref<2x128xf32, #tpu.memory_space<vmem>>, vector<2x128xf32>,
    return
  }
}

</mosaic_0001>

<llo_original>
// kernel: alphago_zero_forward.1
$region0: #{alphago_zero_forward.1}
  #allocation0 [shape = 'u32[]', space=smem, size = 0x4, offset = 0x4, fixed_abs, tag = 'smem constant byte address 0x4 - core index']
  #allocation1 [shape = 'u32[144,128]{1,0:T(1,128)}', space=vmem, size = 0x12000, scoped, tag = 'internal scratch']
  %s0 = inlined_call_operand.vmem [shape: s32[16,1], index: 0, kind: input, shape index: {}]
  %s1 = inlined_call_operand.vmem [shape: f32[10,64], index: 1, kind: input, shape index: {}]
  %s2 = inlined_call_operand.vmem [shape: f32[8,64], index: 2, kind: input, shape index: {}]
  %s3 = inlined_call_operand.vmem [shape: f32[2,2,64], index: 3, kind: input, shape index: {}]
  %s4 = inlined_call_operand.vmem [shape: f32[2,2,64,32], index: 4, kind: input, shape index: {}]
  %s5 = inlined_call_operand.vmem [shape: f32[2,2,1,32], index: 5, kind: input, shape index: {}]
  %s6 = inlined_call_operand.vmem [shape: f32[2,2,64,32], index: 6, kind: input, shape index: {}]
  %s7 = inlined_call_operand.vmem [shape: f32[2,2,1,32], index: 7, kind: input, shape index: {}]
  %s8 = inlined_call_operand.vmem [shape: f32[2,2,64,32], index: 8, kind: input, shape index: {}]
  %s9 = inlined_call_operand.vmem [shape: f32[2,2,1,32], index: 9, kind: input, shape index: {}]
  %s10 = inlined_call_operand.vmem [shape: f32[2,2,32,64], index: 10, kind: input, shape index: {}]
  %s11 = inlined_call_operand.vmem [shape: f32[2,1,64], index: 11, kind: input, shape index: {}]
  %s12 = inlined_call_operand.vmem [shape: f32[2,2,64], index: 12, kind: input, shape index: {}]
  %s13 = inlined_call_operand.vmem [shape: f32[2,64,256], index: 13, kind: input, shape index: {}]
  %s14 = inlined_call_operand.vmem [shape: f32[2,1,256], index: 14, kind: input, shape index: {}]
  %s15 = inlined_call_operand.vmem [shape: f32[2,256,64], index: 15, kind: input, shape index: {}]
  %s16 = inlined_call_operand.vmem [shape: f32[2,1,64], index: 16, kind: input, shape index: {}]
  %s17 = inlined_call_operand.vmem [shape: f32[2,64], index: 17, kind: input, shape index: {}]
  %s18 = inlined_call_operand.vmem [shape: f32[64,128], index: 18, kind: input, shape index: {}]
  %s19 = inlined_call_operand.vmem [shape: f32[1,128], index: 19, kind: input, shape index: {}]
  %s20 = inlined_call_operand.vmem [shape: f32[2,128], index: 20, kind: output, shape index: {}]
  %s21 = sld [smem:[#allocation0]]
  $region90: #{alphago_zero_forward.1} parent=0
    _
  %s23 = ssub.s32 1, %s21
  %s24 = scalar_select 0, %s23, %s21
  // Predicated region
  $region2: #{alphago_zero_forward.1} parent=0 // pred_check
    _
  $region3: #{alphago_zero_forward.1} parent=0 // pred_check_branch
    %26 = sbr.rel (0) target = $region5
  $region4: #{alphago_zero_forward.1} parent=0 // pred_region
    _
  $region5: #{alphago_zero_forward.1} parent=0 // pred_fallthru
    _
  // Predicated region
  $region6: #{alphago_zero_forward.1} parent=0 // pred_check
    _
  $region7: #{alphago_zero_forward.1} parent=0 // pred_check_branch
    %28 = sbr.rel (0) target = $region9
  $region8: #{alphago_zero_forward.1} parent=0 // pred_region
    _
  $region9: #{alphago_zero_forward.1} parent=0 // pred_fallthru
    _
  // Predicated region
  $region10: #{alphago_zero_forward.1} parent=0 // pred_check
    _
  $region11: #{alphago_zero_forward.1} parent=0 // pred_check_branch
    %30 = sbr.rel (0) target = $region13
  $region12: #{alphago_zero_forward.1} parent=0 // pred_region
    _
  $region13: #{alphago_zero_forward.1} parent=0 // pred_fallthru
    _
  // Predicated region
  $region14: #{alphago_zero_forward.1} parent=0 // pred_check
    _
  $region15: #{alphago_zero_forward.1} parent=0 // pred_check_branch
    %32 = sbr.rel (0) target = $region17
  $region16: #{alphago_zero_forward.1} parent=0 // pred_region
    _
  $region17: #{alphago_zero_forward.1} parent=0 // pred_fallthru
    _
  // Predicated region
  $region18: #{alphago_zero_forward.1} parent=0 // pred_check
    _
  $region19: #{alphago_zero_forward.1} parent=0 // pred_check_branch
    %34 = sbr.rel (0) target = $region21
  $region20: #{alphago_zero_forward.1} parent=0 // pred_region
    _
  $region21: #{alphago_zero_forward.1} parent=0 // pred_fallthru
    _
  // Predicated region
  $region22: #{alphago_zero_forward.1} parent=0 // pred_check
    _
  $region23: #{alphago_zero_forward.1} parent=0 // pred_check_branch
    %36 = sbr.rel (0) target = $region25
  $region24: #{alphago_zero_forward.1} parent=0 // pred_region
    _
  $region25: #{alphago_zero_forward.1} parent=0 // pred_fallthru
    _
  // Predicated region
  $region26: #{alphago_zero_forward.1} parent=0 // pred_check
    _
  $region27: #{alphago_zero_forward.1} parent=0 // pred_check_branch
    %38 = sbr.rel (0) target = $region29
  $region28: #{alphago_zero_forward.1} parent=0 // pred_region
    _
  $region29: #{alphago_zero_forward.1} parent=0 // pred_fallthru
    _
  // Predicated region
  $region30: #{alphago_zero_forward.1} parent=0 // pred_check
    _
  $region31: #{alphago_zero_forward.1} parent=0 // pred_check_branch
    %40 = sbr.rel (0) target = $region33
  $region32: #{alphago_zero_forward.1} parent=0 // pred_region
    _
  $region33: #{alphago_zero_forward.1} parent=0 // pred_fallthru
    _
  // Predicated region
  $region34: #{alphago_zero_forward.1} parent=0 // pred_check
    _
  $region35: #{alphago_zero_forward.1} parent=0 // pred_check_branch
    %42 = sbr.rel (0) target = $region37
  $region36: #{alphago_zero_forward.1} parent=0 // pred_region
    _
  $region37: #{alphago_zero_forward.1} parent=0 // pred_fallthru
    _
  // Predicated region
  $region38: #{alphago_zero_forward.1} parent=0 // pred_check
    _
  $region39: #{alphago_zero_forward.1} parent=0 // pred_check_branch
    %44 = sbr.rel (0) target = $region41
  $region40: #{alphago_zero_forward.1} parent=0 // pred_region
    _
  $region41: #{alphago_zero_forward.1} parent=0 // pred_fallthru
    _
  // Predicated region
  $region42: #{alphago_zero_forward.1} parent=0 // pred_check
    _
  $region43: #{alphago_zero_forward.1} parent=0 // pred_check_branch
    %46 = sbr.rel (0) target = $region45
  $region44: #{alphago_zero_forward.1} parent=0 // pred_region
    _
  $region45: #{alphago_zero_forward.1} parent=0 // pred_fallthru
    _
  // Predicated region
  $region46: #{alphago_zero_forward.1} parent=0 // pred_check
    _
  $region47: #{alphago_zero_forward.1} parent=0 // pred_check_branch
    %48 = sbr.rel (0) target = $region49
  $region48: #{alphago_zero_forward.1} parent=0 // pred_region
    _
  $region49: #{alphago_zero_forward.1} parent=0 // pred_fallthru
    _
  // Predicated region
  $region50: #{alphago_zero_forward.1} parent=0 // pred_check
    _
  $region51: #{alphago_zero_forward.1} parent=0 // pred_check_branch
    %50 = sbr.rel (0) target = $region53
  $region52: #{alphago_zero_forward.1} parent=0 // pred_region
    _
  $region53: #{alphago_zero_forward.1} parent=0 // pred_fallthru
    _
  // Predicated region
  $region54: #{alphago_zero_forward.1} parent=0 // pred_check
    _
  $region55: #{alphago_zero_forward.1} parent=0 // pred_check_branch
    %52 = sbr.rel (0) target = $region57
  $region56: #{alphago_zero_forward.1} parent=0 // pred_region
    _
  $region57: #{alphago_zero_forward.1} parent=0 // pred_fallthru
    _
  // Predicated region
  $region58: #{alphago_zero_forward.1} parent=0 // pred_check
    _
  $region59: #{alphago_zero_forward.1} parent=0 // pred_check_branch
    %54 = sbr.rel (0) target = $region61
  $region60: #{alphago_zero_forward.1} parent=0 // pred_region
    _
  $region61: #{alphago_zero_forward.1} parent=0 // pred_fallthru
    _
  // Predicated region
  $region62: #{alphago_zero_forward.1} parent=0 // pred_check
    _
  $region63: #{alphago_zero_forward.1} parent=0 // pred_check_branch
    %56 = sbr.rel (0) target = $region65
  $region64: #{alphago_zero_forward.1} parent=0 // pred_region
    _
  $region65: #{alphago_zero_forward.1} parent=0 // pred_fallthru
    _
  // Predicated region
  $region66: #{alphago_zero_forward.1} parent=0 // pred_check
    _
  $region67: #{alphago_zero_forward.1} parent=0 // pred_check_branch
    %58 = sbr.rel (0) target = $region69
  $region68: #{alphago_zero_forward.1} parent=0 // pred_region
    _
  $region69: #{alphago_zero_forward.1} parent=0 // pred_fallthru
    _
  // Predicated region
  $region70: #{alphago_zero_forward.1} parent=0 // pred_check
    _
  $region71: #{alphago_zero_forward.1} parent=0 // pred_check_branch
    %60 = sbr.rel (0) target = $region73
  $region72: #{alphago_zero_forward.1} parent=0 // pred_region
    _
  $region73: #{alphago_zero_forward.1} parent=0 // pred_fallthru
    _
  // Predicated region
  $region74: #{alphago_zero_forward.1} parent=0 // pred_check
    _
  $region75: #{alphago_zero_forward.1} parent=0 // pred_check_branch
    %62 = sbr.rel (0) target = $region77
  $region76: #{alphago_zero_forward.1} parent=0 // pred_region
    _
  $region77: #{alphago_zero_forward.1} parent=0 // pred_fallthru
    _
  // Predicated region
  $region78: #{alphago_zero_forward.1} parent=0 // pred_check
    _
  $region79: #{alphago_zero_forward.1} parent=0 // pred_check_branch
    %64 = sbr.rel (0) target = $region81
  $region80: #{alphago_zero_forward.1} parent=0 // pred_region
    _
  $region81: #{alphago_zero_forward.1} parent=0 // pred_fallthru
    _
  %v65 = vld [vmem:[%s0] sm:$0xff]
  %v66 = vld [vmem:[%s0 + $0x8] sm:$0xff]
  %v67 = vlaneseq
  %v68 = vand.u32 %v67, 127
  %69 = vset.pattern.permute.xlu0 0
  %70 = vperm.xlu0 %69, %v65
  %v71 = vpop.permute.xlu0 %70
  %72 = vset.pattern.permute.xlu0 0
  %73 = vperm.xlu0 %72, %v66
  %v74 = vpop.permute.xlu0 %73
  %vm75 = vcmp.eq.s32.totalorder %v71, %v68
  %vm76 = vcmp.eq.s32.totalorder %v74, %v68
  %v77 = vsel %vm75, 1, 0
  %v78 = vsel %vm76, 1, 0
  %v79 = vcvt.s32.f32 %v77
  %v80 = vcvt.s32.f32 %v78
  %v81 = vld [vmem:[%s1] sm:$0xff]
  %v82 = vld [vmem:[%s1 + $0x8] sm:$0x3]
  %vm83 = vcmask 80896
  %v85 = vsel %vm83, %v79, 0
  %v88 = vsel %vm83, %v80, 0
  %vm90 = vcmask 1041408
  %v92 = vsel %vm90, %v82, 0
  %94 = vmatprep.subr.mxu0 0.0
  %95 = vmatpush1.msra.mxu0 %v81
  %96 = vmatprep.subr.mxu0 0.0
  %97 = vmatpush1.msra.mxu0 %v92
  %98 = vmatprep.subr.mxu0 0.0
  %99 = vmatpush1.msra.mxu0 0.0
  %100 = vmatprep.subr.mxu0 0.0
  %101 = vmatpush1.msra.mxu0 0.0
  %102 = vmatprep.subr.mxu0 0.0
  %103 = vmatpush1.msra.mxu0 0.0
  %104 = vmatprep.subr.mxu0 0.0
  %105 = vmatpush1.msra.mxu0 0.0
  %106 = vmatprep.subr.mxu0 0.0
  %107 = vmatpush1.msra.mxu0 0.0
  %108 = vmatprep.subr.mxu0 0.0
  %109 = vmatpush1.msra.mxu0 0.0
  %110 = vmatprep.subr.mxu0 0.0
  %111 = vmatpush1.msra.mxu0 0.0
  %112 = vmatprep.subr.mxu0 0.0
  %113 = vmatpush1.msra.mxu0 0.0
  %114 = vmatprep.subr.mxu0 0.0
  %115 = vmatpush1.msra.mxu0 0.0
  %116 = vmatprep.subr.mxu0 0.0
  %117 = vmatpush1.msra.mxu0 0.0
  %118 = vmatprep.subr.mxu0 0.0
  %119 = vmatpush1.msra.mxu0 0.0
  %120 = vmatprep.subr.mxu0 0.0
  %121 = vmatpush1.msra.mxu0 0.0
  %122 = vmatprep.subr.mxu0 0.0
  %123 = vmatpush1.msra.mxu0 0.0
  %124 = vmatprep.subr.mxu0 0.0
  %125 = vmatpush1.msra.mxu0 0.0
  %126 = vmatprep.subr.mxu0 0.0
  %127 = vmatpush1.msra.mxu0 0.0
  %128 = vmatprep.subr.mxu0 0.0
  %129 = vmatpush1.msra.mxu0 0.0
  %130 = vmatprep.subr.mxu0 0.0
  %131 = vmatpush1.msra.mxu0 0.0
  %132 = vmatprep.subr.mxu0 0.0
  %133 = vmatpush1.msra.mxu0 0.0
  %134 = vmatprep.subr.mxu0 0.0
  %135 = vmatpush1.msra.mxu0 0.0
  %136 = vmatprep.subr.mxu0 0.0
  %137 = vmatpush1.msra.mxu0 0.0
  %138 = vmatprep.subr.mxu0 0.0
  %139 = vmatpush1.msra.mxu0 0.0
  %140 = vmatprep.subr.mxu0 0.0
  %141 = vmatpush1.msra.mxu0 0.0
  %142 = vmatprep.subr.mxu0 0.0
  %143 = vmatpush1.msra.mxu0 0.0
  %144 = vmatprep.subr.mxu0 0.0
  %145 = vmatpush1.msra.mxu0 0.0
  %146 = vmatprep.subr.mxu0 0.0
  %147 = vmatpush1.msra.mxu0 0.0
  %148 = vmatprep.subr.mxu0 0.0
  %149 = vmatpush1.msra.mxu0 0.0
  %150 = vmatprep.subr.mxu0 0.0
  %151 = vmatpush1.msra.mxu0 0.0
  %152 = vmatprep.subr.mxu0 0.0
  %153 = vmatpush1.msra.mxu0 0.0
  %154 = vmatprep.subr.mxu0 0.0
  %155 = vmatpush1.msra.mxu0 0.0
  %156 = vmatprep.subr.mxu0 0.0
  %157 = vmatpush1.msra.mxu0 0.0
  %158 = vmatprep.mubr.f32.mxu0 0.0
  %159 = vmatmul.mubr.f32.gmra.mrb[0].mxu0 %v85
  %v160 = vpop.f32.mrb[0].mxu0
  %v161 = vadd.f32 0.0, %v160
  %v162 = vpop.f32.mrb[0].mxu0
  %163 = vmatprep.mubr.f32.mxu0 0.0
  %164 = vmatmul.mubr.f32.gmra.mrb[0].mxu0 %v88
  %v165 = vpop.f32.mrb[0].mxu0
  %v166 = vadd.f32 0.0, %v165
  %v167 = vpop.f32.mrb[0].mxu0
  %168 = vdwg.mxu0
  %v169 = vld [vmem:[%s2] sm:$0xff]
  %v170 = vadd.f32 %v161, %v169
  %v171 = vadd.f32 %v166, %v169
  %v172 = vld [vmem:[%s3] sm:$0x3]
  %vm173 = vcmask 523264
  %v174 = vsel %vm173, %v170, 0.0
  %175 = vadd.xlane.f32.xlu0 %v174
  %v176 = vpop.xlane.xlu0 %175
  %v177 = vsel %vm173, %v171, 0.0
  %178 = vadd.xlane.f32.xlu0 %v177
  %v179 = vpop.xlane.xlu0 %178
  %v180 = vrcp.pop 64.0
  %v181 = vmul.f32 %v176, %v180
  %v182 = vmul.f32 %v179, %v180
  %v183 = vsub.f32 %v170, %v181
  %v184 = vsub.f32 %v171, %v182
  %v185 = vmul.f32 %v183, %v183
  %v186 = vmul.f32 %v184, %v184
  %v187 = vsel %vm173, %v185, 0.0
  %188 = vadd.xlane.f32.xlu0 %v187
  %v189 = vpop.xlane.xlu0 %188
  %v190 = vsel %vm173, %v186, 0.0
  %191 = vadd.xlane.f32.xlu0 %v190
  %v192 = vpop.xlane.xlu0 %191
  %v193 = vmul.f32 %v189, %v180
  %v194 = vmul.f32 %v192, %v180
  %v195 = vadd.f32 %v193, 1e-05
  %v196 = vadd.f32 %v194, 1e-05
  %v197 = vrsqrt.pop %v195
  %v198 = vrsqrt.pop %v196
  %v199 = vmul.f32 %v183, %v197
  %v200 = vmul.f32 %v184, %v198
  %v201 = vlaneseq
  %v202 = vshrl.u32 %v201, 7
  %v203 = vsub.s32 0, %v202
  %v204 = vrot.slane %v172, %v203
  %v205 = vmul.f32 %v199, %v204
  %v206 = vmul.f32 %v200, %v204
  %v207 = vlaneseq
  %v208 = vshrl.u32 %v207, 7
  %v209 = vsub.s32 1, %v208
  %v210 = vrot.slane %v172, %v209
  %v211 = vadd.f32 %v205, %v210
  %v212 = vadd.f32 %v206, %v210
  %v213 = vld [vmem:[%s4] sm:$0xff]
  %v214 = vld [vmem:[%s4 + $0x8] sm:$0xff]
  %v215 = vld [vmem:[%s4 + $0x10] sm:$0xff]
  %v216 = vld [vmem:[%s4 + $0x18] sm:$0xff]
  %v217 = vld [vmem:[%s4 + $0x20] sm:$0xff]
  %v218 = vld [vmem:[%s4 + $0x28] sm:$0xff]
  %v219 = vld [vmem:[%s4 + $0x30] sm:$0xff]
  %v220 = vld [vmem:[%s4 + $0x38] sm:$0xff]
  %v221 = vld [vmem:[%s4 + $0x40] sm:$0xff]
  %v222 = vld [vmem:[%s4 + $0x48] sm:$0xff]
  %v223 = vld [vmem:[%s4 + $0x50] sm:$0xff]
  %v224 = vld [vmem:[%s4 + $0x58] sm:$0xff]
  %v225 = vld [vmem:[%s4 + $0x60] sm:$0xff]
  %v226 = vld [vmem:[%s4 + $0x68] sm:$0xff]
  %v227 = vld [vmem:[%s4 + $0x70] sm:$0xff]
  %v228 = vld [vmem:[%s4 + $0x78] sm:$0xff]
  %v229 = vld [vmem:[%s5] sm:$0x1]
  %v230 = vld [vmem:[%s5 + $0x1] sm:$0x1]
  %v231 = vld [vmem:[%s6] sm:$0xff]
  %v232 = vld [vmem:[%s6 + $0x8] sm:$0xff]
  %v233 = vld [vmem:[%s6 + $0x10] sm:$0xff]
  %v234 = vld [vmem:[%s6 + $0x18] sm:$0xff]
  %v235 = vld [vmem:[%s6 + $0x20] sm:$0xff]
  %v236 = vld [vmem:[%s6 + $0x28] sm:$0xff]
  %v237 = vld [vmem:[%s6 + $0x30] sm:$0xff]
  %v238 = vld [vmem:[%s6 + $0x38] sm:$0xff]
  %v239 = vld [vmem:[%s6 + $0x40] sm:$0xff]
  %v240 = vld [vmem:[%s6 + $0x48] sm:$0xff]
  %v241 = vld [vmem:[%s6 + $0x50] sm:$0xff]
  %v242 = vld [vmem:[%s6 + $0x58] sm:$0xff]
  %v243 = vld [vmem:[%s6 + $0x60] sm:$0xff]
  %v244 = vld [vmem:[%s6 + $0x68] sm:$0xff]
  %v245 = vld [vmem:[%s6 + $0x70] sm:$0xff]
  %v246 = vld [vmem:[%s6 + $0x78] sm:$0xff]
  %v247 = vld [vmem:[%s7] sm:$0x1]
  %v248 = vld [vmem:[%s7 + $0x1] sm:$0x1]
  %v249 = vld [vmem:[%s8] sm:$0xff]
  %v250 = vld [vmem:[%s8 + $0x8] sm:$0xff]
  %v251 = vld [vmem:[%s8 + $0x10] sm:$0xff]
  %v252 = vld [vmem:[%s8 + $0x18] sm:$0xff]
  %v253 = vld [vmem:[%s8 + $0x20] sm:$0xff]
  %v254 = vld [vmem:[%s8 + $0x28] sm:$0xff]
  %v255 = vld [vmem:[%s8 + $0x30] sm:$0xff]
  %v256 = vld [vmem:[%s8 + $0x38] sm:$0xff]
  %v257 = vld [vmem:[%s8 + $0x40] sm:$0xff]
  %v258 = vld [vmem:[%s8 + $0x48] sm:$0xff]
  %v259 = vld [vmem:[%s8 + $0x50] sm:$0xff]
  %v260 = vld [vmem:[%s8 + $0x58] sm:$0xff]
  %v261 = vld [vmem:[%s8 + $0x60] sm:$0xff]
  %v262 = vld [vmem:[%s8 + $0x68] sm:$0xff]
  %v263 = vld [vmem:[%s8 + $0x70] sm:$0xff]
  %v264 = vld [vmem:[%s8 + $0x78] sm:$0xff]
  %v265 = vld [vmem:[%s9] sm:$0x1]
  %v266 = vld [vmem:[%s9 + $0x1] sm:$0x1]
  %v267 = vld [vmem:[%s10] sm:$0xff]
  %v268 = vld [vmem:[%s10 + $0x8] sm:$0xff]
  %v269 = vld [vmem:[%s10 + $0x10] sm:$0xff]
  %v270 = vld [vmem:[%s10 + $0x18] sm:$0xff]
  %v271 = vld [vmem:[%s10 + $0x20] sm:$0xff]
  %v272 = vld [vmem:[%s10 + $0x28] sm:$0xff]
  %v273 = vld [vmem:[%s10 + $0x30] sm:$0xff]
  %v274 = vld [vmem:[%s10 + $0x38] sm:$0xff]
  %v276 = vlaneseq
  %v277 = vshrl.u32 %v276, 7
  %v278 = vsub.s32 0, %v277
  %v279 = vrot.slane %v229, %v278
  %v282 = vsel %vm173, %v211, 0
  %v285 = vsel %vm173, %v212, 0
  %287 = vmatprep.subr.mxu0 0.0
  %288 = vmatpush1.msra.mxu0 %v213
  %289 = vmatprep.subr.mxu0 0.0
  %290 = vmatpush1.msra.mxu0 %v214
  %291 = vmatprep.subr.mxu0 0.0
  %292 = vmatpush1.msra.mxu0 %v215
  %293 = vmatprep.subr.mxu0 0.0
  %294 = vmatpush1.msra.mxu0 %v216
  %295 = vmatprep.subr.mxu0 0.0
  %296 = vmatpush1.msra.mxu0 %v217
  %297 = vmatprep.subr.mxu0 0.0
  %298 = vmatpush1.msra.mxu0 %v218
  %299 = vmatprep.subr.mxu0 0.0
  %300 = vmatpush1.msra.mxu0 %v219
  %301 = vmatprep.subr.mxu0 0.0
  %302 = vmatpush1.msra.mxu0 %v220
  %303 = vmatprep.subr.mxu0 0.0
  %304 = vmatpush1.msra.mxu0 0.0
  %305 = vmatprep.subr.mxu0 0.0
  %306 = vmatpush1.msra.mxu0 0.0
  %307 = vmatprep.subr.mxu0 0.0
  %308 = vmatpush1.msra.mxu0 0.0
  %309 = vmatprep.subr.mxu0 0.0
  %310 = vmatpush1.msra.mxu0 0.0
  %311 = vmatprep.subr.mxu0 0.0
  %312 = vmatpush1.msra.mxu0 0.0
  %313 = vmatprep.subr.mxu0 0.0
  %314 = vmatpush1.msra.mxu0 0.0
  %315 = vmatprep.subr.mxu0 0.0
  %316 = vmatpush1.msra.mxu0 0.0
  %317 = vmatprep.subr.mxu0 0.0
  %318 = vmatpush1.msra.mxu0 0.0
  %319 = vmatprep.subr.mxu0 0.0
  %320 = vmatpush1.msra.mxu0 0.0
  %321 = vmatprep.subr.mxu0 0.0
  %322 = vmatpush1.msra.mxu0 0.0
  %323 = vmatprep.subr.mxu0 0.0
  %324 = vmatpush1.msra.mxu0 0.0
  %325 = vmatprep.subr.mxu0 0.0
  %326 = vmatpush1.msra.mxu0 0.0
  %327 = vmatprep.subr.mxu0 0.0
  %328 = vmatpush1.msra.mxu0 0.0
  %329 = vmatprep.subr.mxu0 0.0
  %330 = vmatpush1.msra.mxu0 0.0
  %331 = vmatprep.subr.mxu0 0.0
  %332 = vmatpush1.msra.mxu0 0.0
  %333 = vmatprep.subr.mxu0 0.0
  %334 = vmatpush1.msra.mxu0 0.0
  %335 = vmatprep.subr.mxu0 0.0
  %336 = vmatpush1.msra.mxu0 0.0
  %337 = vmatprep.subr.mxu0 0.0
  %338 = vmatpush1.msra.mxu0 0.0
  %339 = vmatprep.subr.mxu0 0.0
  %340 = vmatpush1.msra.mxu0 0.0
  %341 = vmatprep.subr.mxu0 0.0
  %342 = vmatpush1.msra.mxu0 0.0
  %343 = vmatprep.subr.mxu0 0.0
  %344 = vmatpush1.msra.mxu0 0.0
  %345 = vmatprep.subr.mxu0 0.0
  %346 = vmatpush1.msra.mxu0 0.0
  %347 = vmatprep.subr.mxu0 0.0
  %348 = vmatpush1.msra.mxu0 0.0
  %349 = vmatprep.subr.mxu0 0.0
  %350 = vmatpush1.msra.mxu0 0.0
  %351 = vmatprep.mubr.f32.mxu0 0.0
  %352 = vmatmul.mubr.f32.gmra.mrb[0].mxu0 %v282
  %v353 = vpop.f32.mrb[0].mxu0
  %v354 = vadd.f32 %v279, %v353
  %v355 = vpop.f32.mrb[0].mxu0
  %356 = vmatprep.mubr.f32.mxu0 0.0
  %357 = vmatmul.mubr.f32.gmra.mrb[0].mxu0 %v285
  %v358 = vpop.f32.mrb[0].mxu0
  %v359 = vadd.f32 %v279, %v358
  %v360 = vpop.f32.mrb[0].mxu0
  %361 = vdwg.mxu0
  %v363 = vlaneseq
  %v364 = vshrl.u32 %v363, 7
  %v365 = vsub.s32 0, %v364
  %v366 = vrot.slane %v247, %v365
  %368 = vmatprep.subr.mxu0 0.0
  %369 = vmatpush1.msra.mxu0 %v231
  %370 = vmatprep.subr.mxu0 0.0
  %371 = vmatpush1.msra.mxu0 %v232
  %372 = vmatprep.subr.mxu0 0.0
  %373 = vmatpush1.msra.mxu0 %v233
  %374 = vmatprep.subr.mxu0 0.0
  %375 = vmatpush1.msra.mxu0 %v234
  %376 = vmatprep.subr.mxu0 0.0
  %377 = vmatpush1.msra.mxu0 %v235
  %378 = vmatprep.subr.mxu0 0.0
  %379 = vmatpush1.msra.mxu0 %v236
  %380 = vmatprep.subr.mxu0 0.0
  %381 = vmatpush1.msra.mxu0 %v237
  %382 = vmatprep.subr.mxu0 0.0
  %383 = vmatpush1.msra.mxu0 %v238
  %384 = vmatprep.subr.mxu0 0.0
  %385 = vmatpush1.msra.mxu0 0.0
  %386 = vmatprep.subr.mxu0 0.0
  %387 = vmatpush1.msra.mxu0 0.0
  %388 = vmatprep.subr.mxu0 0.0
  %389 = vmatpush1.msra.mxu0 0.0
  %390 = vmatprep.subr.mxu0 0.0
  %391 = vmatpush1.msra.mxu0 0.0
  %392 = vmatprep.subr.mxu0 0.0
  %393 = vmatpush1.msra.mxu0 0.0
  %394 = vmatprep.subr.mxu0 0.0
  %395 = vmatpush1.msra.mxu0 0.0
  %396 = vmatprep.subr.mxu0 0.0
  %397 = vmatpush1.msra.mxu0 0.0
  %398 = vmatprep.subr.mxu0 0.0
  %399 = vmatpush1.msra.mxu0 0.0
  %400 = vmatprep.subr.mxu0 0.0
  %401 = vmatpush1.msra.mxu0 0.0
  %402 = vmatprep.subr.mxu0 0.0
  %403 = vmatpush1.msra.mxu0 0.0
  %404 = vmatprep.subr.mxu0 0.0
  %405 = vmatpush1.msra.mxu0 0.0
  %406 = vmatprep.subr.mxu0 0.0
  %407 = vmatpush1.msra.mxu0 0.0
  %408 = vmatprep.subr.mxu0 0.0
  %409 = vmatpush1.msra.mxu0 0.0
  %410 = vmatprep.subr.mxu0 0.0
  %411 = vmatpush1.msra.mxu0 0.0
  %412 = vmatprep.subr.mxu0 0.0
  %413 = vmatpush1.msra.mxu0 0.0
  %414 = vmatprep.subr.mxu0 0.0
  %415 = vmatpush1.msra.mxu0 0.0
  %416 = vmatprep.subr.mxu0 0.0
  %417 = vmatpush1.msra.mxu0 0.0
  %418 = vmatprep.subr.mxu0 0.0
  %419 = vmatpush1.msra.mxu0 0.0
  %420 = vmatprep.subr.mxu0 0.0
  %421 = vmatpush1.msra.mxu0 0.0
  %422 = vmatprep.subr.mxu0 0.0
  %423 = vmatpush1.msra.mxu0 0.0
  %424 = vmatprep.subr.mxu0 0.0
  %425 = vmatpush1.msra.mxu0 0.0
  %426 = vmatprep.subr.mxu0 0.0
  %427 = vmatpush1.msra.mxu0 0.0
  %428 = vmatprep.subr.mxu0 0.0
  %429 = vmatpush1.msra.mxu0 0.0
  %430 = vmatprep.subr.mxu0 0.0
  %431 = vmatpush1.msra.mxu0 0.0
  %432 = vmatprep.mubr.f32.mxu0 0.0
  %433 = vmatmul.mubr.f32.gmra.mrb[0].mxu0 %v282
  %v434 = vpop.f32.mrb[0].mxu0
  %v435 = vadd.f32 %v366, %v434
  %v436 = vpop.f32.mrb[0].mxu0
  %437 = vmatprep.mubr.f32.mxu0 0.0
  %438 = vmatmul.mubr.f32.gmra.mrb[0].mxu0 %v285
  %v439 = vpop.f32.mrb[0].mxu0
  %v440 = vadd.f32 %v366, %v439
  %v441 = vpop.f32.mrb[0].mxu0
  %442 = vdwg.mxu0
  %v444 = vlaneseq
  %v445 = vshrl.u32 %v444, 7
  %v446 = vsub.s32 0, %v445
  %v447 = vrot.slane %v265, %v446
  %449 = vmatprep.subr.mxu0 0.0
  %450 = vmatpush1.msra.mxu0 %v249
  %451 = vmatprep.subr.mxu0 0.0
  %452 = vmatpush1.msra.mxu0 %v250
  %453 = vmatprep.subr.mxu0 0.0
  %454 = vmatpush1.msra.mxu0 %v251
  %455 = vmatprep.subr.mxu0 0.0
  %456 = vmatpush1.msra.mxu0 %v252
  %457 = vmatprep.subr.mxu0 0.0
  %458 = vmatpush1.msra.mxu0 %v253
  %459 = vmatprep.subr.mxu0 0.0
  %460 = vmatpush1.msra.mxu0 %v254
  %461 = vmatprep.subr.mxu0 0.0
  %462 = vmatpush1.msra.mxu0 %v255
  %463 = vmatprep.subr.mxu0 0.0
  %464 = vmatpush1.msra.mxu0 %v256
  %465 = vmatprep.subr.mxu0 0.0
  %466 = vmatpush1.msra.mxu0 0.0
  %467 = vmatprep.subr.mxu0 0.0
  %468 = vmatpush1.msra.mxu0 0.0
  %469 = vmatprep.subr.mxu0 0.0
  %470 = vmatpush1.msra.mxu0 0.0
  %471 = vmatprep.subr.mxu0 0.0
  %472 = vmatpush1.msra.mxu0 0.0
  %473 = vmatprep.subr.mxu0 0.0
  %474 = vmatpush1.msra.mxu0 0.0
  %475 = vmatprep.subr.mxu0 0.0
  %476 = vmatpush1.msra.mxu0 0.0
  %477 = vmatprep.subr.mxu0 0.0
  %478 = vmatpush1.msra.mxu0 0.0
  %479 = vmatprep.subr.mxu0 0.0
  %480 = vmatpush1.msra.mxu0 0.0
  %481 = vmatprep.subr.mxu0 0.0
  %482 = vmatpush1.msra.mxu0 0.0
  %483 = vmatprep.subr.mxu0 0.0
  %484 = vmatpush1.msra.mxu0 0.0
  %485 = vmatprep.subr.mxu0 0.0
  %486 = vmatpush1.msra.mxu0 0.0
  %487 = vmatprep.subr.mxu0 0.0
  %488 = vmatpush1.msra.mxu0 0.0
  %489 = vmatprep.subr.mxu0 0.0
  %490 = vmatpush1.msra.mxu0 0.0
  %491 = vmatprep.subr.mxu0 0.0
  %492 = vmatpush1.msra.mxu0 0.0
  %493 = vmatprep.subr.mxu0 0.0
  %494 = vmatpush1.msra.mxu0 0.0
  %495 = vmatprep.subr.mxu0 0.0
  %496 = vmatpush1.msra.mxu0 0.0
  %497 = vmatprep.subr.mxu0 0.0
  %498 = vmatpush1.msra.mxu0 0.0
  %499 = vmatprep.subr.mxu0 0.0
  %500 = vmatpush1.msra.mxu0 0.0
  %501 = vmatprep.subr.mxu0 0.0
  %502 = vmatpush1.msra.mxu0 0.0
  %503 = vmatprep.subr.mxu0 0.0
  %504 = vmatpush1.msra.mxu0 0.0
  %505 = vmatprep.subr.mxu0 0.0
  %506 = vmatpush1.msra.mxu0 0.0
  %507 = vmatprep.subr.mxu0 0.0
  %508 = vmatpush1.msra.mxu0 0.0
  %509 = vmatprep.subr.mxu0 0.0
  %510 = vmatpush1.msra.mxu0 0.0
  %511 = vmatprep.subr.mxu0 0.0
  %512 = vmatpush1.msra.mxu0 0.0
  %513 = vmatprep.mubr.f32.mxu0 0.0
  %514 = vmatmul.mubr.f32.gmra.mrb[0].mxu0 %v282
  %v515 = vpop.f32.mrb[0].mxu0
  %v516 = vadd.f32 %v447, %v515
  %v517 = vpop.f32.mrb[0].mxu0
  %518 = vmatprep.mubr.f32.mxu0 0.0
  %519 = vmatmul.mubr.f32.gmra.mrb[0].mxu0 %v285
  %v520 = vpop.f32.mrb[0].mxu0
  %v521 = vadd.f32 %v447, %v520
  %v522 = vpop.f32.mrb[0].mxu0
  %523 = vdwg.mxu0
  %vm524 = vcmask 261120
  %v526 = vsel %vm524, %v354, 0
  %v529 = vsel %vm524, %v435, 0
  %531 = vmatprep.subr.mxu0 0.0
  %532 = vmatpush1.xpose.msra.mxu0 %v529
  %533 = vmatprep.subr.mxu0 0.0
  %534 = vmatpush1.xpose.msra.mxu0 0.0
  %535 = vmatprep.subr.mxu0 0.0
  %536 = vmatpush1.xpose.msra.mxu0 0.0
  %537 = vmatprep.subr.mxu0 0.0
  %538 = vmatpush1.xpose.msra.mxu0 0.0
  %539 = vmatprep.subr.mxu0 0.0
  %540 = vmatpush1.xpose.msra.mxu0 0.0
  %541 = vmatprep.subr.mxu0 0.0
  %542 = vmatpush1.xpose.msra.mxu0 0.0
  %543 = vmatprep.subr.mxu0 0.0
  %544 = vmatpush1.xpose.msra.mxu0 0.0
  %545 = vmatprep.subr.mxu0 0.0
  %546 = vmatpush1.xpose.msra.mxu0 0.0
  %547 = vmatprep.subr.mxu0 0.0
  %548 = vmatpush1.xpose.msra.mxu0 0.0
  %549 = vmatprep.subr.mxu0 0.0
  %550 = vmatpush1.xpose.msra.mxu0 0.0
  %551 = vmatprep.subr.mxu0 0.0
  %552 = vmatpush1.xpose.msra.mxu0 0.0
  %553 = vmatprep.subr.mxu0 0.0
  %554 = vmatpush1.xpose.msra.mxu0 0.0
  %555 = vmatprep.subr.mxu0 0.0
  %556 = vmatpush1.xpose.msra.mxu0 0.0
  %557 = vmatprep.subr.mxu0 0.0
  %558 = vmatpush1.xpose.msra.mxu0 0.0
  %559 = vmatprep.subr.mxu0 0.0
  %560 = vmatpush1.xpose.msra.mxu0 0.0
  %561 = vmatprep.subr.mxu0 0.0
  %562 = vmatpush1.xpose.msra.mxu0 0.0
  %563 = vmatprep.subr.mxu0 0.0
  %564 = vmatpush1.xpose.msra.mxu0 0.0
  %565 = vmatprep.subr.mxu0 0.0
  %566 = vmatpush1.xpose.msra.mxu0 0.0
  %567 = vmatprep.subr.mxu0 0.0
  %568 = vmatpush1.xpose.msra.mxu0 0.0
  %569 = vmatprep.subr.mxu0 0.0
  %570 = vmatpush1.xpose.msra.mxu0 0.0
  %571 = vmatprep.subr.mxu0 0.0
  %572 = vmatpush1.xpose.msra.mxu0 0.0
  %573 = vmatprep.subr.mxu0 0.0
  %574 = vmatpush1.xpose.msra.mxu0 0.0
  %575 = vmatprep.subr.mxu0 0.0
  %576 = vmatpush1.xpose.msra.mxu0 0.0
  %577 = vmatprep.subr.mxu0 0.0
  %578 = vmatpush1.xpose.msra.mxu0 0.0
  %579 = vmatprep.subr.mxu0 0.0
  %580 = vmatpush1.xpose.msra.mxu0 0.0
  %581 = vmatprep.subr.mxu0 0.0
  %582 = vmatpush1.xpose.msra.mxu0 0.0
  %583 = vmatprep.subr.mxu0 0.0
  %584 = vmatpush1.xpose.msra.mxu0 0.0
  %585 = vmatprep.subr.mxu0 0.0
  %586 = vmatpush1.xpose.msra.mxu0 0.0
  %587 = vmatprep.subr.mxu0 0.0
  %588 = vmatpush1.xpose.msra.mxu0 0.0
  %589 = vmatprep.subr.mxu0 0.0
  %590 = vmatpush1.xpose.msra.mxu0 0.0
  %591 = vmatprep.subr.mxu0 0.0
  %592 = vmatpush1.xpose.msra.mxu0 0.0
  %593 = vmatprep.subr.mxu0 0.0
  %594 = vmatpush1.xpose.msra.mxu0 0.0
  %595 = vmatprep.mubr.f32.mxu0 0.0
  %596 = vmatmul.mubr.f32.gmra.mrb[0].mxu0 %v526
  %v597 = vpop.f32.mrb[0].mxu0
  %v598 = vadd.f32 0.0, %v597
  %v599 = vpop.f32.mrb[0].mxu0
  %600 = vdwg.mxu0
  %v602 = vsel %vm524, %v359, 0
  %v605 = vsel %vm524, %v440, 0
  %607 = vmatprep.subr.mxu0 0.0
  %608 = vmatpush1.xpose.msra.mxu0 %v605
  %609 = vmatprep.subr.mxu0 0.0
  %610 = vmatpush1.xpose.msra.mxu0 0.0
  %611 = vmatprep.subr.mxu0 0.0
  %612 = vmatpush1.xpose.msra.mxu0 0.0
  %613 = vmatprep.subr.mxu0 0.0
  %614 = vmatpush1.xpose.msra.mxu0 0.0
  %615 = vmatprep.subr.mxu0 0.0
  %616 = vmatpush1.xpose.msra.mxu0 0.0
  %617 = vmatprep.subr.mxu0 0.0
  %618 = vmatpush1.xpose.msra.mxu0 0.0
  %619 = vmatprep.subr.mxu0 0.0
  %620 = vmatpush1.xpose.msra.mxu0 0.0
  %621 = vmatprep.subr.mxu0 0.0
  %622 = vmatpush1.xpose.msra.mxu0 0.0
  %623 = vmatprep.subr.mxu0 0.0
  %624 = vmatpush1.xpose.msra.mxu0 0.0
  %625 = vmatprep.subr.mxu0 0.0
  %626 = vmatpush1.xpose.msra.mxu0 0.0
  %627 = vmatprep.subr.mxu0 0.0
  %628 = vmatpush1.xpose.msra.mxu0 0.0
  %629 = vmatprep.subr.mxu0 0.0
  %630 = vmatpush1.xpose.msra.mxu0 0.0
  %631 = vmatprep.subr.mxu0 0.0
  %632 = vmatpush1.xpose.msra.mxu0 0.0
  %633 = vmatprep.subr.mxu0 0.0
  %634 = vmatpush1.xpose.msra.mxu0 0.0
  %635 = vmatprep.subr.mxu0 0.0
  %636 = vmatpush1.xpose.msra.mxu0 0.0
  %637 = vmatprep.subr.mxu0 0.0
  %638 = vmatpush1.xpose.msra.mxu0 0.0
  %639 = vmatprep.subr.mxu0 0.0
  %640 = vmatpush1.xpose.msra.mxu0 0.0
  %641 = vmatprep.subr.mxu0 0.0
  %642 = vmatpush1.xpose.msra.mxu0 0.0
  %643 = vmatprep.subr.mxu0 0.0
  %644 = vmatpush1.xpose.msra.mxu0 0.0
  %645 = vmatprep.subr.mxu0 0.0
  %646 = vmatpush1.xpose.msra.mxu0 0.0
  %647 = vmatprep.subr.mxu0 0.0
  %648 = vmatpush1.xpose.msra.mxu0 0.0
  %649 = vmatprep.subr.mxu0 0.0
  %650 = vmatpush1.xpose.msra.mxu0 0.0
  %651 = vmatprep.subr.mxu0 0.0
  %652 = vmatpush1.xpose.msra.mxu0 0.0
  %653 = vmatprep.subr.mxu0 0.0
  %654 = vmatpush1.xpose.msra.mxu0 0.0
  %655 = vmatprep.subr.mxu0 0.0
  %656 = vmatpush1.xpose.msra.mxu0 0.0
  %657 = vmatprep.subr.mxu0 0.0
  %658 = vmatpush1.xpose.msra.mxu0 0.0
  %659 = vmatprep.subr.mxu0 0.0
  %660 = vmatpush1.xpose.msra.mxu0 0.0
  %661 = vmatprep.subr.mxu0 0.0
  %662 = vmatpush1.xpose.msra.mxu0 0.0
  %663 = vmatprep.subr.mxu0 0.0
  %664 = vmatpush1.xpose.msra.mxu0 0.0
  %665 = vmatprep.subr.mxu0 0.0
  %666 = vmatpush1.xpose.msra.mxu0 0.0
  %667 = vmatprep.subr.mxu0 0.0
  %668 = vmatpush1.xpose.msra.mxu0 0.0
  %669 = vmatprep.subr.mxu0 0.0
  %670 = vmatpush1.xpose.msra.mxu0 0.0
  %671 = vmatprep.mubr.f32.mxu0 0.0
  %672 = vmatmul.mubr.f32.gmra.mrb[0].mxu0 %v602
  %v673 = vpop.f32.mrb[0].mxu0
  %v674 = vadd.f32 0.0, %v673
  %v675 = vpop.f32.mrb[0].mxu0
  %676 = vdwg.mxu0
  %v677 = vmul.f32 %v598, 0.17677669
  %v678 = vmul.f32 %v674, 0.17677669
  %vm679 = vcmask 64512
  %v680 = vsel %vm679, %v677, -inf
  %681 = vmax.xlane.f32.xlu0 %v680
  %v682 = vpop.xlane.xlu0 %681
  %v683 = vsel %vm679, %v678, -inf
  %684 = vmax.xlane.f32.xlu0 %v683
  %v685 = vpop.xlane.xlu0 %684
  %v686 = vsub.f32 %v677, %v682
  %v687 = vsub.f32 %v678, %v685
  %v688 = vmul.f32 %v686, 1.442695
  %v689 = vpow.pop %v688
  %v690 = vmul.f32 %v687, 1.442695
  %v691 = vpow.pop %v690
  %v692 = vsel %vm679, %v689, 0.0
  %693 = vadd.xlane.f32.xlu0 %v692
  %v694 = vpop.xlane.xlu0 %693
  %v695 = vsel %vm679, %v691, 0.0
  %696 = vadd.xlane.f32.xlu0 %v695
  %v697 = vpop.xlane.xlu0 %696
  %v698 = vrcp.pop %v694
  %v699 = vrcp.pop %v697
  %v700 = vmul.f32 %v689, %v698
  %v701 = vmul.f32 %v691, %v699
  %v703 = vsel %vm679, %v700, 0
  %705 = vmatprep.subr.mxu0 0.0
  %706 = vmatpush1.msra.mxu0 %v516
  %707 = vmatprep.subr.mxu0 0.0
  %708 = vmatpush1.msra.mxu0 0.0
  %709 = vmatprep.subr.mxu0 0.0
  %710 = vmatpush1.msra.mxu0 0.0
  %711 = vmatprep.subr.mxu0 0.0
  %712 = vmatpush1.msra.mxu0 0.0
  %713 = vmatprep.subr.mxu0 0.0
  %714 = vmatpush1.msra.mxu0 0.0
  %715 = vmatprep.subr.mxu0 0.0
  %716 = vmatpush1.msra.mxu0 0.0
  %717 = vmatprep.subr.mxu0 0.0
  %718 = vmatpush1.msra.mxu0 0.0
  %719 = vmatprep.subr.mxu0 0.0
  %720 = vmatpush1.msra.mxu0 0.0
  %721 = vmatprep.subr.mxu0 0.0
  %722 = vmatpush1.msra.mxu0 0.0
  %723 = vmatprep.subr.mxu0 0.0
  %724 = vmatpush1.msra.mxu0 0.0
  %725 = vmatprep.subr.mxu0 0.0
  %726 = vmatpush1.msra.mxu0 0.0
  %727 = vmatprep.subr.mxu0 0.0
  %728 = vmatpush1.msra.mxu0 0.0
  %729 = vmatprep.subr.mxu0 0.0
  %730 = vmatpush1.msra.mxu0 0.0
  %731 = vmatprep.subr.mxu0 0.0
  %732 = vmatpush1.msra.mxu0 0.0
  %733 = vmatprep.subr.mxu0 0.0
  %734 = vmatpush1.msra.mxu0 0.0
  %735 = vmatprep.subr.mxu0 0.0
  %736 = vmatpush1.msra.mxu0 0.0
  %737 = vmatprep.subr.mxu0 0.0
  %738 = vmatpush1.msra.mxu0 0.0
  %739 = vmatprep.subr.mxu0 0.0
  %740 = vmatpush1.msra.mxu0 0.0
  %741 = vmatprep.subr.mxu0 0.0
  %742 = vmatpush1.msra.mxu0 0.0
  %743 = vmatprep.subr.mxu0 0.0
  %744 = vmatpush1.msra.mxu0 0.0
  %745 = vmatprep.subr.mxu0 0.0
  %746 = vmatpush1.msra.mxu0 0.0
  %747 = vmatprep.subr.mxu0 0.0
  %748 = vmatpush1.msra.mxu0 0.0
  %749 = vmatprep.subr.mxu0 0.0
  %750 = vmatpush1.msra.mxu0 0.0
  %751 = vmatprep.subr.mxu0 0.0
  %752 = vmatpush1.msra.mxu0 0.0
  %753 = vmatprep.subr.mxu0 0.0
  %754 = vmatpush1.msra.mxu0 0.0
  %755 = vmatprep.subr.mxu0 0.0
  %756 = vmatpush1.msra.mxu0 0.0
  %757 = vmatprep.subr.mxu0 0.0
  %758 = vmatpush1.msra.mxu0 0.0
  %759 = vmatprep.subr.mxu0 0.0
  %760 = vmatpush1.msra.mxu0 0.0
  %761 = vmatprep.subr.mxu0 0.0
  %762 = vmatpush1.msra.mxu0 0.0
  %763 = vmatprep.subr.mxu0 0.0
  %764 = vmatpush1.msra.mxu0 0.0
  %765 = vmatprep.subr.mxu0 0.0
  %766 = vmatpush1.msra.mxu0 0.0
  %767 = vmatprep.subr.mxu0 0.0
  %768 = vmatpush1.msra.mxu0 0.0
  %769 = vmatprep.mubr.f32.mxu0 0.0
  %770 = vmatmul.mubr.f32.gmra.mrb[0].mxu0 %v703
  %v771 = vpop.f32.mrb[0].mxu0
  %v772 = vadd.f32 0.0, %v771
  %v773 = vpop.f32.mrb[0].mxu0
  %774 = vdwg.mxu0
  %v776 = vsel %vm679, %v701, 0
  %778 = vmatprep.subr.mxu0 0.0
  %779 = vmatpush1.msra.mxu0 %v521
  %780 = vmatprep.subr.mxu0 0.0
  %781 = vmatpush1.msra.mxu0 0.0
  %782 = vmatprep.subr.mxu0 0.0
  %783 = vmatpush1.msra.mxu0 0.0
  %784 = vmatprep.subr.mxu0 0.0
  %785 = vmatpush1.msra.mxu0 0.0
  %786 = vmatprep.subr.mxu0 0.0
  %787 = vmatpush1.msra.mxu0 0.0
  %788 = vmatprep.subr.mxu0 0.0
  %789 = vmatpush1.msra.mxu0 0.0
  %790 = vmatprep.subr.mxu0 0.0
  %791 = vmatpush1.msra.mxu0 0.0
  %792 = vmatprep.subr.mxu0 0.0
  %793 = vmatpush1.msra.mxu0 0.0
  %794 = vmatprep.subr.mxu0 0.0
  %795 = vmatpush1.msra.mxu0 0.0
  %796 = vmatprep.subr.mxu0 0.0
  %797 = vmatpush1.msra.mxu0 0.0
  %798 = vmatprep.subr.mxu0 0.0
  %799 = vmatpush1.msra.mxu0 0.0
  %800 = vmatprep.subr.mxu0 0.0
  %801 = vmatpush1.msra.mxu0 0.0
  %802 = vmatprep.subr.mxu0 0.0
  %803 = vmatpush1.msra.mxu0 0.0
  %804 = vmatprep.subr.mxu0 0.0
  %805 = vmatpush1.msra.mxu0 0.0
  %806 = vmatprep.subr.mxu0 0.0
  %807 = vmatpush1.msra.mxu0 0.0
  %808 = vmatprep.subr.mxu0 0.0
  %809 = vmatpush1.msra.mxu0 0.0
  %810 = vmatprep.subr.mxu0 0.0
  %811 = vmatpush1.msra.mxu0 0.0
  %812 = vmatprep.subr.mxu0 0.0
  %813 = vmatpush1.msra.mxu0 0.0
  %814 = vmatprep.subr.mxu0 0.0
  %815 = vmatpush1.msra.mxu0 0.0
  %816 = vmatprep.subr.mxu0 0.0
  %817 = vmatpush1.msra.mxu0 0.0
  %818 = vmatprep.subr.mxu0 0.0
  %819 = vmatpush1.msra.mxu0 0.0
  %820 = vmatprep.subr.mxu0 0.0
  %821 = vmatpush1.msra.mxu0 0.0
  %822 = vmatprep.subr.mxu0 0.0
  %823 = vmatpush1.msra.mxu0 0.0
  %824 = vmatprep.subr.mxu0 0.0
  %825 = vmatpush1.msra.mxu0 0.0
  %826 = vmatprep.subr.mxu0 0.0
  %827 = vmatpush1.msra.mxu0 0.0
  %828 = vmatprep.subr.mxu0 0.0
  %829 = vmatpush1.msra.mxu0 0.0
  %830 = vmatprep.subr.mxu0 0.0
  %831 = vmatpush1.msra.mxu0 0.0
  %832 = vmatprep.subr.mxu0 0.0
  %833 = vmatpush1.msra.mxu0 0.0
  %834 = vmatprep.subr.mxu0 0.0
  %835 = vmatpush1.msra.mxu0 0.0
  %836 = vmatprep.subr.mxu0 0.0
  %837 = vmatpush1.msra.mxu0 0.0
  %838 = vmatprep.subr.mxu0 0.0
  %839 = vmatpush1.msra.mxu0 0.0
  %840 = vmatprep.subr.mxu0 0.0
  %841 = vmatpush1.msra.mxu0 0.0
  %842 = vmatprep.mubr.f32.mxu0 0.0
  %843 = vmatmul.mubr.f32.gmra.mrb[0].mxu0 %v776
  %v844 = vpop.f32.mrb[0].mxu0
  %v845 = vadd.f32 0.0, %v844
  %v846 = vpop.f32.mrb[0].mxu0
  %847 = vdwg.mxu0
  %v849 = vlaneseq
  %v850 = vshrl.u32 %v849, 7
  %v851 = vsub.s32 0, %v850
  %v852 = vrot.slane %v230, %v851
  %854 = vmatprep.subr.mxu0 0.0
  %855 = vmatpush1.msra.mxu0 %v221
  %856 = vmatprep.subr.mxu0 0.0
  %857 = vmatpush1.msra.mxu0 %v222
  %858 = vmatprep.subr.mxu0 0.0
  %859 = vmatpush1.msra.mxu0 %v223
  %860 = vmatprep.subr.mxu0 0.0
  %861 = vmatpush1.msra.mxu0 %v224
  %862 = vmatprep.subr.mxu0 0.0
  %863 = vmatpush1.msra.mxu0 %v225
  %864 = vmatprep.subr.mxu0 0.0
  %865 = vmatpush1.msra.mxu0 %v226
  %866 = vmatprep.subr.mxu0 0.0
  %867 = vmatpush1.msra.mxu0 %v227
  %868 = vmatprep.subr.mxu0 0.0
  %869 = vmatpush1.msra.mxu0 %v228
  %870 = vmatprep.subr.mxu0 0.0
  %871 = vmatpush1.msra.mxu0 0.0
  %872 = vmatprep.subr.mxu0 0.0
  %873 = vmatpush1.msra.mxu0 0.0
  %874 = vmatprep.subr.mxu0 0.0
  %875 = vmatpush1.msra.mxu0 0.0
  %876 = vmatprep.subr.mxu0 0.0
  %877 = vmatpush1.msra.mxu0 0.0
  %878 = vmatprep.subr.mxu0 0.0
  %879 = vmatpush1.msra.mxu0 0.0
  %880 = vmatprep.subr.mxu0 0.0
  %881 = vmatpush1.msra.mxu0 0.0
  %882 = vmatprep.subr.mxu0 0.0
  %883 = vmatpush1.msra.mxu0 0.0
  %884 = vmatprep.subr.mxu0 0.0
  %885 = vmatpush1.msra.mxu0 0.0
  %886 = vmatprep.subr.mxu0 0.0
  %887 = vmatpush1.msra.mxu0 0.0
  %888 = vmatprep.subr.mxu0 0.0
  %889 = vmatpush1.msra.mxu0 0.0
  %890 = vmatprep.subr.mxu0 0.0
  %891 = vmatpush1.msra.mxu0 0.0
  %892 = vmatprep.subr.mxu0 0.0
  %893 = vmatpush1.msra.mxu0 0.0
  %894 = vmatprep.subr.mxu0 0.0
  %895 = vmatpush1.msra.mxu0 0.0
  %896 = vmatprep.subr.mxu0 0.0
  %897 = vmatpush1.msra.mxu0 0.0
  %898 = vmatprep.subr.mxu0 0.0
  %899 = vmatpush1.msra.mxu0 0.0
  %900 = vmatprep.subr.mxu0 0.0
  %901 = vmatpush1.msra.mxu0 0.0
  %902 = vmatprep.subr.mxu0 0.0
  %903 = vmatpush1.msra.mxu0 0.0
  %904 = vmatprep.subr.mxu0 0.0
  %905 = vmatpush1.msra.mxu0 0.0
  %906 = vmatprep.subr.mxu0 0.0
  %907 = vmatpush1.msra.mxu0 0.0
  %908 = vmatprep.subr.mxu0 0.0
  %909 = vmatpush1.msra.mxu0 0.0
  %910 = vmatprep.subr.mxu0 0.0
  %911 = vmatpush1.msra.mxu0 0.0
  %912 = vmatprep.subr.mxu0 0.0
  %913 = vmatpush1.msra.mxu0 0.0
  %914 = vmatprep.subr.mxu0 0.0
  %915 = vmatpush1.msra.mxu0 0.0
  %916 = vmatprep.subr.mxu0 0.0
  %917 = vmatpush1.msra.mxu0 0.0
  %918 = vmatprep.mubr.f32.mxu0 0.0
  %919 = vmatmul.mubr.f32.gmra.mrb[0].mxu0 %v282
  %v920 = vpop.f32.mrb[0].mxu0
  %v921 = vadd.f32 %v852, %v920
  %v922 = vpop.f32.mrb[0].mxu0
  %923 = vmatprep.mubr.f32.mxu0 0.0
  %924 = vmatmul.mubr.f32.gmra.mrb[0].mxu0 %v285
  %v925 = vpop.f32.mrb[0].mxu0
  %v926 = vadd.f32 %v852, %v925
  %v927 = vpop.f32.mrb[0].mxu0
  %928 = vdwg.mxu0
  %v930 = vlaneseq
  %v931 = vshrl.u32 %v930, 7
  %v932 = vsub.s32 0, %v931
  %v933 = vrot.slane %v248, %v932
  %935 = vmatprep.subr.mxu0 0.0
  %936 = vmatpush1.msra.mxu0 %v239
  %937 = vmatprep.subr.mxu0 0.0
  %938 = vmatpush1.msra.mxu0 %v240
  %939 = vmatprep.subr.mxu0 0.0
  %940 = vmatpush1.msra.mxu0 %v241
  %941 = vmatprep.subr.mxu0 0.0
  %942 = vmatpush1.msra.mxu0 %v242
  %943 = vmatprep.subr.mxu0 0.0
  %944 = vmatpush1.msra.mxu0 %v243
  %945 = vmatprep.subr.mxu0 0.0
  %946 = vmatpush1.msra.mxu0 %v244
  %947 = vmatprep.subr.mxu0 0.0
  %948 = vmatpush1.msra.mxu0 %v245
  %949 = vmatprep.subr.mxu0 0.0
  %950 = vmatpush1.msra.mxu0 %v246
  %951 = vmatprep.subr.mxu0 0.0
  %952 = vmatpush1.msra.mxu0 0.0
  %953 = vmatprep.subr.mxu0 0.0
  %954 = vmatpush1.msra.mxu0 0.0
  %955 = vmatprep.subr.mxu0 0.0
  %956 = vmatpush1.msra.mxu0 0.0
  %957 = vmatprep.subr.mxu0 0.0
  %958 = vmatpush1.msra.mxu0 0.0
  %959 = vmatprep.subr.mxu0 0.0
  %960 = vmatpush1.msra.mxu0 0.0
  %961 = vmatprep.subr.mxu0 0.0
  %962 = vmatpush1.msra.mxu0 0.0
  %963 = vmatprep.subr.mxu0 0.0
  %964 = vmatpush1.msra.mxu0 0.0
  %965 = vmatprep.subr.mxu0 0.0
  %966 = vmatpush1.msra.mxu0 0.0
  %967 = vmatprep.subr.mxu0 0.0
  %968 = vmatpush1.msra.mxu0 0.0
  %969 = vmatprep.subr.mxu0 0.0
  %970 = vmatpush1.msra.mxu0 0.0
  %971 = vmatprep.subr.mxu0 0.0
  %972 = vmatpush1.msra.mxu0 0.0
  %973 = vmatprep.subr.mxu0 0.0
  %974 = vmatpush1.msra.mxu0 0.0
  %975 = vmatprep.subr.mxu0 0.0
  %976 = vmatpush1.msra.mxu0 0.0
  %977 = vmatprep.subr.mxu0 0.0
  %978 = vmatpush1.msra.mxu0 0.0
  %979 = vmatprep.subr.mxu0 0.0
  %980 = vmatpush1.msra.mxu0 0.0
  %981 = vmatprep.subr.mxu0 0.0
  %982 = vmatpush1.msra.mxu0 0.0
  %983 = vmatprep.subr.mxu0 0.0
  %984 = vmatpush1.msra.mxu0 0.0
  %985 = vmatprep.subr.mxu0 0.0
  %986 = vmatpush1.msra.mxu0 0.0
  %987 = vmatprep.subr.mxu0 0.0
  %988 = vmatpush1.msra.mxu0 0.0
  %989 = vmatprep.subr.mxu0 0.0
  %990 = vmatpush1.msra.mxu0 0.0
  %991 = vmatprep.subr.mxu0 0.0
  %992 = vmatpush1.msra.mxu0 0.0
  %993 = vmatprep.subr.mxu0 0.0
  %994 = vmatpush1.msra.mxu0 0.0
  %995 = vmatprep.subr.mxu0 0.0
  %996 = vmatpush1.msra.mxu0 0.0
  %997 = vmatprep.subr.mxu0 0.0
  %998 = vmatpush1.msra.mxu0 0.0
  %999 = vmatprep.mubr.f32.mxu0 0.0
  %1000 = vmatmul.mubr.f32.gmra.mrb[0].mxu0 %v282
  %v1001 = vpop.f32.mrb[0].mxu0
  %v1002 = vadd.f32 %v933, %v1001
  %v1003 = vpop.f32.mrb[0].mxu0
  %1004 = vmatprep.mubr.f32.mxu0 0.0
  %1005 = vmatmul.mubr.f32.gmra.mrb[0].mxu0 %v285
  %v1006 = vpop.f32.mrb[0].mxu0
  %v1007 = vadd.f32 %v933, %v1006
  %v1008 = vpop.f32.mrb[0].mxu0
  %1009 = vdwg.mxu0
  %v1011 = vlaneseq
  %v1012 = vshrl.u32 %v1011, 7
  %v1013 = vsub.s32 0, %v1012
  %v1014 = vrot.slane %v266, %v1013
  %1016 = vmatprep.subr.mxu0 0.0
  %1017 = vmatpush1.msra.mxu0 %v257
  %1018 = vmatprep.subr.mxu0 0.0
  %1019 = vmatpush1.msra.mxu0 %v258
  %1020 = vmatprep.subr.mxu0 0.0
  %1021 = vmatpush1.msra.mxu0 %v259
  %1022 = vmatprep.subr.mxu0 0.0
  %1023 = vmatpush1.msra.mxu0 %v260
  %1024 = vmatprep.subr.mxu0 0.0
  %1025 = vmatpush1.msra.mxu0 %v261
  %1026 = vmatprep.subr.mxu0 0.0
  %1027 = vmatpush1.msra.mxu0 %v262
  %1028 = vmatprep.subr.mxu0 0.0
  %1029 = vmatpush1.msra.mxu0 %v263
  %1030 = vmatprep.subr.mxu0 0.0
  %1031 = vmatpush1.msra.mxu0 %v264
  %1032 = vmatprep.subr.mxu0 0.0
  %1033 = vmatpush1.msra.mxu0 0.0
  %1034 = vmatprep.subr.mxu0 0.0
  %1035 = vmatpush1.msra.mxu0 0.0
  %1036 = vmatprep.subr.mxu0 0.0
  %1037 = vmatpush1.msra.mxu0 0.0
  %1038 = vmatprep.subr.mxu0 0.0
  %1039 = vmatpush1.msra.mxu0 0.0
  %1040 = vmatprep.subr.mxu0 0.0
  %1041 = vmatpush1.msra.mxu0 0.0
  %1042 = vmatprep.subr.mxu0 0.0
  %1043 = vmatpush1.msra.mxu0 0.0
  %1044 = vmatprep.subr.mxu0 0.0
  %1045 = vmatpush1.msra.mxu0 0.0
  %1046 = vmatprep.subr.mxu0 0.0
  %1047 = vmatpush1.msra.mxu0 0.0
  %1048 = vmatprep.subr.mxu0 0.0
  %1049 = vmatpush1.msra.mxu0 0.0
  %1050 = vmatprep.subr.mxu0 0.0
  %1051 = vmatpush1.msra.mxu0 0.0
  %1052 = vmatprep.subr.mxu0 0.0
  %1053 = vmatpush1.msra.mxu0 0.0
  %1054 = vmatprep.subr.mxu0 0.0
  %1055 = vmatpush1.msra.mxu0 0.0
  %1056 = vmatprep.subr.mxu0 0.0
  %1057 = vmatpush1.msra.mxu0 0.0
  %1058 = vmatprep.subr.mxu0 0.0
  %1059 = vmatpush1.msra.mxu0 0.0
  %1060 = vmatprep.subr.mxu0 0.0
  %1061 = vmatpush1.msra.mxu0 0.0
  %1062 = vmatprep.subr.mxu0 0.0
  %1063 = vmatpush1.msra.mxu0 0.0
  %1064 = vmatprep.subr.mxu0 0.0
  %1065 = vmatpush1.msra.mxu0 0.0
  %1066 = vmatprep.subr.mxu0 0.0
  %1067 = vmatpush1.msra.mxu0 0.0
  %1068 = vmatprep.subr.mxu0 0.0
  %1069 = vmatpush1.msra.mxu0 0.0
  %1070 = vmatprep.subr.mxu0 0.0
  %1071 = vmatpush1.msra.mxu0 0.0
  %1072 = vmatprep.subr.mxu0 0.0
  %1073 = vmatpush1.msra.mxu0 0.0
  %1074 = vmatprep.subr.mxu0 0.0
  %1075 = vmatpush1.msra.mxu0 0.0
  %1076 = vmatprep.subr.mxu0 0.0
  %1077 = vmatpush1.msra.mxu0 0.0
  %1078 = vmatprep.subr.mxu0 0.0
  %1079 = vmatpush1.msra.mxu0 0.0
  %1080 = vmatprep.mubr.f32.mxu0 0.0
  %1081 = vmatmul.mubr.f32.gmra.mrb[0].mxu0 %v282
  %v1082 = vpop.f32.mrb[0].mxu0
  %v1083 = vadd.f32 %v1014, %v1082
  %v1084 = vpop.f32.mrb[0].mxu0
  %1085 = vmatprep.mubr.f32.mxu0 0.0
  %1086 = vmatmul.mubr.f32.gmra.mrb[0].mxu0 %v285
  %v1087 = vpop.f32.mrb[0].mxu0
  %v1088 = vadd.f32 %v1014, %v1087
  %v1089 = vpop.f32.mrb[0].mxu0
  %1090 = vdwg.mxu0
  %v1092 = vsel %vm524, %v921, 0
  %v1095 = vsel %vm524, %v1002, 0
  %1097 = vmatprep.subr.mxu0 0.0
  %1098 = vmatpush1.xpose.msra.mxu0 %v1095
  %1099 = vmatprep.subr.mxu0 0.0
  %1100 = vmatpush1.xpose.msra.mxu0 0.0
  %1101 = vmatprep.subr.mxu0 0.0
  %1102 = vmatpush1.xpose.msra.mxu0 0.0
  %1103 = vmatprep.subr.mxu0 0.0
  %1104 = vmatpush1.xpose.msra.mxu0 0.0
  %1105 = vmatprep.subr.mxu0 0.0
  %1106 = vmatpush1.xpose.msra.mxu0 0.0
  %1107 = vmatprep.subr.mxu0 0.0
  %1108 = vmatpush1.xpose.msra.mxu0 0.0
  %1109 = vmatprep.subr.mxu0 0.0
  %1110 = vmatpush1.xpose.msra.mxu0 0.0
  %1111 = vmatprep.subr.mxu0 0.0
  %1112 = vmatpush1.xpose.msra.mxu0 0.0
  %1113 = vmatprep.subr.mxu0 0.0
  %1114 = vmatpush1.xpose.msra.mxu0 0.0
  %1115 = vmatprep.subr.mxu0 0.0
  %1116 = vmatpush1.xpose.msra.mxu0 0.0
  %1117 = vmatprep.subr.mxu0 0.0
  %1118 = vmatpush1.xpose.msra.mxu0 0.0
  %1119 = vmatprep.subr.mxu0 0.0
  %1120 = vmatpush1.xpose.msra.mxu0 0.0
  %1121 = vmatprep.subr.mxu0 0.0
  %1122 = vmatpush1.xpose.msra.mxu0 0.0
  %1123 = vmatprep.subr.mxu0 0.0
  %1124 = vmatpush1.xpose.msra.mxu0 0.0
  %1125 = vmatprep.subr.mxu0 0.0
  %1126 = vmatpush1.xpose.msra.mxu0 0.0
  %1127 = vmatprep.subr.mxu0 0.0
  %1128 = vmatpush1.xpose.msra.mxu0 0.0
  %1129 = vmatprep.subr.mxu0 0.0
  %1130 = vmatpush1.xpose.msra.mxu0 0.0
  %1131 = vmatprep.subr.mxu0 0.0
  %1132 = vmatpush1.xpose.msra.mxu0 0.0
  %1133 = vmatprep.subr.mxu0 0.0
  %1134 = vmatpush1.xpose.msra.mxu0 0.0
  %1135 = vmatprep.subr.mxu0 0.0
  %1136 = vmatpush1.xpose.msra.mxu0 0.0
  %1137 = vmatprep.subr.mxu0 0.0
  %1138 = vmatpush1.xpose.msra.mxu0 0.0
  %1139 = vmatprep.subr.mxu0 0.0
  %1140 = vmatpush1.xpose.msra.mxu0 0.0
  %1141 = vmatprep.subr.mxu0 0.0
  %1142 = vmatpush1.xpose.msra.mxu0 0.0
  %1143 = vmatprep.subr.mxu0 0.0
  %1144 = vmatpush1.xpose.msra.mxu0 0.0
  %1145 = vmatprep.subr.mxu0 0.0
  %1146 = vmatpush1.xpose.msra.mxu0 0.0
  %1147 = vmatprep.subr.mxu0 0.0
  %1148 = vmatpush1.xpose.msra.mxu0 0.0
  %1149 = vmatprep.subr.mxu0 0.0
  %1150 = vmatpush1.xpose.msra.mxu0 0.0
  %1151 = vmatprep.subr.mxu0 0.0
  %1152 = vmatpush1.xpose.msra.mxu0 0.0
  %1153 = vmatprep.subr.mxu0 0.0
  %1154 = vmatpush1.xpose.msra.mxu0 0.0
  %1155 = vmatprep.subr.mxu0 0.0
  %1156 = vmatpush1.xpose.msra.mxu0 0.0
  %1157 = vmatprep.subr.mxu0 0.0
  %1158 = vmatpush1.xpose.msra.mxu0 0.0
  %1159 = vmatprep.subr.mxu0 0.0
  %1160 = vmatpush1.xpose.msra.mxu0 0.0
  %1161 = vmatprep.mubr.f32.mxu0 0.0
  %1162 = vmatmul.mubr.f32.gmra.mrb[0].mxu0 %v1092
  %v1163 = vpop.f32.mrb[0].mxu0
  %v1164 = vadd.f32 0.0, %v1163
  %v1165 = vpop.f32.mrb[0].mxu0
  %1166 = vdwg.mxu0
  %v1168 = vsel %vm524, %v926, 0
  %v1171 = vsel %vm524, %v1007, 0
  %1173 = vmatprep.subr.mxu0 0.0
  %1174 = vmatpush1.xpose.msra.mxu0 %v1171
  %1175 = vmatprep.subr.mxu0 0.0
  %1176 = vmatpush1.xpose.msra.mxu0 0.0
  %1177 = vmatprep.subr.mxu0 0.0
  %1178 = vmatpush1.xpose.msra.mxu0 0.0
  %1179 = vmatprep.subr.mxu0 0.0
  %1180 = vmatpush1.xpose.msra.mxu0 0.0
  %1181 = vmatprep.subr.mxu0 0.0
  %1182 = vmatpush1.xpose.msra.mxu0 0.0
  %1183 = vmatprep.subr.mxu0 0.0
  %1184 = vmatpush1.xpose.msra.mxu0 0.0
  %1185 = vmatprep.subr.mxu0 0.0
  %1186 = vmatpush1.xpose.msra.mxu0 0.0
  %1187 = vmatprep.subr.mxu0 0.0
  %1188 = vmatpush1.xpose.msra.mxu0 0.0
  %1189 = vmatprep.subr.mxu0 0.0
  %1190 = vmatpush1.xpose.msra.mxu0 0.0
  %1191 = vmatprep.subr.mxu0 0.0
  %1192 = vmatpush1.xpose.msra.mxu0 0.0
  %1193 = vmatprep.subr.mxu0 0.0
  %1194 = vmatpush1.xpose.msra.mxu0 0.0
  %1195 = vmatprep.subr.mxu0 0.0
  %1196 = vmatpush1.xpose.msra.mxu0 0.0
  %1197 = vmatprep.subr.mxu0 0.0
  %1198 = vmatpush1.xpose.msra.mxu0 0.0
  %1199 = vmatprep.subr.mxu0 0.0
  %1200 = vmatpush1.xpose.msra.mxu0 0.0
  %1201 = vmatprep.subr.mxu0 0.0
  %1202 = vmatpush1.xpose.msra.mxu0 0.0
  %1203 = vmatprep.subr.mxu0 0.0
  %1204 = vmatpush1.xpose.msra.mxu0 0.0
  %1205 = vmatprep.subr.mxu0 0.0
  %1206 = vmatpush1.xpose.msra.mxu0 0.0
  %1207 = vmatprep.subr.mxu0 0.0
  %1208 = vmatpush1.xpose.msra.mxu0 0.0
  %1209 = vmatprep.subr.mxu0 0.0
  %1210 = vmatpush1.xpose.msra.mxu0 0.0
  %1211 = vmatprep.subr.mxu0 0.0
  %1212 = vmatpush1.xpose.msra.mxu0 0.0
  %1213 = vmatprep.subr.mxu0 0.0
  %1214 = vmatpush1.xpose.msra.mxu0 0.0
  %1215 = vmatprep.subr.mxu0 0.0
  %1216 = vmatpush1.xpose.msra.mxu0 0.0
  %1217 = vmatprep.subr.mxu0 0.0
  %1218 = vmatpush1.xpose.msra.mxu0 0.0
  %1219 = vmatprep.subr.mxu0 0.0
  %1220 = vmatpush1.xpose.msra.mxu0 0.0
  %1221 = vmatprep.subr.mxu0 0.0
  %1222 = vmatpush1.xpose.msra.mxu0 0.0
  %1223 = vmatprep.subr.mxu0 0.0
  %1224 = vmatpush1.xpose.msra.mxu0 0.0
  %1225 = vmatprep.subr.mxu0 0.0
  %1226 = vmatpush1.xpose.msra.mxu0 0.0
  %1227 = vmatprep.subr.mxu0 0.0
  %1228 = vmatpush1.xpose.msra.mxu0 0.0
  %1229 = vmatprep.subr.mxu0 0.0
  %1230 = vmatpush1.xpose.msra.mxu0 0.0
  %1231 = vmatprep.subr.mxu0 0.0
  %1232 = vmatpush1.xpose.msra.mxu0 0.0
  %1233 = vmatprep.subr.mxu0 0.0
  %1234 = vmatpush1.xpose.msra.mxu0 0.0
  %1235 = vmatprep.subr.mxu0 0.0
  %1236 = vmatpush1.xpose.msra.mxu0 0.0
  %1237 = vmatprep.mubr.f32.mxu0 0.0
  %1238 = vmatmul.mubr.f32.gmra.mrb[0].mxu0 %v1168
  %v1239 = vpop.f32.mrb[0].mxu0
  %v1240 = vadd.f32 0.0, %v1239
  %v1241 = vpop.f32.mrb[0].mxu0
  %1242 = vdwg.mxu0
  %v1243 = vmul.f32 %v1164, 0.17677669
  %v1244 = vmul.f32 %v1240, 0.17677669
  %v1245 = vsel %vm679, %v1243, -inf
  %1246 = vmax.xlane.f32.xlu0 %v1245
  %v1247 = vpop.xlane.xlu0 %1246
  %v1248 = vsel %vm679, %v1244, -inf
  %1249 = vmax.xlane.f32.xlu0 %v1248
  %v1250 = vpop.xlane.xlu0 %1249
  %v1251 = vsub.f32 %v1243, %v1247
  %v1252 = vsub.f32 %v1244, %v1250
  %v1253 = vmul.f32 %v1251, 1.442695
  %v1254 = vpow.pop %v1253
  %v1255 = vmul.f32 %v1252, 1.442695
  %v1256 = vpow.pop %v1255
  %v1257 = vsel %vm679, %v1254, 0.0
  %1258 = vadd.xlane.f32.xlu0 %v1257
  %v1259 = vpop.xlane.xlu0 %1258
  %v1260 = vsel %vm679, %v1256, 0.0
  %1261 = vadd.xlane.f32.xlu0 %v1260
  %v1262 = vpop.xlane.xlu0 %1261
  %v1263 = vrcp.pop %v1259
  %v1264 = vrcp.pop %v1262
  %v1265 = vmul.f32 %v1254, %v1263
  %v1266 = vmul.f32 %v1256, %v1264
  %v1268 = vsel %vm679, %v1265, 0
  %1270 = vmatprep.subr.mxu0 0.0
  %1271 = vmatpush1.msra.mxu0 %v1083
  %1272 = vmatprep.subr.mxu0 0.0
  %1273 = vmatpush1.msra.mxu0 0.0
  %1274 = vmatprep.subr.mxu0 0.0
  %1275 = vmatpush1.msra.mxu0 0.0
  %1276 = vmatprep.subr.mxu0 0.0
  %1277 = vmatpush1.msra.mxu0 0.0
  %1278 = vmatprep.subr.mxu0 0.0
  %1279 = vmatpush1.msra.mxu0 0.0
  %1280 = vmatprep.subr.mxu0 0.0
  %1281 = vmatpush1.msra.mxu0 0.0
  %1282 = vmatprep.subr.mxu0 0.0
  %1283 = vmatpush1.msra.mxu0 0.0
  %1284 = vmatprep.subr.mxu0 0.0
  %1285 = vmatpush1.msra.mxu0 0.0
  %1286 = vmatprep.subr.mxu0 0.0
  %1287 = vmatpush1.msra.mxu0 0.0
  %1288 = vmatprep.subr.mxu0 0.0
  %1289 = vmatpush1.msra.mxu0 0.0
  %1290 = vmatprep.subr.mxu0 0.0
  %1291 = vmatpush1.msra.mxu0 0.0
  %1292 = vmatprep.subr.mxu0 0.0
  %1293 = vmatpush1.msra.mxu0 0.0
  %1294 = vmatprep.subr.mxu0 0.0
  %1295 = vmatpush1.msra.mxu0 0.0
  %1296 = vmatprep.subr.mxu0 0.0
  %1297 = vmatpush1.msra.mxu0 0.0
  %1298 = vmatprep.subr.mxu0 0.0
  %1299 = vmatpush1.msra.mxu0 0.0
  %1300 = vmatprep.subr.mxu0 0.0
  %1301 = vmatpush1.msra.mxu0 0.0
  %1302 = vmatprep.subr.mxu0 0.0
  %1303 = vmatpush1.msra.mxu0 0.0
  %1304 = vmatprep.subr.mxu0 0.0
  %1305 = vmatpush1.msra.mxu0 0.0
  %1306 = vmatprep.subr.mxu0 0.0
  %1307 = vmatpush1.msra.mxu0 0.0
  %1308 = vmatprep.subr.mxu0 0.0
  %1309 = vmatpush1.msra.mxu0 0.0
  %1310 = vmatprep.subr.mxu0 0.0
  %1311 = vmatpush1.msra.mxu0 0.0
  %1312 = vmatprep.subr.mxu0 0.0
  %1313 = vmatpush1.msra.mxu0 0.0
  %1314 = vmatprep.subr.mxu0 0.0
  %1315 = vmatpush1.msra.mxu0 0.0
  %1316 = vmatprep.subr.mxu0 0.0
  %1317 = vmatpush1.msra.mxu0 0.0
  %1318 = vmatprep.subr.mxu0 0.0
  %1319 = vmatpush1.msra.mxu0 0.0
  %1320 = vmatprep.subr.mxu0 0.0
  %1321 = vmatpush1.msra.mxu0 0.0
  %1322 = vmatprep.subr.mxu0 0.0
  %1323 = vmatpush1.msra.mxu0 0.0
  %1324 = vmatprep.subr.mxu0 0.0
  %1325 = vmatpush1.msra.mxu0 0.0
  %1326 = vmatprep.subr.mxu0 0.0
  %1327 = vmatpush1.msra.mxu0 0.0
  %1328 = vmatprep.subr.mxu0 0.0
  %1329 = vmatpush1.msra.mxu0 0.0
  %1330 = vmatprep.subr.mxu0 0.0
  %1331 = vmatpush1.msra.mxu0 0.0
  %1332 = vmatprep.subr.mxu0 0.0
  %1333 = vmatpush1.msra.mxu0 0.0
  %1334 = vmatprep.mubr.f32.mxu0 0.0
  %1335 = vmatmul.mubr.f32.gmra.mrb[0].mxu0 %v1268
  %v1336 = vpop.f32.mrb[0].mxu0
  %v1337 = vadd.f32 0.0, %v1336
  %v1338 = vpop.f32.mrb[0].mxu0
  %1339 = vdwg.mxu0
  %v1341 = vsel %vm679, %v1266, 0
  %1343 = vmatprep.subr.mxu0 0.0
  %1344 = vmatpush1.msra.mxu0 %v1088
  %1345 = vmatprep.subr.mxu0 0.0
  %1346 = vmatpush1.msra.mxu0 0.0
  %1347 = vmatprep.subr.mxu0 0.0
  %1348 = vmatpush1.msra.mxu0 0.0
  %1349 = vmatprep.subr.mxu0 0.0
  %1350 = vmatpush1.msra.mxu0 0.0
  %1351 = vmatprep.subr.mxu0 0.0
  %1352 = vmatpush1.msra.mxu0 0.0
  %1353 = vmatprep.subr.mxu0 0.0
  %1354 = vmatpush1.msra.mxu0 0.0
  %1355 = vmatprep.subr.mxu0 0.0
  %1356 = vmatpush1.msra.mxu0 0.0
  %1357 = vmatprep.subr.mxu0 0.0
  %1358 = vmatpush1.msra.mxu0 0.0
  %1359 = vmatprep.subr.mxu0 0.0
  %1360 = vmatpush1.msra.mxu0 0.0
  %1361 = vmatprep.subr.mxu0 0.0
  %1362 = vmatpush1.msra.mxu0 0.0
  %1363 = vmatprep.subr.mxu0 0.0
  %1364 = vmatpush1.msra.mxu0 0.0
  %1365 = vmatprep.subr.mxu0 0.0
  %1366 = vmatpush1.msra.mxu0 0.0
  %1367 = vmatprep.subr.mxu0 0.0
  %1368 = vmatpush1.msra.mxu0 0.0
  %1369 = vmatprep.subr.mxu0 0.0
  %1370 = vmatpush1.msra.mxu0 0.0
  %1371 = vmatprep.subr.mxu0 0.0
  %1372 = vmatpush1.msra.mxu0 0.0
  %1373 = vmatprep.subr.mxu0 0.0
  %1374 = vmatpush1.msra.mxu0 0.0
  %1375 = vmatprep.subr.mxu0 0.0
  %1376 = vmatpush1.msra.mxu0 0.0
  %1377 = vmatprep.subr.mxu0 0.0
  %1378 = vmatpush1.msra.mxu0 0.0
  %1379 = vmatprep.subr.mxu0 0.0
  %1380 = vmatpush1.msra.mxu0 0.0
  %1381 = vmatprep.subr.mxu0 0.0
  %1382 = vmatpush1.msra.mxu0 0.0
  %1383 = vmatprep.subr.mxu0 0.0
  %1384 = vmatpush1.msra.mxu0 0.0
  %1385 = vmatprep.subr.mxu0 0.0
  %1386 = vmatpush1.msra.mxu0 0.0
  %1387 = vmatprep.subr.mxu0 0.0
  %1388 = vmatpush1.msra.mxu0 0.0
  %1389 = vmatprep.subr.mxu0 0.0
  %1390 = vmatpush1.msra.mxu0 0.0
  %1391 = vmatprep.subr.mxu0 0.0
  %1392 = vmatpush1.msra.mxu0 0.0
  %1393 = vmatprep.subr.mxu0 0.0
  %1394 = vmatpush1.msra.mxu0 0.0
  %1395 = vmatprep.subr.mxu0 0.0
  %1396 = vmatpush1.msra.mxu0 0.0
  %1397 = vmatprep.subr.mxu0 0.0
  %1398 = vmatpush1.msra.mxu0 0.0
  %1399 = vmatprep.subr.mxu0 0.0
  %1400 = vmatpush1.msra.mxu0 0.0
  %1401 = vmatprep.subr.mxu0 0.0
  %1402 = vmatpush1.msra.mxu0 0.0
  %1403 = vmatprep.subr.mxu0 0.0
  %1404 = vmatpush1.msra.mxu0 0.0
  %1405 = vmatprep.subr.mxu0 0.0
  %1406 = vmatpush1.msra.mxu0 0.0
  %1407 = vmatprep.mubr.f32.mxu0 0.0
  %1408 = vmatmul.mubr.f32.gmra.mrb[0].mxu0 %v1341
  %v1409 = vpop.f32.mrb[0].mxu0
  %v1410 = vadd.f32 0.0, %v1409
  %v1411 = vpop.f32.mrb[0].mxu0
  %1412 = vdwg.mxu0
  %v1414 = vsel %vm524, %v1337, 0
  %v1417 = vsel %vm524, %v1410, 0
  %1419 = vmatprep.subr.mxu0 0.0
  %1420 = vmatpush1.msra.mxu0 %v271
  %1421 = vmatprep.subr.mxu0 0.0
  %1422 = vmatpush1.msra.mxu0 %v272
  %1423 = vmatprep.subr.mxu0 0.0
  %1424 = vmatpush1.msra.mxu0 %v273
  %1425 = vmatprep.subr.mxu0 0.0
  %1426 = vmatpush1.msra.mxu0 %v274
  %1427 = vmatprep.subr.mxu0 0.0
  %1428 = vmatpush1.msra.mxu0 0.0
  %1429 = vmatprep.subr.mxu0 0.0
  %1430 = vmatpush1.msra.mxu0 0.0
  %1431 = vmatprep.subr.mxu0 0.0
  %1432 = vmatpush1.msra.mxu0 0.0
  %1433 = vmatprep.subr.mxu0 0.0
  %1434 = vmatpush1.msra.mxu0 0.0
  %1435 = vmatprep.subr.mxu0 0.0
  %1436 = vmatpush1.msra.mxu0 0.0
  %1437 = vmatprep.subr.mxu0 0.0
  %1438 = vmatpush1.msra.mxu0 0.0
  %1439 = vmatprep.subr.mxu0 0.0
  %1440 = vmatpush1.msra.mxu0 0.0
  %1441 = vmatprep.subr.mxu0 0.0
  %1442 = vmatpush1.msra.mxu0 0.0
  %1443 = vmatprep.subr.mxu0 0.0
  %1444 = vmatpush1.msra.mxu0 0.0
  %1445 = vmatprep.subr.mxu0 0.0
  %1446 = vmatpush1.msra.mxu0 0.0
  %1447 = vmatprep.subr.mxu0 0.0
  %1448 = vmatpush1.msra.mxu0 0.0
  %1449 = vmatprep.subr.mxu0 0.0
  %1450 = vmatpush1.msra.mxu0 0.0
  %1451 = vmatprep.subr.mxu0 0.0
  %1452 = vmatpush1.msra.mxu0 0.0
  %1453 = vmatprep.subr.mxu0 0.0
  %1454 = vmatpush1.msra.mxu0 0.0
  %1455 = vmatprep.subr.mxu0 0.0
  %1456 = vmatpush1.msra.mxu0 0.0
  %1457 = vmatprep.subr.mxu0 0.0
  %1458 = vmatpush1.msra.mxu0 0.0
  %1459 = vmatprep.subr.mxu0 0.0
  %1460 = vmatpush1.msra.mxu0 0.0
  %1461 = vmatprep.subr.mxu0 0.0
  %1462 = vmatpush1.msra.mxu0 0.0
  %1463 = vmatprep.subr.mxu0 0.0
  %1464 = vmatpush1.msra.mxu0 0.0
  %1465 = vmatprep.subr.mxu0 0.0
  %1466 = vmatpush1.msra.mxu0 0.0
  %1467 = vmatprep.subr.mxu0 0.0
  %1468 = vmatpush1.msra.mxu0 0.0
  %1469 = vmatprep.subr.mxu0 0.0
  %1470 = vmatpush1.msra.mxu0 0.0
  %1471 = vmatprep.subr.mxu0 0.0
  %1472 = vmatpush1.msra.mxu0 0.0
  %1473 = vmatprep.subr.mxu0 0.0
  %1474 = vmatpush1.msra.mxu0 0.0
  %1475 = vmatprep.subr.mxu0 0.0
  %1476 = vmatpush1.msra.mxu0 0.0
  %1477 = vmatprep.subr.mxu0 0.0
  %1478 = vmatpush1.msra.mxu0 0.0
  %1479 = vmatprep.subr.mxu0 0.0
  %1480 = vmatpush1.msra.mxu0 0.0
  %1481 = vmatprep.subr.mxu0 0.0
  %1482 = vmatpush1.msra.mxu0 0.0
  %1483 = vmatprep.mubr.f32.mxu0 0.0
  %1484 = vmatmul.mubr.f32.gmra.mrb[0].mxu0 %v1414
  %v1485 = vpop.f32.mrb[0].mxu0
  %v1486 = vadd.f32 0.0, %v1485
  %v1487 = vpop.f32.mrb[0].mxu0
  %1488 = vmatprep.mubr.f32.mxu0 0.0
  %1489 = vmatmul.mubr.f32.gmra.mrb[0].mxu0 %v1417
  %v1490 = vpop.f32.mrb[0].mxu0
  %v1491 = vadd.f32 0.0, %v1490
  %v1492 = vpop.f32.mrb[0].mxu0
  %1493 = vdwg.mxu0
  %v1495 = vsel %vm524, %v772, 0
  %v1498 = vsel %vm524, %v845, 0
  %1500 = vmatprep.subr.mxu0 0.0
  %1501 = vmatpush1.msra.mxu0 %v267
  %1502 = vmatprep.subr.mxu0 0.0
  %1503 = vmatpush1.msra.mxu0 %v268
  %1504 = vmatprep.subr.mxu0 0.0
  %1505 = vmatpush1.msra.mxu0 %v269
  %1506 = vmatprep.subr.mxu0 0.0
  %1507 = vmatpush1.msra.mxu0 %v270
  %1508 = vmatprep.subr.mxu0 0.0
  %1509 = vmatpush1.msra.mxu0 0.0
  %1510 = vmatprep.subr.mxu0 0.0
  %1511 = vmatpush1.msra.mxu0 0.0
  %1512 = vmatprep.subr.mxu0 0.0
  %1513 = vmatpush1.msra.mxu0 0.0
  %1514 = vmatprep.subr.mxu0 0.0
  %1515 = vmatpush1.msra.mxu0 0.0
  %1516 = vmatprep.subr.mxu0 0.0
  %1517 = vmatpush1.msra.mxu0 0.0
  %1518 = vmatprep.subr.mxu0 0.0
  %1519 = vmatpush1.msra.mxu0 0.0
  %1520 = vmatprep.subr.mxu0 0.0
  %1521 = vmatpush1.msra.mxu0 0.0
  %1522 = vmatprep.subr.mxu0 0.0
  %1523 = vmatpush1.msra.mxu0 0.0
  %1524 = vmatprep.subr.mxu0 0.0
  %1525 = vmatpush1.msra.mxu0 0.0
  %1526 = vmatprep.subr.mxu0 0.0
  %1527 = vmatpush1.msra.mxu0 0.0
  %1528 = vmatprep.subr.mxu0 0.0
  %1529 = vmatpush1.msra.mxu0 0.0
  %1530 = vmatprep.subr.mxu0 0.0
  %1531 = vmatpush1.msra.mxu0 0.0
  %1532 = vmatprep.subr.mxu0 0.0
  %1533 = vmatpush1.msra.mxu0 0.0
  %1534 = vmatprep.subr.mxu0 0.0
  %1535 = vmatpush1.msra.mxu0 0.0
  %1536 = vmatprep.subr.mxu0 0.0
  %1537 = vmatpush1.msra.mxu0 0.0
  %1538 = vmatprep.subr.mxu0 0.0
  %1539 = vmatpush1.msra.mxu0 0.0
  %1540 = vmatprep.subr.mxu0 0.0
  %1541 = vmatpush1.msra.mxu0 0.0
  %1542 = vmatprep.subr.mxu0 0.0
  %1543 = vmatpush1.msra.mxu0 0.0
  %1544 = vmatprep.subr.mxu0 0.0
  %1545 = vmatpush1.msra.mxu0 0.0
  %1546 = vmatprep.subr.mxu0 0.0
  %1547 = vmatpush1.msra.mxu0 0.0
  %1548 = vmatprep.subr.mxu0 0.0
  %1549 = vmatpush1.msra.mxu0 0.0
  %1550 = vmatprep.subr.mxu0 0.0
  %1551 = vmatpush1.msra.mxu0 0.0
  %1552 = vmatprep.subr.mxu0 0.0
  %1553 = vmatpush1.msra.mxu0 0.0
  %1554 = vmatprep.subr.mxu0 0.0
  %1555 = vmatpush1.msra.mxu0 0.0
  %1556 = vmatprep.subr.mxu0 0.0
  %1557 = vmatpush1.msra.mxu0 0.0
  %1558 = vmatprep.subr.mxu0 0.0
  %1559 = vmatpush1.msra.mxu0 0.0
  %1560 = vmatprep.subr.mxu0 0.0
  %1561 = vmatpush1.msra.mxu0 0.0
  %1562 = vmatprep.subr.mxu0 0.0
  %1563 = vmatpush1.msra.mxu0 0.0
  %1564 = vmatprep.mubr.f32.mxu0 0.0
  %1565 = vmatmul.mubr.f32.gmra.mrb[0].mxu0 %v1495
  %v1566 = vpop.f32.mrb[0].mxu0
  %v1567 = vadd.f32 %v1486, %v1566
  %v1568 = vpop.f32.mrb[0].mxu0
  %1569 = vmatprep.mubr.f32.mxu0 0.0
  %1570 = vmatmul.mubr.f32.gmra.mrb[0].mxu0 %v1498
  %v1571 = vpop.f32.mrb[0].mxu0
  %v1572 = vadd.f32 %v1491, %v1571
  %v1573 = vpop.f32.mrb[0].mxu0
  %1574 = vdwg.mxu0
  %v1575 = vadd.f32 %v170, %v1567
  %v1576 = vadd.f32 %v171, %v1572
  %v1577 = vld [vmem:[%s11] sm:$0x1]
  %v1579 = vlaneseq
  %v1580 = vshrl.u32 %v1579, 7
  %v1581 = vsub.s32 0, %v1580
  %v1582 = vrot.slane %v1577, %v1581
  %v1584 = vadd.f32 %v1575, %v1582
  %v1585 = vadd.f32 %v1576, %v1582
  %v1586 = vld [vmem:[%s12] sm:$0x3]
  %v1587 = vsel %vm173, %v1584, 0.0
  %1588 = vadd.xlane.f32.xlu0 %v1587
  %v1589 = vpop.xlane.xlu0 %1588
  %v1590 = vsel %vm173, %v1585, 0.0
  %1591 = vadd.xlane.f32.xlu0 %v1590
  %v1592 = vpop.xlane.xlu0 %1591
  %v1593 = vmul.f32 %v1589, %v180
  %v1594 = vmul.f32 %v1592, %v180
  %v1595 = vsub.f32 %v1584, %v1593
  %v1596 = vsub.f32 %v1585, %v1594
  %v1597 = vmul.f32 %v1595, %v1595
  %v1598 = vmul.f32 %v1596, %v1596
  %v1599 = vsel %vm173, %v1597, 0.0
  %1600 = vadd.xlane.f32.xlu0 %v1599
  %v1601 = vpop.xlane.xlu0 %1600
  %v1602 = vsel %vm173, %v1598, 0.0
  %1603 = vadd.xlane.f32.xlu0 %v1602
  %v1604 = vpop.xlane.xlu0 %1603
  %v1605 = vmul.f32 %v1601, %v180
  %v1606 = vmul.f32 %v1604, %v180
  %v1607 = vadd.f32 %v1605, 1e-05
  %v1608 = vadd.f32 %v1606, 1e-05
  %v1609 = vrsqrt.pop %v1607
  %v1610 = vrsqrt.pop %v1608
  %v1611 = vmul.f32 %v1595, %v1609
  %v1612 = vmul.f32 %v1596, %v1610
  %v1613 = vlaneseq
  %v1614 = vshrl.u32 %v1613, 7
  %v1615 = vsub.s32 0, %v1614
  %v1616 = vrot.slane %v1586, %v1615
  %v1617 = vmul.f32 %v1611, %v1616
  %v1618 = vmul.f32 %v1612, %v1616
  %v1619 = vlaneseq
  %v1620 = vshrl.u32 %v1619, 7
  %v1621 = vsub.s32 1, %v1620
  %v1622 = vrot.slane %v1586, %v1621
  %v1623 = vadd.f32 %v1617, %v1622
  %v1624 = vadd.f32 %v1618, %v1622
  %v1625 = vld [vmem:[%s13] sm:$0xff]
  %v1626 = vld [vmem:[%s13 + $0x8] sm:$0xff]
  %v1627 = vld [vmem:[%s13 + $0x10] sm:$0xff]
  %v1628 = vld [vmem:[%s13 + $0x18] sm:$0xff]
  %v1629 = vld [vmem:[%s13 + $0x20] sm:$0xff]
  %v1630 = vld [vmem:[%s13 + $0x28] sm:$0xff]
  %v1631 = vld [vmem:[%s13 + $0x30] sm:$0xff]
  %v1632 = vld [vmem:[%s13 + $0x38] sm:$0xff]
  %v1633 = vld [vmem:[%s13 + $0x40] sm:$0xff]
  %v1634 = vld [vmem:[%s13 + $0x48] sm:$0xff]
  %v1635 = vld [vmem:[%s13 + $0x50] sm:$0xff]
  %v1636 = vld [vmem:[%s13 + $0x58] sm:$0xff]
  %v1637 = vld [vmem:[%s13 + $0x60] sm:$0xff]
  %v1638 = vld [vmem:[%s13 + $0x68] sm:$0xff]
  %v1639 = vld [vmem:[%s13 + $0x70] sm:$0xff]
  %v1640 = vld [vmem:[%s13 + $0x78] sm:$0xff]
  %v1641 = vld [vmem:[%s14] sm:$0x3]
  %v1643 = vlaneseq
  %v1644 = vshrl.u32 %v1643, 7
  %v1645 = vsub.s32 0, %v1644
  %v1646 = vrot.slane %v1641, %v1645
  %v1647 = vlaneseq
  %v1648 = vshrl.u32 %v1647, 7
  %v1649 = vsub.s32 1, %v1648
  %v1650 = vrot.slane %v1641, %v1649
  %v1654 = vsel %vm173, %v1623, 0
  %v1657 = vsel %vm173, %v1624, 0
  %1659 = vmatprep.subr.mxu0 %v1626
  %1660 = vmatpush1.msra.mxu0 %v1625
  %1661 = vmatprep.subr.mxu0 %v1628
  %1662 = vmatpush1.msra.mxu0 %v1627
  %1663 = vmatprep.subr.mxu0 %v1630
  %1664 = vmatpush1.msra.mxu0 %v1629
  %1665 = vmatprep.subr.mxu0 %v1632
  %1666 = vmatpush1.msra.mxu0 %v1631
  %1667 = vmatprep.subr.mxu0 %v1634
  %1668 = vmatpush1.msra.mxu0 %v1633
  %1669 = vmatprep.subr.mxu0 %v1636
  %1670 = vmatpush1.msra.mxu0 %v1635
  %1671 = vmatprep.subr.mxu0 %v1638
  %1672 = vmatpush1.msra.mxu0 %v1637
  %1673 = vmatprep.subr.mxu0 %v1640
  %1674 = vmatpush1.msra.mxu0 %v1639
  %1675 = vmatprep.subr.mxu0 0.0
  %1676 = vmatpush1.msra.mxu0 0.0
  %1677 = vmatprep.subr.mxu0 0.0
  %1678 = vmatpush1.msra.mxu0 0.0
  %1679 = vmatprep.subr.mxu0 0.0
  %1680 = vmatpush1.msra.mxu0 0.0
  %1681 = vmatprep.subr.mxu0 0.0
  %1682 = vmatpush1.msra.mxu0 0.0
  %1683 = vmatprep.subr.mxu0 0.0
  %1684 = vmatpush1.msra.mxu0 0.0
  %1685 = vmatprep.subr.mxu0 0.0
  %1686 = vmatpush1.msra.mxu0 0.0
  %1687 = vmatprep.subr.mxu0 0.0
  %1688 = vmatpush1.msra.mxu0 0.0
  %1689 = vmatprep.subr.mxu0 0.0
  %1690 = vmatpush1.msra.mxu0 0.0
  %1691 = vmatprep.subr.mxu0 0.0
  %1692 = vmatpush1.msra.mxu0 0.0
  %1693 = vmatprep.subr.mxu0 0.0
  %1694 = vmatpush1.msra.mxu0 0.0
  %1695 = vmatprep.subr.mxu0 0.0
  %1696 = vmatpush1.msra.mxu0 0.0
  %1697 = vmatprep.subr.mxu0 0.0
  %1698 = vmatpush1.msra.mxu0 0.0
  %1699 = vmatprep.subr.mxu0 0.0
  %1700 = vmatpush1.msra.mxu0 0.0
  %1701 = vmatprep.subr.mxu0 0.0
  %1702 = vmatpush1.msra.mxu0 0.0
  %1703 = vmatprep.subr.mxu0 0.0
  %1704 = vmatpush1.msra.mxu0 0.0
  %1705 = vmatprep.subr.mxu0 0.0
  %1706 = vmatpush1.msra.mxu0 0.0
  %1707 = vmatprep.subr.mxu0 0.0
  %1708 = vmatpush1.msra.mxu0 0.0
  %1709 = vmatprep.subr.mxu0 0.0
  %1710 = vmatpush1.msra.mxu0 0.0
  %1711 = vmatprep.subr.mxu0 0.0
  %1712 = vmatpush1.msra.mxu0 0.0
  %1713 = vmatprep.subr.mxu0 0.0
  %1714 = vmatpush1.msra.mxu0 0.0
  %1715 = vmatprep.subr.mxu0 0.0
  %1716 = vmatpush1.msra.mxu0 0.0
  %1717 = vmatprep.subr.mxu0 0.0
  %1718 = vmatpush1.msra.mxu0 0.0
  %1719 = vmatprep.subr.mxu0 0.0
  %1720 = vmatpush1.msra.mxu0 0.0
  %1721 = vmatprep.subr.mxu0 0.0
  %1722 = vmatpush1.msra.mxu0 0.0
  %1723 = vmatprep.mubr.f32.mxu0 0.0
  %1724 = vmatmul.mubr.f32.gmra.mrb[0].mxu0 %v1654
  %v1725 = vpop.f32.mrb[0].mxu0
  %v1726 = vadd.f32 %v1646, %v1725
  %v1727 = vpop.f32.mrb[0].mxu0
  %v1728 = vadd.f32 %v1650, %v1727
  %1729 = vmatprep.mubr.f32.mxu0 0.0
  %1730 = vmatmul.mubr.f32.gmra.mrb[0].mxu0 %v1657
  %v1731 = vpop.f32.mrb[0].mxu0
  %v1732 = vadd.f32 %v1646, %v1731
  %v1733 = vpop.f32.mrb[0].mxu0
  %v1734 = vadd.f32 %v1650, %v1733
  %1735 = vdwg.mxu0
  %v1736 = vmax.f32 %v1726, 0.0
  %v1737 = vmax.f32 %v1728, 0.0
  %v1738 = vmax.f32 %v1732, 0.0
  %v1739 = vmax.f32 %v1734, 0.0
  %v1740 = vld [vmem:[%s15] sm:$0xff]
  %v1741 = vld [vmem:[%s15 + $0x8] sm:$0xff]
  %v1742 = vld [vmem:[%s15 + $0x10] sm:$0xff]
  %v1743 = vld [vmem:[%s15 + $0x18] sm:$0xff]
  %v1744 = vld [vmem:[%s15 + $0x20] sm:$0xff]
  %v1745 = vld [vmem:[%s15 + $0x28] sm:$0xff]
  %v1746 = vld [vmem:[%s15 + $0x30] sm:$0xff]
  %v1747 = vld [vmem:[%s15 + $0x38] sm:$0xff]
  %v1748 = vld [vmem:[%s15 + $0x40] sm:$0xff]
  %v1749 = vld [vmem:[%s15 + $0x48] sm:$0xff]
  %v1750 = vld [vmem:[%s15 + $0x50] sm:$0xff]
  %v1751 = vld [vmem:[%s15 + $0x58] sm:$0xff]
  %v1752 = vld [vmem:[%s15 + $0x60] sm:$0xff]
  %v1753 = vld [vmem:[%s15 + $0x68] sm:$0xff]
  %v1754 = vld [vmem:[%s15 + $0x70] sm:$0xff]
  %v1755 = vld [vmem:[%s15 + $0x78] sm:$0xff]
  %v1756 = vld [vmem:[%s15 + $0x80] sm:$0xff]
  %v1757 = vld [vmem:[%s15 + $0x88] sm:$0xff]
  %v1758 = vld [vmem:[%s15 + $0x90] sm:$0xff]
  %v1759 = vld [vmem:[%s15 + $0x98] sm:$0xff]
  %v1760 = vld [vmem:[%s15 + $0xa0] sm:$0xff]
  %v1761 = vld [vmem:[%s15 + $0xa8] sm:$0xff]
  %v1762 = vld [vmem:[%s15 + $0xb0] sm:$0xff]
  %v1763 = vld [vmem:[%s15 + $0xb8] sm:$0xff]
  %v1764 = vld [vmem:[%s15 + $0xc0] sm:$0xff]
  %v1765 = vld [vmem:[%s15 + $0xc8] sm:$0xff]
  %v1766 = vld [vmem:[%s15 + $0xd0] sm:$0xff]
  %v1767 = vld [vmem:[%s15 + $0xd8] sm:$0xff]
  %v1768 = vld [vmem:[%s15 + $0xe0] sm:$0xff]
  %v1769 = vld [vmem:[%s15 + $0xe8] sm:$0xff]
  %v1770 = vld [vmem:[%s15 + $0xf0] sm:$0xff]
  %v1771 = vld [vmem:[%s15 + $0xf8] sm:$0xff]
  %1772 = vmatprep.subr.mxu0 0.0
  %1773 = vmatpush1.msra.mxu0 %v1740
  %1774 = vmatprep.subr.mxu0 0.0
  %1775 = vmatpush1.msra.mxu0 %v1741
  %1776 = vmatprep.subr.mxu0 0.0
  %1777 = vmatpush1.msra.mxu0 %v1742
  %1778 = vmatprep.subr.mxu0 0.0
  %1779 = vmatpush1.msra.mxu0 %v1743
  %1780 = vmatprep.subr.mxu0 0.0
  %1781 = vmatpush1.msra.mxu0 %v1744
  %1782 = vmatprep.subr.mxu0 0.0
  %1783 = vmatpush1.msra.mxu0 %v1745
  %1784 = vmatprep.subr.mxu0 0.0
  %1785 = vmatpush1.msra.mxu0 %v1746
  %1786 = vmatprep.subr.mxu0 0.0
  %1787 = vmatpush1.msra.mxu0 %v1747
  %1788 = vmatprep.subr.mxu0 0.0
  %1789 = vmatpush1.msra.mxu0 %v1748
  %1790 = vmatprep.subr.mxu0 0.0
  %1791 = vmatpush1.msra.mxu0 %v1749
  %1792 = vmatprep.subr.mxu0 0.0
  %1793 = vmatpush1.msra.mxu0 %v1750
  %1794 = vmatprep.subr.mxu0 0.0
  %1795 = vmatpush1.msra.mxu0 %v1751
  %1796 = vmatprep.subr.mxu0 0.0
  %1797 = vmatpush1.msra.mxu0 %v1752
  %1798 = vmatprep.subr.mxu0 0.0
  %1799 = vmatpush1.msra.mxu0 %v1753
  %1800 = vmatprep.subr.mxu0 0.0
  %1801 = vmatpush1.msra.mxu0 %v1754
  %1802 = vmatprep.subr.mxu0 0.0
  %1803 = vmatpush1.msra.mxu0 %v1755
  %1804 = vmatprep.subr.mxu0 0.0
  %1805 = vmatpush1.msra.mxu0 %v1756
  %1806 = vmatprep.subr.mxu0 0.0
  %1807 = vmatpush1.msra.mxu0 %v1757
  %1808 = vmatprep.subr.mxu0 0.0
  %1809 = vmatpush1.msra.mxu0 %v1758
  %1810 = vmatprep.subr.mxu0 0.0
  %1811 = vmatpush1.msra.mxu0 %v1759
  %1812 = vmatprep.subr.mxu0 0.0
  %1813 = vmatpush1.msra.mxu0 %v1760
  %1814 = vmatprep.subr.mxu0 0.0
  %1815 = vmatpush1.msra.mxu0 %v1761
  %1816 = vmatprep.subr.mxu0 0.0
  %1817 = vmatpush1.msra.mxu0 %v1762
  %1818 = vmatprep.subr.mxu0 0.0
  %1819 = vmatpush1.msra.mxu0 %v1763
  %1820 = vmatprep.subr.mxu0 0.0
  %1821 = vmatpush1.msra.mxu0 %v1764
  %1822 = vmatprep.subr.mxu0 0.0
  %1823 = vmatpush1.msra.mxu0 %v1765
  %1824 = vmatprep.subr.mxu0 0.0
  %1825 = vmatpush1.msra.mxu0 %v1766
  %1826 = vmatprep.subr.mxu0 0.0
  %1827 = vmatpush1.msra.mxu0 %v1767
  %1828 = vmatprep.subr.mxu0 0.0
  %1829 = vmatpush1.msra.mxu0 %v1768
  %1830 = vmatprep.subr.mxu0 0.0
  %1831 = vmatpush1.msra.mxu0 %v1769
  %1832 = vmatprep.subr.mxu0 0.0
  %1833 = vmatpush1.msra.mxu0 %v1770
  %1834 = vmatprep.subr.mxu0 0.0
  %1835 = vmatpush1.msra.mxu0 %v1771
  %1836 = vmatprep.mubr.f32.mxu0 %v1737
  %1837 = vmatmul.mubr.f32.gmra.mrb[0].mxu0 %v1736
  %v1838 = vpop.f32.mrb[0].mxu0
  %v1839 = vadd.f32 0.0, %v1838
  %v1840 = vpop.f32.mrb[0].mxu0
  %1841 = vmatprep.mubr.f32.mxu0 %v1739
  %1842 = vmatmul.mubr.f32.gmra.mrb[0].mxu0 %v1738
  %v1843 = vpop.f32.mrb[0].mxu0
  %v1844 = vadd.f32 0.0, %v1843
  %v1845 = vpop.f32.mrb[0].mxu0
  %1846 = vdwg.mxu0
  %v1847 = vadd.f32 %v1584, %v1839
  %v1848 = vadd.f32 %v1585, %v1844
  %v1849 = vld [vmem:[%s16] sm:$0x1]
  %v1851 = vlaneseq
  %v1852 = vshrl.u32 %v1851, 7
  %v1853 = vsub.s32 0, %v1852
  %v1854 = vrot.slane %v1849, %v1853
  %v1856 = vadd.f32 %v1847, %v1854
  %v1857 = vadd.f32 %v1848, %v1854
  %s1858 = scalar_lea.vmem %s3, 2
  %v1859 = vld [vmem:[%s1858] sm:$0x3]
  %v1860 = vsel %vm173, %v1856, 0.0
  %1861 = vadd.xlane.f32.xlu0 %v1860
  %v1862 = vpop.xlane.xlu0 %1861
  %v1863 = vsel %vm173, %v1857, 0.0
  %1864 = vadd.xlane.f32.xlu0 %v1863
  %v1865 = vpop.xlane.xlu0 %1864
  %v1866 = vmul.f32 %v1862, %v180
  %v1867 = vmul.f32 %v1865, %v180
  %v1868 = vsub.f32 %v1856, %v1866
  %v1869 = vsub.f32 %v1857, %v1867
  %v1870 = vmul.f32 %v1868, %v1868
  %v1871 = vmul.f32 %v1869, %v1869
  %v1872 = vsel %vm173, %v1870, 0.0
  %1873 = vadd.xlane.f32.xlu0 %v1872
  %v1874 = vpop.xlane.xlu0 %1873
  %v1875 = vsel %vm173, %v1871, 0.0
  %1876 = vadd.xlane.f32.xlu0 %v1875
  %v1877 = vpop.xlane.xlu0 %1876
  %v1878 = vmul.f32 %v1874, %v180
  %v1879 = vmul.f32 %v1877, %v180
  %v1880 = vadd.f32 %v1878, 1e-05
  %v1881 = vadd.f32 %v1879, 1e-05
  %v1882 = vrsqrt.pop %v1880
  %v1883 = vrsqrt.pop %v1881
  %v1884 = vmul.f32 %v1868, %v1882
  %v1885 = vmul.f32 %v1869, %v1883
  %v1886 = vlaneseq
  %v1887 = vshrl.u32 %v1886, 7
  %v1888 = vsub.s32 0, %v1887
  %v1889 = vrot.slane %v1859, %v1888
  %v1890 = vmul.f32 %v1884, %v1889
  %v1891 = vmul.f32 %v1885, %v1889
  %v1892 = vlaneseq
  %v1893 = vshrl.u32 %v1892, 7
  %v1894 = vsub.s32 1, %v1893
  %v1895 = vrot.slane %v1859, %v1894
  %v1896 = vadd.f32 %v1890, %v1895
  %v1897 = vadd.f32 %v1891, %v1895
  %s1898 = scalar_lea.vmem %s4, 128
  %v1899 = vld [vmem:[%s1898] sm:$0xff]
  %v1900 = vld [vmem:[%s1898 + $0x8] sm:$0xff]
  %v1901 = vld [vmem:[%s1898 + $0x10] sm:$0xff]
  %v1902 = vld [vmem:[%s1898 + $0x18] sm:$0xff]
  %v1903 = vld [vmem:[%s1898 + $0x20] sm:$0xff]
  %v1904 = vld [vmem:[%s1898 + $0x28] sm:$0xff]
  %v1905 = vld [vmem:[%s1898 + $0x30] sm:$0xff]
  %v1906 = vld [vmem:[%s1898 + $0x38] sm:$0xff]
  %v1907 = vld [vmem:[%s1898 + $0x40] sm:$0xff]
  %v1908 = vld [vmem:[%s1898 + $0x48] sm:$0xff]
  %v1909 = vld [vmem:[%s1898 + $0x50] sm:$0xff]
  %v1910 = vld [vmem:[%s1898 + $0x58] sm:$0xff]
  %v1911 = vld [vmem:[%s1898 + $0x60] sm:$0xff]
  %v1912 = vld [vmem:[%s1898 + $0x68] sm:$0xff]
  %v1913 = vld [vmem:[%s1898 + $0x70] sm:$0xff]
  %v1914 = vld [vmem:[%s1898 + $0x78] sm:$0xff]
  %s1915 = scalar_lea.vmem %s5, 2
  %v1916 = vld [vmem:[%s1915] sm:$0x1]
  %v1917 = vld [vmem:[%s1915 + $0x1] sm:$0x1]
  %s1918 = scalar_lea.vmem %s6, 128
  %v1919 = vld [vmem:[%s1918] sm:$0xff]
  %v1920 = vld [vmem:[%s1918 + $0x8] sm:$0xff]
  %v1921 = vld [vmem:[%s1918 + $0x10] sm:$0xff]
  %v1922 = vld [vmem:[%s1918 + $0x18] sm:$0xff]
  %v1923 = vld [vmem:[%s1918 + $0x20] sm:$0xff]
  %v1924 = vld [vmem:[%s1918 + $0x28] sm:$0xff]
  %v1925 = vld [vmem:[%s1918 + $0x30] sm:$0xff]
  %v1926 = vld [vmem:[%s1918 + $0x38] sm:$0xff]
  %v1927 = vld [vmem:[%s1918 + $0x40] sm:$0xff]
  %v1928 = vld [vmem:[%s1918 + $0x48] sm:$0xff]
  %v1929 = vld [vmem:[%s1918 + $0x50] sm:$0xff]
  %v1930 = vld [vmem:[%s1918 + $0x58] sm:$0xff]
  %v1931 = vld [vmem:[%s1918 + $0x60] sm:$0xff]
  %v1932 = vld [vmem:[%s1918 + $0x68] sm:$0xff]
  %v1933 = vld [vmem:[%s1918 + $0x70] sm:$0xff]
  %v1934 = vld [vmem:[%s1918 + $0x78] sm:$0xff]
  %s1935 = scalar_lea.vmem %s7, 2
  %v1936 = vld [vmem:[%s1935] sm:$0x1]
  %v1937 = vld [vmem:[%s1935 + $0x1] sm:$0x1]
  %s1938 = scalar_lea.vmem %s8, 128
  %v1939 = vld [vmem:[%s1938] sm:$0xff]
  %v1940 = vld [vmem:[%s1938 + $0x8] sm:$0xff]
  %v1941 = vld [vmem:[%s1938 + $0x10] sm:$0xff]
  %v1942 = vld [vmem:[%s1938 + $0x18] sm:$0xff]
  %v1943 = vld [vmem:[%s1938 + $0x20] sm:$0xff]
  %v1944 = vld [vmem:[%s1938 + $0x28] sm:$0xff]
  %v1945 = vld [vmem:[%s1938 + $0x30] sm:$0xff]
  %v1946 = vld [vmem:[%s1938 + $0x38] sm:$0xff]
  %v1947 = vld [vmem:[%s1938 + $0x40] sm:$0xff]
  %v1948 = vld [vmem:[%s1938 + $0x48] sm:$0xff]
  %v1949 = vld [vmem:[%s1938 + $0x50] sm:$0xff]
  %v1950 = vld [vmem:[%s1938 + $0x58] sm:$0xff]
  %v1951 = vld [vmem:[%s1938 + $0x60] sm:$0xff]
  %v1952 = vld [vmem:[%s1938 + $0x68] sm:$0xff]
  %v1953 = vld [vmem:[%s1938 + $0x70] sm:$0xff]
  %v1954 = vld [vmem:[%s1938 + $0x78] sm:$0xff]
  %s1955 = scalar_lea.vmem %s9, 2
  %v1956 = vld [vmem:[%s1955] sm:$0x1]
  %v1957 = vld [vmem:[%s1955 + $0x1] sm:$0x1]
  %s1958 = scalar_lea.vmem %s10, 64
  %v1959 = vld [vmem:[%s1958] sm:$0xff]
  %v1960 = vld [vmem:[%s1958 + $0x8] sm:$0xff]
  %v1961 = vld [vmem:[%s1958 + $0x10] sm:$0xff]
  %v1962 = vld [vmem:[%s1958 + $0x18] sm:$0xff]
  %v1963 = vld [vmem:[%s1958 + $0x20] sm:$0xff]
  %v1964 = vld [vmem:[%s1958 + $0x28] sm:$0xff]
  %v1965 = vld [vmem:[%s1958 + $0x30] sm:$0xff]
  %v1966 = vld [vmem:[%s1958 + $0x38] sm:$0xff]
  %v1968 = vlaneseq
  %v1969 = vshrl.u32 %v1968, 7
  %v1970 = vsub.s32 0, %v1969
  %v1971 = vrot.slane %v1916, %v1970
  %v1974 = vsel %vm173, %v1896, 0
  %v1977 = vsel %vm173, %v1897, 0
  %1979 = vmatprep.subr.mxu0 0.0
  %1980 = vmatpush1.msra.mxu0 %v1899
  %1981 = vmatprep.subr.mxu0 0.0
  %1982 = vmatpush1.msra.mxu0 %v1900
  %1983 = vmatprep.subr.mxu0 0.0
  %1984 = vmatpush1.msra.mxu0 %v1901
  %1985 = vmatprep.subr.mxu0 0.0
  %1986 = vmatpush1.msra.mxu0 %v1902
  %1987 = vmatprep.subr.mxu0 0.0
  %1988 = vmatpush1.msra.mxu0 %v1903
  %1989 = vmatprep.subr.mxu0 0.0
  %1990 = vmatpush1.msra.mxu0 %v1904
  %1991 = vmatprep.subr.mxu0 0.0
  %1992 = vmatpush1.msra.mxu0 %v1905
  %1993 = vmatprep.subr.mxu0 0.0
  %1994 = vmatpush1.msra.mxu0 %v1906
  %1995 = vmatprep.subr.mxu0 0.0
  %1996 = vmatpush1.msra.mxu0 0.0
  %1997 = vmatprep.subr.mxu0 0.0
  %1998 = vmatpush1.msra.mxu0 0.0
  %1999 = vmatprep.subr.mxu0 0.0
  %2000 = vmatpush1.msra.mxu0 0.0
  %2001 = vmatprep.subr.mxu0 0.0
  %2002 = vmatpush1.msra.mxu0 0.0
  %2003 = vmatprep.subr.mxu0 0.0
  %2004 = vmatpush1.msra.mxu0 0.0
  %2005 = vmatprep.subr.mxu0 0.0
  %2006 = vmatpush1.msra.mxu0 0.0
  %2007 = vmatprep.subr.mxu0 0.0
  %2008 = vmatpush1.msra.mxu0 0.0
  %2009 = vmatprep.subr.mxu0 0.0
  %2010 = vmatpush1.msra.mxu0 0.0
  %2011 = vmatprep.subr.mxu0 0.0
  %2012 = vmatpush1.msra.mxu0 0.0
  %2013 = vmatprep.subr.mxu0 0.0
  %2014 = vmatpush1.msra.mxu0 0.0
  %2015 = vmatprep.subr.mxu0 0.0
  %2016 = vmatpush1.msra.mxu0 0.0
  %2017 = vmatprep.subr.mxu0 0.0
  %2018 = vmatpush1.msra.mxu0 0.0
  %2019 = vmatprep.subr.mxu0 0.0
  %2020 = vmatpush1.msra.mxu0 0.0
  %2021 = vmatprep.subr.mxu0 0.0
  %2022 = vmatpush1.msra.mxu0 0.0
  %2023 = vmatprep.subr.mxu0 0.0
  %2024 = vmatpush1.msra.mxu0 0.0
  %2025 = vmatprep.subr.mxu0 0.0
  %2026 = vmatpush1.msra.mxu0 0.0
  %2027 = vmatprep.subr.mxu0 0.0
  %2028 = vmatpush1.msra.mxu0 0.0
  %2029 = vmatprep.subr.mxu0 0.0
  %2030 = vmatpush1.msra.mxu0 0.0
  %2031 = vmatprep.subr.mxu0 0.0
  %2032 = vmatpush1.msra.mxu0 0.0
  %2033 = vmatprep.subr.mxu0 0.0
  %2034 = vmatpush1.msra.mxu0 0.0
  %2035 = vmatprep.subr.mxu0 0.0
  %2036 = vmatpush1.msra.mxu0 0.0
  %2037 = vmatprep.subr.mxu0 0.0
  %2038 = vmatpush1.msra.mxu0 0.0
  %2039 = vmatprep.subr.mxu0 0.0
  %2040 = vmatpush1.msra.mxu0 0.0
  %2041 = vmatprep.subr.mxu0 0.0
  %2042 = vmatpush1.msra.mxu0 0.0
  %2043 = vmatprep.mubr.f32.mxu0 0.0
  %2044 = vmatmul.mubr.f32.gmra.mrb[0].mxu0 %v1974
  %v2045 = vpop.f32.mrb[0].mxu0
  %v2046 = vadd.f32 %v1971, %v2045
  %v2047 = vpop.f32.mrb[0].mxu0
  %2048 = vmatprep.mubr.f32.mxu0 0.0
  %2049 = vmatmul.mubr.f32.gmra.mrb[0].mxu0 %v1977
  %v2050 = vpop.f32.mrb[0].mxu0
  %v2051 = vadd.f32 %v1971, %v2050
  %v2052 = vpop.f32.mrb[0].mxu0
  %2053 = vdwg.mxu0
  %v2055 = vlaneseq
  %v2056 = vshrl.u32 %v2055, 7
  %v2057 = vsub.s32 0, %v2056
  %v2058 = vrot.slane %v1936, %v2057
  %2060 = vmatprep.subr.mxu0 0.0
  %2061 = vmatpush1.msra.mxu0 %v1919
  %2062 = vmatprep.subr.mxu0 0.0
  %2063 = vmatpush1.msra.mxu0 %v1920
  %2064 = vmatprep.subr.mxu0 0.0
  %2065 = vmatpush1.msra.mxu0 %v1921
  %2066 = vmatprep.subr.mxu0 0.0
  %2067 = vmatpush1.msra.mxu0 %v1922
  %2068 = vmatprep.subr.mxu0 0.0
  %2069 = vmatpush1.msra.mxu0 %v1923
  %2070 = vmatprep.subr.mxu0 0.0
  %2071 = vmatpush1.msra.mxu0 %v1924
  %2072 = vmatprep.subr.mxu0 0.0
  %2073 = vmatpush1.msra.mxu0 %v1925
  %2074 = vmatprep.subr.mxu0 0.0
  %2075 = vmatpush1.msra.mxu0 %v1926
  %2076 = vmatprep.subr.mxu0 0.0
  %2077 = vmatpush1.msra.mxu0 0.0
  %2078 = vmatprep.subr.mxu0 0.0
  %2079 = vmatpush1.msra.mxu0 0.0
  %2080 = vmatprep.subr.mxu0 0.0
  %2081 = vmatpush1.msra.mxu0 0.0
  %2082 = vmatprep.subr.mxu0 0.0
  %2083 = vmatpush1.msra.mxu0 0.0
  %2084 = vmatprep.subr.mxu0 0.0
  %2085 = vmatpush1.msra.mxu0 0.0
  %2086 = vmatprep.subr.mxu0 0.0
  %2087 = vmatpush1.msra.mxu0 0.0
  %2088 = vmatprep.subr.mxu0 0.0
  %2089 = vmatpush1.msra.mxu0 0.0
  %2090 = vmatprep.subr.mxu0 0.0
  %2091 = vmatpush1.msra.mxu0 0.0
  %2092 = vmatprep.subr.mxu0 0.0
  %2093 = vmatpush1.msra.mxu0 0.0
  %2094 = vmatprep.subr.mxu0 0.0
  %2095 = vmatpush1.msra.mxu0 0.0
  %2096 = vmatprep.subr.mxu0 0.0
  %2097 = vmatpush1.msra.mxu0 0.0
  %2098 = vmatprep.subr.mxu0 0.0
  %2099 = vmatpush1.msra.mxu0 0.0
  %2100 = vmatprep.subr.mxu0 0.0
  %2101 = vmatpush1.msra.mxu0 0.0
  %2102 = vmatprep.subr.mxu0 0.0
  %2103 = vmatpush1.msra.mxu0 0.0
  %2104 = vmatprep.subr.mxu0 0.0
  %2105 = vmatpush1.msra.mxu0 0.0
  %2106 = vmatprep.subr.mxu0 0.0
  %2107 = vmatpush1.msra.mxu0 0.0
  %2108 = vmatprep.subr.mxu0 0.0
  %2109 = vmatpush1.msra.mxu0 0.0
  %2110 = vmatprep.subr.mxu0 0.0
  %2111 = vmatpush1.msra.mxu0 0.0
  %2112 = vmatprep.subr.mxu0 0.0
  %2113 = vmatpush1.msra.mxu0 0.0
  %2114 = vmatprep.subr.mxu0 0.0
  %2115 = vmatpush1.msra.mxu0 0.0
  %2116 = vmatprep.subr.mxu0 0.0
  %2117 = vmatpush1.msra.mxu0 0.0
  %2118 = vmatprep.subr.mxu0 0.0
  %2119 = vmatpush1.msra.mxu0 0.0
  %2120 = vmatprep.subr.mxu0 0.0
  %2121 = vmatpush1.msra.mxu0 0.0
  %2122 = vmatprep.subr.mxu0 0.0
  %2123 = vmatpush1.msra.mxu0 0.0
  %2124 = vmatprep.mubr.f32.mxu0 0.0
  %2125 = vmatmul.mubr.f32.gmra.mrb[0].mxu0 %v1974
  %v2126 = vpop.f32.mrb[0].mxu0
  %v2127 = vadd.f32 %v2058, %v2126
  %v2128 = vpop.f32.mrb[0].mxu0
  %2129 = vmatprep.mubr.f32.mxu0 0.0
  %2130 = vmatmul.mubr.f32.gmra.mrb[0].mxu0 %v1977
  %v2131 = vpop.f32.mrb[0].mxu0
  %v2132 = vadd.f32 %v2058, %v2131
  %v2133 = vpop.f32.mrb[0].mxu0
  %2134 = vdwg.mxu0
  %v2136 = vlaneseq
  %v2137 = vshrl.u32 %v2136, 7
  %v2138 = vsub.s32 0, %v2137
  %v2139 = vrot.slane %v1956, %v2138
  %2141 = vmatprep.subr.mxu0 0.0
  %2142 = vmatpush1.msra.mxu0 %v1939
  %2143 = vmatprep.subr.mxu0 0.0
  %2144 = vmatpush1.msra.mxu0 %v1940
  %2145 = vmatprep.subr.mxu0 0.0
  %2146 = vmatpush1.msra.mxu0 %v1941
  %2147 = vmatprep.subr.mxu0 0.0
  %2148 = vmatpush1.msra.mxu0 %v1942
  %2149 = vmatprep.subr.mxu0 0.0
  %2150 = vmatpush1.msra.mxu0 %v1943
  %2151 = vmatprep.subr.mxu0 0.0
  %2152 = vmatpush1.msra.mxu0 %v1944
  %2153 = vmatprep.subr.mxu0 0.0
  %2154 = vmatpush1.msra.mxu0 %v1945
  %2155 = vmatprep.subr.mxu0 0.0
  %2156 = vmatpush1.msra.mxu0 %v1946
  %2157 = vmatprep.subr.mxu0 0.0
  %2158 = vmatpush1.msra.mxu0 0.0
  %2159 = vmatprep.subr.mxu0 0.0
  %2160 = vmatpush1.msra.mxu0 0.0
  %2161 = vmatprep.subr.mxu0 0.0
  %2162 = vmatpush1.msra.mxu0 0.0
  %2163 = vmatprep.subr.mxu0 0.0
  %2164 = vmatpush1.msra.mxu0 0.0
  %2165 = vmatprep.subr.mxu0 0.0
  %2166 = vmatpush1.msra.mxu0 0.0
  %2167 = vmatprep.subr.mxu0 0.0
  %2168 = vmatpush1.msra.mxu0 0.0
  %2169 = vmatprep.subr.mxu0 0.0
  %2170 = vmatpush1.msra.mxu0 0.0
  %2171 = vmatprep.subr.mxu0 0.0
  %2172 = vmatpush1.msra.mxu0 0.0
  %2173 = vmatprep.subr.mxu0 0.0
  %2174 = vmatpush1.msra.mxu0 0.0
  %2175 = vmatprep.subr.mxu0 0.0
  %2176 = vmatpush1.msra.mxu0 0.0
  %2177 = vmatprep.subr.mxu0 0.0
  %2178 = vmatpush1.msra.mxu0 0.0
  %2179 = vmatprep.subr.mxu0 0.0
  %2180 = vmatpush1.msra.mxu0 0.0
  %2181 = vmatprep.subr.mxu0 0.0
  %2182 = vmatpush1.msra.mxu0 0.0
  %2183 = vmatprep.subr.mxu0 0.0
  %2184 = vmatpush1.msra.mxu0 0.0
  %2185 = vmatprep.subr.mxu0 0.0
  %2186 = vmatpush1.msra.mxu0 0.0
  %2187 = vmatprep.subr.mxu0 0.0
  %2188 = vmatpush1.msra.mxu0 0.0
  %2189 = vmatprep.subr.mxu0 0.0
  %2190 = vmatpush1.msra.mxu0 0.0
  %2191 = vmatprep.subr.mxu0 0.0
  %2192 = vmatpush1.msra.mxu0 0.0
  %2193 = vmatprep.subr.mxu0 0.0
  %2194 = vmatpush1.msra.mxu0 0.0
  %2195 = vmatprep.subr.mxu0 0.0
  %2196 = vmatpush1.msra.mxu0 0.0
  %2197 = vmatprep.subr.mxu0 0.0
  %2198 = vmatpush1.msra.mxu0 0.0
  %2199 = vmatprep.subr.mxu0 0.0
  %2200 = vmatpush1.msra.mxu0 0.0
  %2201 = vmatprep.subr.mxu0 0.0
  %2202 = vmatpush1.msra.mxu0 0.0
  %2203 = vmatprep.subr.mxu0 0.0
  %2204 = vmatpush1.msra.mxu0 0.0
  %2205 = vmatprep.mubr.f32.mxu0 0.0
  %2206 = vmatmul.mubr.f32.gmra.mrb[0].mxu0 %v1974
  %v2207 = vpop.f32.mrb[0].mxu0
  %v2208 = vadd.f32 %v2139, %v2207
  %v2209 = vpop.f32.mrb[0].mxu0
  %2210 = vmatprep.mubr.f32.mxu0 0.0
  %2211 = vmatmul.mubr.f32.gmra.mrb[0].mxu0 %v1977
  %v2212 = vpop.f32.mrb[0].mxu0
  %v2213 = vadd.f32 %v2139, %v2212
  %v2214 = vpop.f32.mrb[0].mxu0
  %2215 = vdwg.mxu0
  %v2217 = vsel %vm524, %v2046, 0
  %v2220 = vsel %vm524, %v2127, 0
  %2222 = vmatprep.subr.mxu0 0.0
  %2223 = vmatpush1.xpose.msra.mxu0 %v2220
  %2224 = vmatprep.subr.mxu0 0.0
  %2225 = vmatpush1.xpose.msra.mxu0 0.0
  %2226 = vmatprep.subr.mxu0 0.0
  %2227 = vmatpush1.xpose.msra.mxu0 0.0
  %2228 = vmatprep.subr.mxu0 0.0
  %2229 = vmatpush1.xpose.msra.mxu0 0.0
  %2230 = vmatprep.subr.mxu0 0.0
  %2231 = vmatpush1.xpose.msra.mxu0 0.0
  %2232 = vmatprep.subr.mxu0 0.0
  %2233 = vmatpush1.xpose.msra.mxu0 0.0
  %2234 = vmatprep.subr.mxu0 0.0
  %2235 = vmatpush1.xpose.msra.mxu0 0.0
  %2236 = vmatprep.subr.mxu0 0.0
  %2237 = vmatpush1.xpose.msra.mxu0 0.0
  %2238 = vmatprep.subr.mxu0 0.0
  %2239 = vmatpush1.xpose.msra.mxu0 0.0
  %2240 = vmatprep.subr.mxu0 0.0
  %2241 = vmatpush1.xpose.msra.mxu0 0.0
  %2242 = vmatprep.subr.mxu0 0.0
  %2243 = vmatpush1.xpose.msra.mxu0 0.0
  %2244 = vmatprep.subr.mxu0 0.0
  %2245 = vmatpush1.xpose.msra.mxu0 0.0
  %2246 = vmatprep.subr.mxu0 0.0
  %2247 = vmatpush1.xpose.msra.mxu0 0.0
  %2248 = vmatprep.subr.mxu0 0.0
  %2249 = vmatpush1.xpose.msra.mxu0 0.0
  %2250 = vmatprep.subr.mxu0 0.0
  %2251 = vmatpush1.xpose.msra.mxu0 0.0
  %2252 = vmatprep.subr.mxu0 0.0
  %2253 = vmatpush1.xpose.msra.mxu0 0.0
  %2254 = vmatprep.subr.mxu0 0.0
  %2255 = vmatpush1.xpose.msra.mxu0 0.0
  %2256 = vmatprep.subr.mxu0 0.0
  %2257 = vmatpush1.xpose.msra.mxu0 0.0
  %2258 = vmatprep.subr.mxu0 0.0
  %2259 = vmatpush1.xpose.msra.mxu0 0.0
  %2260 = vmatprep.subr.mxu0 0.0
  %2261 = vmatpush1.xpose.msra.mxu0 0.0
  %2262 = vmatprep.subr.mxu0 0.0
  %2263 = vmatpush1.xpose.msra.mxu0 0.0
  %2264 = vmatprep.subr.mxu0 0.0
  %2265 = vmatpush1.xpose.msra.mxu0 0.0
  %2266 = vmatprep.subr.mxu0 0.0
  %2267 = vmatpush1.xpose.msra.mxu0 0.0
  %2268 = vmatprep.subr.mxu0 0.0
  %2269 = vmatpush1.xpose.msra.mxu0 0.0
  %2270 = vmatprep.subr.mxu0 0.0
  %2271 = vmatpush1.xpose.msra.mxu0 0.0
  %2272 = vmatprep.subr.mxu0 0.0
  %2273 = vmatpush1.xpose.msra.mxu0 0.0
  %2274 = vmatprep.subr.mxu0 0.0
  %2275 = vmatpush1.xpose.msra.mxu0 0.0
  %2276 = vmatprep.subr.mxu0 0.0
  %2277 = vmatpush1.xpose.msra.mxu0 0.0
  %2278 = vmatprep.subr.mxu0 0.0
  %2279 = vmatpush1.xpose.msra.mxu0 0.0
  %2280 = vmatprep.subr.mxu0 0.0
  %2281 = vmatpush1.xpose.msra.mxu0 0.0
  %2282 = vmatprep.subr.mxu0 0.0
  %2283 = vmatpush1.xpose.msra.mxu0 0.0
  %2284 = vmatprep.subr.mxu0 0.0
  %2285 = vmatpush1.xpose.msra.mxu0 0.0
  %2286 = vmatprep.mubr.f32.mxu0 0.0
  %2287 = vmatmul.mubr.f32.gmra.mrb[0].mxu0 %v2217
  %v2288 = vpop.f32.mrb[0].mxu0
  %v2289 = vadd.f32 0.0, %v2288
  %v2290 = vpop.f32.mrb[0].mxu0
  %2291 = vdwg.mxu0
  %v2293 = vsel %vm524, %v2051, 0
  %v2296 = vsel %vm524, %v2132, 0
  %2298 = vmatprep.subr.mxu0 0.0
  %2299 = vmatpush1.xpose.msra.mxu0 %v2296
  %2300 = vmatprep.subr.mxu0 0.0
  %2301 = vmatpush1.xpose.msra.mxu0 0.0
  %2302 = vmatprep.subr.mxu0 0.0
  %2303 = vmatpush1.xpose.msra.mxu0 0.0
  %2304 = vmatprep.subr.mxu0 0.0
  %2305 = vmatpush1.xpose.msra.mxu0 0.0
  %2306 = vmatprep.subr.mxu0 0.0
  %2307 = vmatpush1.xpose.msra.mxu0 0.0
  %2308 = vmatprep.subr.mxu0 0.0
  %2309 = vmatpush1.xpose.msra.mxu0 0.0
  %2310 = vmatprep.subr.mxu0 0.0
  %2311 = vmatpush1.xpose.msra.mxu0 0.0
  %2312 = vmatprep.subr.mxu0 0.0
  %2313 = vmatpush1.xpose.msra.mxu0 0.0
  %2314 = vmatprep.subr.mxu0 0.0
  %2315 = vmatpush1.xpose.msra.mxu0 0.0
  %2316 = vmatprep.subr.mxu0 0.0
  %2317 = vmatpush1.xpose.msra.mxu0 0.0
  %2318 = vmatprep.subr.mxu0 0.0
  %2319 = vmatpush1.xpose.msra.mxu0 0.0
  %2320 = vmatprep.subr.mxu0 0.0
  %2321 = vmatpush1.xpose.msra.mxu0 0.0
  %2322 = vmatprep.subr.mxu0 0.0
  %2323 = vmatpush1.xpose.msra.mxu0 0.0
  %2324 = vmatprep.subr.mxu0 0.0
  %2325 = vmatpush1.xpose.msra.mxu0 0.0
  %2326 = vmatprep.subr.mxu0 0.0
  %2327 = vmatpush1.xpose.msra.mxu0 0.0
  %2328 = vmatprep.subr.mxu0 0.0
  %2329 = vmatpush1.xpose.msra.mxu0 0.0
  %2330 = vmatprep.subr.mxu0 0.0
  %2331 = vmatpush1.xpose.msra.mxu0 0.0
  %2332 = vmatprep.subr.mxu0 0.0
  %2333 = vmatpush1.xpose.msra.mxu0 0.0
  %2334 = vmatprep.subr.mxu0 0.0
  %2335 = vmatpush1.xpose.msra.mxu0 0.0
  %2336 = vmatprep.subr.mxu0 0.0
  %2337 = vmatpush1.xpose.msra.mxu0 0.0
  %2338 = vmatprep.subr.mxu0 0.0
  %2339 = vmatpush1.xpose.msra.mxu0 0.0
  %2340 = vmatprep.subr.mxu0 0.0
  %2341 = vmatpush1.xpose.msra.mxu0 0.0
  %2342 = vmatprep.subr.mxu0 0.0
  %2343 = vmatpush1.xpose.msra.mxu0 0.0
  %2344 = vmatprep.subr.mxu0 0.0
  %2345 = vmatpush1.xpose.msra.mxu0 0.0
  %2346 = vmatprep.subr.mxu0 0.0
  %2347 = vmatpush1.xpose.msra.mxu0 0.0
  %2348 = vmatprep.subr.mxu0 0.0
  %2349 = vmatpush1.xpose.msra.mxu0 0.0
  %2350 = vmatprep.subr.mxu0 0.0
  %2351 = vmatpush1.xpose.msra.mxu0 0.0
  %2352 = vmatprep.subr.mxu0 0.0
  %2353 = vmatpush1.xpose.msra.mxu0 0.0
  %2354 = vmatprep.subr.mxu0 0.0
  %2355 = vmatpush1.xpose.msra.mxu0 0.0
  %2356 = vmatprep.subr.mxu0 0.0
  %2357 = vmatpush1.xpose.msra.mxu0 0.0
  %2358 = vmatprep.subr.mxu0 0.0
  %2359 = vmatpush1.xpose.msra.mxu0 0.0
  %2360 = vmatprep.subr.mxu0 0.0
  %2361 = vmatpush1.xpose.msra.mxu0 0.0
  %2362 = vmatprep.mubr.f32.mxu0 0.0
  %2363 = vmatmul.mubr.f32.gmra.mrb[0].mxu0 %v2293
  %v2364 = vpop.f32.mrb[0].mxu0
  %v2365 = vadd.f32 0.0, %v2364
  %v2366 = vpop.f32.mrb[0].mxu0
  %2367 = vdwg.mxu0
  %v2368 = vmul.f32 %v2289, 0.17677669
  %v2369 = vmul.f32 %v2365, 0.17677669
  %v2370 = vsel %vm679, %v2368, -inf
  %2371 = vmax.xlane.f32.xlu0 %v2370
  %v2372 = vpop.xlane.xlu0 %2371
  %v2373 = vsel %vm679, %v2369, -inf
  %2374 = vmax.xlane.f32.xlu0 %v2373
  %v2375 = vpop.xlane.xlu0 %2374
  %v2376 = vsub.f32 %v2368, %v2372
  %v2377 = vsub.f32 %v2369, %v2375
  %v2378 = vmul.f32 %v2376, 1.442695
  %v2379 = vpow.pop %v2378
  %v2380 = vmul.f32 %v2377, 1.442695
  %v2381 = vpow.pop %v2380
  %v2382 = vsel %vm679, %v2379, 0.0
  %2383 = vadd.xlane.f32.xlu0 %v2382
  %v2384 = vpop.xlane.xlu0 %2383
  %v2385 = vsel %vm679, %v2381, 0.0
  %2386 = vadd.xlane.f32.xlu0 %v2385
  %v2387 = vpop.xlane.xlu0 %2386
  %v2388 = vrcp.pop %v2384
  %v2389 = vrcp.pop %v2387
  %v2390 = vmul.f32 %v2379, %v2388
  %v2391 = vmul.f32 %v2381, %v2389
  %v2393 = vsel %vm679, %v2390, 0
  %2395 = vmatprep.subr.mxu0 0.0
  %2396 = vmatpush1.msra.mxu0 %v2208
  %2397 = vmatprep.subr.mxu0 0.0
  %2398 = vmatpush1.msra.mxu0 0.0
  %2399 = vmatprep.subr.mxu0 0.0
  %2400 = vmatpush1.msra.mxu0 0.0
  %2401 = vmatprep.subr.mxu0 0.0
  %2402 = vmatpush1.msra.mxu0 0.0
  %2403 = vmatprep.subr.mxu0 0.0
  %2404 = vmatpush1.msra.mxu0 0.0
  %2405 = vmatprep.subr.mxu0 0.0
  %2406 = vmatpush1.msra.mxu0 0.0
  %2407 = vmatprep.subr.mxu0 0.0
  %2408 = vmatpush1.msra.mxu0 0.0
  %2409 = vmatprep.subr.mxu0 0.0
  %2410 = vmatpush1.msra.mxu0 0.0
  %2411 = vmatprep.subr.mxu0 0.0
  %2412 = vmatpush1.msra.mxu0 0.0
  %2413 = vmatprep.subr.mxu0 0.0
  %2414 = vmatpush1.msra.mxu0 0.0
  %2415 = vmatprep.subr.mxu0 0.0
  %2416 = vmatpush1.msra.mxu0 0.0
  %2417 = vmatprep.subr.mxu0 0.0
  %2418 = vmatpush1.msra.mxu0 0.0
  %2419 = vmatprep.subr.mxu0 0.0
  %2420 = vmatpush1.msra.mxu0 0.0
  %2421 = vmatprep.subr.mxu0 0.0
  %2422 = vmatpush1.msra.mxu0 0.0
  %2423 = vmatprep.subr.mxu0 0.0
  %2424 = vmatpush1.msra.mxu0 0.0
  %2425 = vmatprep.subr.mxu0 0.0
  %2426 = vmatpush1.msra.mxu0 0.0
  %2427 = vmatprep.subr.mxu0 0.0
  %2428 = vmatpush1.msra.mxu0 0.0
  %2429 = vmatprep.subr.mxu0 0.0
  %2430 = vmatpush1.msra.mxu0 0.0
  %2431 = vmatprep.subr.mxu0 0.0
  %2432 = vmatpush1.msra.mxu0 0.0
  %2433 = vmatprep.subr.mxu0 0.0
  %2434 = vmatpush1.msra.mxu0 0.0
  %2435 = vmatprep.subr.mxu0 0.0
  %2436 = vmatpush1.msra.mxu0 0.0
  %2437 = vmatprep.subr.mxu0 0.0
  %2438 = vmatpush1.msra.mxu0 0.0
  %2439 = vmatprep.subr.mxu0 0.0
  %2440 = vmatpush1.msra.mxu0 0.0
  %2441 = vmatprep.subr.mxu0 0.0
  %2442 = vmatpush1.msra.mxu0 0.0
  %2443 = vmatprep.subr.mxu0 0.0
  %2444 = vmatpush1.msra.mxu0 0.0
  %2445 = vmatprep.subr.mxu0 0.0
  %2446 = vmatpush1.msra.mxu0 0.0
  %2447 = vmatprep.subr.mxu0 0.0
  %2448 = vmatpush1.msra.mxu0 0.0
  %2449 = vmatprep.subr.mxu0 0.0
  %2450 = vmatpush1.msra.mxu0 0.0
  %2451 = vmatprep.subr.mxu0 0.0
  %2452 = vmatpush1.msra.mxu0 0.0
  %2453 = vmatprep.subr.mxu0 0.0
  %2454 = vmatpush1.msra.mxu0 0.0
  %2455 = vmatprep.subr.mxu0 0.0
  %2456 = vmatpush1.msra.mxu0 0.0
  %2457 = vmatprep.subr.mxu0 0.0
  %2458 = vmatpush1.msra.mxu0 0.0
  %2459 = vmatprep.mubr.f32.mxu0 0.0
  %2460 = vmatmul.mubr.f32.gmra.mrb[0].mxu0 %v2393
  %v2461 = vpop.f32.mrb[0].mxu0
  %v2462 = vadd.f32 0.0, %v2461
  %v2463 = vpop.f32.mrb[0].mxu0
  %2464 = vdwg.mxu0
  %v2466 = vsel %vm679, %v2391, 0
  %2468 = vmatprep.subr.mxu0 0.0
  %2469 = vmatpush1.msra.mxu0 %v2213
  %2470 = vmatprep.subr.mxu0 0.0
  %2471 = vmatpush1.msra.mxu0 0.0
  %2472 = vmatprep.subr.mxu0 0.0
  %2473 = vmatpush1.msra.mxu0 0.0
  %2474 = vmatprep.subr.mxu0 0.0
  %2475 = vmatpush1.msra.mxu0 0.0
  %2476 = vmatprep.subr.mxu0 0.0
  %2477 = vmatpush1.msra.mxu0 0.0
  %2478 = vmatprep.subr.mxu0 0.0
  %2479 = vmatpush1.msra.mxu0 0.0
  %2480 = vmatprep.subr.mxu0 0.0
  %2481 = vmatpush1.msra.mxu0 0.0
  %2482 = vmatprep.subr.mxu0 0.0
  %2483 = vmatpush1.msra.mxu0 0.0
  %2484 = vmatprep.subr.mxu0 0.0
  %2485 = vmatpush1.msra.mxu0 0.0
  %2486 = vmatprep.subr.mxu0 0.0
  %2487 = vmatpush1.msra.mxu0 0.0
  %2488 = vmatprep.subr.mxu0 0.0
  %2489 = vmatpush1.msra.mxu0 0.0
  %2490 = vmatprep.subr.mxu0 0.0
  %2491 = vmatpush1.msra.mxu0 0.0
  %2492 = vmatprep.subr.mxu0 0.0
  %2493 = vmatpush1.msra.mxu0 0.0
  %2494 = vmatprep.subr.mxu0 0.0
  %2495 = vmatpush1.msra.mxu0 0.0
  %2496 = vmatprep.subr.mxu0 0.0
  %2497 = vmatpush1.msra.mxu0 0.0
  %2498 = vmatprep.subr.mxu0 0.0
  %2499 = vmatpush1.msra.mxu0 0.0
  %2500 = vmatprep.subr.mxu0 0.0
  %2501 = vmatpush1.msra.mxu0 0.0
  %2502 = vmatprep.subr.mxu0 0.0
  %2503 = vmatpush1.msra.mxu0 0.0
  %2504 = vmatprep.subr.mxu0 0.0
  %2505 = vmatpush1.msra.mxu0 0.0
  %2506 = vmatprep.subr.mxu0 0.0
  %2507 = vmatpush1.msra.mxu0 0.0
  %2508 = vmatprep.subr.mxu0 0.0
  %2509 = vmatpush1.msra.mxu0 0.0
  %2510 = vmatprep.subr.mxu0 0.0
  %2511 = vmatpush1.msra.mxu0 0.0
  %2512 = vmatprep.subr.mxu0 0.0
  %2513 = vmatpush1.msra.mxu0 0.0
  %2514 = vmatprep.subr.mxu0 0.0
  %2515 = vmatpush1.msra.mxu0 0.0
  %2516 = vmatprep.subr.mxu0 0.0
  %2517 = vmatpush1.msra.mxu0 0.0
  %2518 = vmatprep.subr.mxu0 0.0
  %2519 = vmatpush1.msra.mxu0 0.0
  %2520 = vmatprep.subr.mxu0 0.0
  %2521 = vmatpush1.msra.mxu0 0.0
  %2522 = vmatprep.subr.mxu0 0.0
  %2523 = vmatpush1.msra.mxu0 0.0
  %2524 = vmatprep.subr.mxu0 0.0
  %2525 = vmatpush1.msra.mxu0 0.0
  %2526 = vmatprep.subr.mxu0 0.0
  %2527 = vmatpush1.msra.mxu0 0.0
  %2528 = vmatprep.subr.mxu0 0.0
  %2529 = vmatpush1.msra.mxu0 0.0
  %2530 = vmatprep.subr.mxu0 0.0
  %2531 = vmatpush1.msra.mxu0 0.0
  %2532 = vmatprep.mubr.f32.mxu0 0.0
  %2533 = vmatmul.mubr.f32.gmra.mrb[0].mxu0 %v2466
  %v2534 = vpop.f32.mrb[0].mxu0
  %v2535 = vadd.f32 0.0, %v2534
  %v2536 = vpop.f32.mrb[0].mxu0
  %2537 = vdwg.mxu0
  %v2539 = vlaneseq
  %v2540 = vshrl.u32 %v2539, 7
  %v2541 = vsub.s32 0, %v2540
  %v2542 = vrot.slane %v1917, %v2541
  %2544 = vmatprep.subr.mxu0 0.0
  %2545 = vmatpush1.msra.mxu0 %v1907
  %2546 = vmatprep.subr.mxu0 0.0
  %2547 = vmatpush1.msra.mxu0 %v1908
  %2548 = vmatprep.subr.mxu0 0.0
  %2549 = vmatpush1.msra.mxu0 %v1909
  %2550 = vmatprep.subr.mxu0 0.0
  %2551 = vmatpush1.msra.mxu0 %v1910
  %2552 = vmatprep.subr.mxu0 0.0
  %2553 = vmatpush1.msra.mxu0 %v1911
  %2554 = vmatprep.subr.mxu0 0.0
  %2555 = vmatpush1.msra.mxu0 %v1912
  %2556 = vmatprep.subr.mxu0 0.0
  %2557 = vmatpush1.msra.mxu0 %v1913
  %2558 = vmatprep.subr.mxu0 0.0
  %2559 = vmatpush1.msra.mxu0 %v1914
  %2560 = vmatprep.subr.mxu0 0.0
  %2561 = vmatpush1.msra.mxu0 0.0
  %2562 = vmatprep.subr.mxu0 0.0
  %2563 = vmatpush1.msra.mxu0 0.0
  %2564 = vmatprep.subr.mxu0 0.0
  %2565 = vmatpush1.msra.mxu0 0.0
  %2566 = vmatprep.subr.mxu0 0.0
  %2567 = vmatpush1.msra.mxu0 0.0
  %2568 = vmatprep.subr.mxu0 0.0
  %2569 = vmatpush1.msra.mxu0 0.0
  %2570 = vmatprep.subr.mxu0 0.0
  %2571 = vmatpush1.msra.mxu0 0.0
  %2572 = vmatprep.subr.mxu0 0.0
  %2573 = vmatpush1.msra.mxu0 0.0
  %2574 = vmatprep.subr.mxu0 0.0
  %2575 = vmatpush1.msra.mxu0 0.0
  %2576 = vmatprep.subr.mxu0 0.0
  %2577 = vmatpush1.msra.mxu0 0.0
  %2578 = vmatprep.subr.mxu0 0.0
  %2579 = vmatpush1.msra.mxu0 0.0
  %2580 = vmatprep.subr.mxu0 0.0
  %2581 = vmatpush1.msra.mxu0 0.0
  %2582 = vmatprep.subr.mxu0 0.0
  %2583 = vmatpush1.msra.mxu0 0.0
  %2584 = vmatprep.subr.mxu0 0.0
  %2585 = vmatpush1.msra.mxu0 0.0
  %2586 = vmatprep.subr.mxu0 0.0
  %2587 = vmatpush1.msra.mxu0 0.0
  %2588 = vmatprep.subr.mxu0 0.0
  %2589 = vmatpush1.msra.mxu0 0.0
  %2590 = vmatprep.subr.mxu0 0.0
  %2591 = vmatpush1.msra.mxu0 0.0
  %2592 = vmatprep.subr.mxu0 0.0
  %2593 = vmatpush1.msra.mxu0 0.0
  %2594 = vmatprep.subr.mxu0 0.0
  %2595 = vmatpush1.msra.mxu0 0.0
  %2596 = vmatprep.subr.mxu0 0.0
  %2597 = vmatpush1.msra.mxu0 0.0
  %2598 = vmatprep.subr.mxu0 0.0
  %2599 = vmatpush1.msra.mxu0 0.0
  %2600 = vmatprep.subr.mxu0 0.0
  %2601 = vmatpush1.msra.mxu0 0.0
  %2602 = vmatprep.subr.mxu0 0.0
  %2603 = vmatpush1.msra.mxu0 0.0
  %2604 = vmatprep.subr.mxu0 0.0
  %2605 = vmatpush1.msra.mxu0 0.0
  %2606 = vmatprep.subr.mxu0 0.0
  %2607 = vmatpush1.msra.mxu0 0.0
  %2608 = vmatprep.mubr.f32.mxu0 0.0
  %2609 = vmatmul.mubr.f32.gmra.mrb[0].mxu0 %v1974
  %v2610 = vpop.f32.mrb[0].mxu0
  %v2611 = vadd.f32 %v2542, %v2610
  %v2612 = vpop.f32.mrb[0].mxu0
  %2613 = vmatprep.mubr.f32.mxu0 0.0
  %2614 = vmatmul.mubr.f32.gmra.mrb[0].mxu0 %v1977
  %v2615 = vpop.f32.mrb[0].mxu0
  %v2616 = vadd.f32 %v2542, %v2615
  %v2617 = vpop.f32.mrb[0].mxu0
  %2618 = vdwg.mxu0
  %v2620 = vlaneseq
  %v2621 = vshrl.u32 %v2620, 7
  %v2622 = vsub.s32 0, %v2621
  %v2623 = vrot.slane %v1937, %v2622
  %2625 = vmatprep.subr.mxu0 0.0
  %2626 = vmatpush1.msra.mxu0 %v1927
  %2627 = vmatprep.subr.mxu0 0.0
  %2628 = vmatpush1.msra.mxu0 %v1928
  %2629 = vmatprep.subr.mxu0 0.0
  %2630 = vmatpush1.msra.mxu0 %v1929
  %2631 = vmatprep.subr.mxu0 0.0
  %2632 = vmatpush1.msra.mxu0 %v1930
  %2633 = vmatprep.subr.mxu0 0.0
  %2634 = vmatpush1.msra.mxu0 %v1931
  %2635 = vmatprep.subr.mxu0 0.0
  %2636 = vmatpush1.msra.mxu0 %v1932
  %2637 = vmatprep.subr.mxu0 0.0
  %2638 = vmatpush1.msra.mxu0 %v1933
  %2639 = vmatprep.subr.mxu0 0.0
  %2640 = vmatpush1.msra.mxu0 %v1934
  %2641 = vmatprep.subr.mxu0 0.0
  %2642 = vmatpush1.msra.mxu0 0.0
  %2643 = vmatprep.subr.mxu0 0.0
  %2644 = vmatpush1.msra.mxu0 0.0
  %2645 = vmatprep.subr.mxu0 0.0
  %2646 = vmatpush1.msra.mxu0 0.0
  %2647 = vmatprep.subr.mxu0 0.0
  %2648 = vmatpush1.msra.mxu0 0.0
  %2649 = vmatprep.subr.mxu0 0.0
  %2650 = vmatpush1.msra.mxu0 0.0
  %2651 = vmatprep.subr.mxu0 0.0
  %2652 = vmatpush1.msra.mxu0 0.0
  %2653 = vmatprep.subr.mxu0 0.0
  %2654 = vmatpush1.msra.mxu0 0.0
  %2655 = vmatprep.subr.mxu0 0.0
  %2656 = vmatpush1.msra.mxu0 0.0
  %2657 = vmatprep.subr.mxu0 0.0
  %2658 = vmatpush1.msra.mxu0 0.0
  %2659 = vmatprep.subr.mxu0 0.0
  %2660 = vmatpush1.msra.mxu0 0.0
  %2661 = vmatprep.subr.mxu0 0.0
  %2662 = vmatpush1.msra.mxu0 0.0
  %2663 = vmatprep.subr.mxu0 0.0
  %2664 = vmatpush1.msra.mxu0 0.0
  %2665 = vmatprep.subr.mxu0 0.0
  %2666 = vmatpush1.msra.mxu0 0.0
  %2667 = vmatprep.subr.mxu0 0.0
  %2668 = vmatpush1.msra.mxu0 0.0
  %2669 = vmatprep.subr.mxu0 0.0
  %2670 = vmatpush1.msra.mxu0 0.0
  %2671 = vmatprep.subr.mxu0 0.0
  %2672 = vmatpush1.msra.mxu0 0.0
  %2673 = vmatprep.subr.mxu0 0.0
  %2674 = vmatpush1.msra.mxu0 0.0
  %2675 = vmatprep.subr.mxu0 0.0
  %2676 = vmatpush1.msra.mxu0 0.0
  %2677 = vmatprep.subr.mxu0 0.0
  %2678 = vmatpush1.msra.mxu0 0.0
  %2679 = vmatprep.subr.mxu0 0.0
  %2680 = vmatpush1.msra.mxu0 0.0
  %2681 = vmatprep.subr.mxu0 0.0
  %2682 = vmatpush1.msra.mxu0 0.0
  %2683 = vmatprep.subr.mxu0 0.0
  %2684 = vmatpush1.msra.mxu0 0.0
  %2685 = vmatprep.subr.mxu0 0.0
  %2686 = vmatpush1.msra.mxu0 0.0
  %2687 = vmatprep.subr.mxu0 0.0
  %2688 = vmatpush1.msra.mxu0 0.0
  %2689 = vmatprep.mubr.f32.mxu0 0.0
  %2690 = vmatmul.mubr.f32.gmra.mrb[0].mxu0 %v1974
  %v2691 = vpop.f32.mrb[0].mxu0
  %v2692 = vadd.f32 %v2623, %v2691
  %v2693 = vpop.f32.mrb[0].mxu0
  %2694 = vmatprep.mubr.f32.mxu0 0.0
  %2695 = vmatmul.mubr.f32.gmra.mrb[0].mxu0 %v1977
  %v2696 = vpop.f32.mrb[0].mxu0
  %v2697 = vadd.f32 %v2623, %v2696
  %v2698 = vpop.f32.mrb[0].mxu0
  %2699 = vdwg.mxu0
  %v2701 = vlaneseq
  %v2702 = vshrl.u32 %v2701, 7
  %v2703 = vsub.s32 0, %v2702
  %v2704 = vrot.slane %v1957, %v2703
  %2706 = vmatprep.subr.mxu0 0.0
  %2707 = vmatpush1.msra.mxu0 %v1947
  %2708 = vmatprep.subr.mxu0 0.0
  %2709 = vmatpush1.msra.mxu0 %v1948
  %2710 = vmatprep.subr.mxu0 0.0
  %2711 = vmatpush1.msra.mxu0 %v1949
  %2712 = vmatprep.subr.mxu0 0.0
  %2713 = vmatpush1.msra.mxu0 %v1950
  %2714 = vmatprep.subr.mxu0 0.0
  %2715 = vmatpush1.msra.mxu0 %v1951
  %2716 = vmatprep.subr.mxu0 0.0
  %2717 = vmatpush1.msra.mxu0 %v1952
  %2718 = vmatprep.subr.mxu0 0.0
  %2719 = vmatpush1.msra.mxu0 %v1953
  %2720 = vmatprep.subr.mxu0 0.0
  %2721 = vmatpush1.msra.mxu0 %v1954
  %2722 = vmatprep.subr.mxu0 0.0
  %2723 = vmatpush1.msra.mxu0 0.0
  %2724 = vmatprep.subr.mxu0 0.0
  %2725 = vmatpush1.msra.mxu0 0.0
  %2726 = vmatprep.subr.mxu0 0.0
  %2727 = vmatpush1.msra.mxu0 0.0
  %2728 = vmatprep.subr.mxu0 0.0
  %2729 = vmatpush1.msra.mxu0 0.0
  %2730 = vmatprep.subr.mxu0 0.0
  %2731 = vmatpush1.msra.mxu0 0.0
  %2732 = vmatprep.subr.mxu0 0.0
  %2733 = vmatpush1.msra.mxu0 0.0
  %2734 = vmatprep.subr.mxu0 0.0
  %2735 = vmatpush1.msra.mxu0 0.0
  %2736 = vmatprep.subr.mxu0 0.0
  %2737 = vmatpush1.msra.mxu0 0.0
  %2738 = vmatprep.subr.mxu0 0.0
  %2739 = vmatpush1.msra.mxu0 0.0
  %2740 = vmatprep.subr.mxu0 0.0
  %2741 = vmatpush1.msra.mxu0 0.0
  %2742 = vmatprep.subr.mxu0 0.0
  %2743 = vmatpush1.msra.mxu0 0.0
  %2744 = vmatprep.subr.mxu0 0.0
  %2745 = vmatpush1.msra.mxu0 0.0
  %2746 = vmatprep.subr.mxu0 0.0
  %2747 = vmatpush1.msra.mxu0 0.0
  %2748 = vmatprep.subr.mxu0 0.0
  %2749 = vmatpush1.msra.mxu0 0.0
  %2750 = vmatprep.subr.mxu0 0.0
  %2751 = vmatpush1.msra.mxu0 0.0
  %2752 = vmatprep.subr.mxu0 0.0
  %2753 = vmatpush1.msra.mxu0 0.0
  %2754 = vmatprep.subr.mxu0 0.0
  %2755 = vmatpush1.msra.mxu0 0.0
  %2756 = vmatprep.subr.mxu0 0.0
  %2757 = vmatpush1.msra.mxu0 0.0
  %2758 = vmatprep.subr.mxu0 0.0
  %2759 = vmatpush1.msra.mxu0 0.0
  %2760 = vmatprep.subr.mxu0 0.0
  %2761 = vmatpush1.msra.mxu0 0.0
  %2762 = vmatprep.subr.mxu0 0.0
  %2763 = vmatpush1.msra.mxu0 0.0
  %2764 = vmatprep.subr.mxu0 0.0
  %2765 = vmatpush1.msra.mxu0 0.0
  %2766 = vmatprep.subr.mxu0 0.0
  %2767 = vmatpush1.msra.mxu0 0.0
  %2768 = vmatprep.subr.mxu0 0.0
  %2769 = vmatpush1.msra.mxu0 0.0
  %2770 = vmatprep.mubr.f32.mxu0 0.0
  %2771 = vmatmul.mubr.f32.gmra.mrb[0].mxu0 %v1974
  %v2772 = vpop.f32.mrb[0].mxu0
  %v2773 = vadd.f32 %v2704, %v2772
  %v2774 = vpop.f32.mrb[0].mxu0
  %2775 = vmatprep.mubr.f32.mxu0 0.0
  %2776 = vmatmul.mubr.f32.gmra.mrb[0].mxu0 %v1977
  %v2777 = vpop.f32.mrb[0].mxu0
  %v2778 = vadd.f32 %v2704, %v2777
  %v2779 = vpop.f32.mrb[0].mxu0
  %2780 = vdwg.mxu0
  %v2782 = vsel %vm524, %v2611, 0
  %v2785 = vsel %vm524, %v2692, 0
  %2787 = vmatprep.subr.mxu0 0.0
  %2788 = vmatpush1.xpose.msra.mxu0 %v2785
  %2789 = vmatprep.subr.mxu0 0.0
  %2790 = vmatpush1.xpose.msra.mxu0 0.0
  %2791 = vmatprep.subr.mxu0 0.0
  %2792 = vmatpush1.xpose.msra.mxu0 0.0
  %2793 = vmatprep.subr.mxu0 0.0
  %2794 = vmatpush1.xpose.msra.mxu0 0.0
  %2795 = vmatprep.subr.mxu0 0.0
  %2796 = vmatpush1.xpose.msra.mxu0 0.0
  %2797 = vmatprep.subr.mxu0 0.0
  %2798 = vmatpush1.xpose.msra.mxu0 0.0
  %2799 = vmatprep.subr.mxu0 0.0
  %2800 = vmatpush1.xpose.msra.mxu0 0.0
  %2801 = vmatprep.subr.mxu0 0.0
  %2802 = vmatpush1.xpose.msra.mxu0 0.0
  %2803 = vmatprep.subr.mxu0 0.0
  %2804 = vmatpush1.xpose.msra.mxu0 0.0
  %2805 = vmatprep.subr.mxu0 0.0
  %2806 = vmatpush1.xpose.msra.mxu0 0.0
  %2807 = vmatprep.subr.mxu0 0.0
  %2808 = vmatpush1.xpose.msra.mxu0 0.0
  %2809 = vmatprep.subr.mxu0 0.0
  %2810 = vmatpush1.xpose.msra.mxu0 0.0
  %2811 = vmatprep.subr.mxu0 0.0
  %2812 = vmatpush1.xpose.msra.mxu0 0.0
  %2813 = vmatprep.subr.mxu0 0.0
  %2814 = vmatpush1.xpose.msra.mxu0 0.0
  %2815 = vmatprep.subr.mxu0 0.0
  %2816 = vmatpush1.xpose.msra.mxu0 0.0
  %2817 = vmatprep.subr.mxu0 0.0
  %2818 = vmatpush1.xpose.msra.mxu0 0.0
  %2819 = vmatprep.subr.mxu0 0.0
  %2820 = vmatpush1.xpose.msra.mxu0 0.0
  %2821 = vmatprep.subr.mxu0 0.0
  %2822 = vmatpush1.xpose.msra.mxu0 0.0
  %2823 = vmatprep.subr.mxu0 0.0
  %2824 = vmatpush1.xpose.msra.mxu0 0.0
  %2825 = vmatprep.subr.mxu0 0.0
  %2826 = vmatpush1.xpose.msra.mxu0 0.0
  %2827 = vmatprep.subr.mxu0 0.0
  %2828 = vmatpush1.xpose.msra.mxu0 0.0
  %2829 = vmatprep.subr.mxu0 0.0
  %2830 = vmatpush1.xpose.msra.mxu0 0.0
  %2831 = vmatprep.subr.mxu0 0.0
  %2832 = vmatpush1.xpose.msra.mxu0 0.0
  %2833 = vmatprep.subr.mxu0 0.0
  %2834 = vmatpush1.xpose.msra.mxu0 0.0
  %2835 = vmatprep.subr.mxu0 0.0
  %2836 = vmatpush1.xpose.msra.mxu0 0.0
  %2837 = vmatprep.subr.mxu0 0.0
  %2838 = vmatpush1.xpose.msra.mxu0 0.0
  %2839 = vmatprep.subr.mxu0 0.0
  %2840 = vmatpush1.xpose.msra.mxu0 0.0
  %2841 = vmatprep.subr.mxu0 0.0
  %2842 = vmatpush1.xpose.msra.mxu0 0.0
  %2843 = vmatprep.subr.mxu0 0.0
  %2844 = vmatpush1.xpose.msra.mxu0 0.0
  %2845 = vmatprep.subr.mxu0 0.0
  %2846 = vmatpush1.xpose.msra.mxu0 0.0
  %2847 = vmatprep.subr.mxu0 0.0
  %2848 = vmatpush1.xpose.msra.mxu0 0.0
  %2849 = vmatprep.subr.mxu0 0.0
  %2850 = vmatpush1.xpose.msra.mxu0 0.0
  %2851 = vmatprep.mubr.f32.mxu0 0.0
  %2852 = vmatmul.mubr.f32.gmra.mrb[0].mxu0 %v2782
  %v2853 = vpop.f32.mrb[0].mxu0
  %v2854 = vadd.f32 0.0, %v2853
  %v2855 = vpop.f32.mrb[0].mxu0
  %2856 = vdwg.mxu0
  %v2858 = vsel %vm524, %v2616, 0
  %v2861 = vsel %vm524, %v2697, 0
  %2863 = vmatprep.subr.mxu0 0.0
  %2864 = vmatpush1.xpose.msra.mxu0 %v2861
  %2865 = vmatprep.subr.mxu0 0.0
  %2866 = vmatpush1.xpose.msra.mxu0 0.0
  %2867 = vmatprep.subr.mxu0 0.0
  %2868 = vmatpush1.xpose.msra.mxu0 0.0
  %2869 = vmatprep.subr.mxu0 0.0
  %2870 = vmatpush1.xpose.msra.mxu0 0.0
  %2871 = vmatprep.subr.mxu0 0.0
  %2872 = vmatpush1.xpose.msra.mxu0 0.0
  %2873 = vmatprep.subr.mxu0 0.0
  %2874 = vmatpush1.xpose.msra.mxu0 0.0
  %2875 = vmatprep.subr.mxu0 0.0
  %2876 = vmatpush1.xpose.msra.mxu0 0.0
  %2877 = vmatprep.subr.mxu0 0.0
  %2878 = vmatpush1.xpose.msra.mxu0 0.0
  %2879 = vmatprep.subr.mxu0 0.0
  %2880 = vmatpush1.xpose.msra.mxu0 0.0
  %2881 = vmatprep.subr.mxu0 0.0
  %2882 = vmatpush1.xpose.msra.mxu0 0.0
  %2883 = vmatprep.subr.mxu0 0.0
  %2884 = vmatpush1.xpose.msra.mxu0 0.0
  %2885 = vmatprep.subr.mxu0 0.0
  %2886 = vmatpush1.xpose.msra.mxu0 0.0
  %2887 = vmatprep.subr.mxu0 0.0
  %2888 = vmatpush1.xpose.msra.mxu0 0.0
  %2889 = vmatprep.subr.mxu0 0.0
  %2890 = vmatpush1.xpose.msra.mxu0 0.0
  %2891 = vmatprep.subr.mxu0 0.0
  %2892 = vmatpush1.xpose.msra.mxu0 0.0
  %2893 = vmatprep.subr.mxu0 0.0
  %2894 = vmatpush1.xpose.msra.mxu0 0.0
  %2895 = vmatprep.subr.mxu0 0.0
  %2896 = vmatpush1.xpose.msra.mxu0 0.0
  %2897 = vmatprep.subr.mxu0 0.0
  %2898 = vmatpush1.xpose.msra.mxu0 0.0
  %2899 = vmatprep.subr.mxu0 0.0
  %2900 = vmatpush1.xpose.msra.mxu0 0.0
  %2901 = vmatprep.subr.mxu0 0.0
  %2902 = vmatpush1.xpose.msra.mxu0 0.0
  %2903 = vmatprep.subr.mxu0 0.0
  %2904 = vmatpush1.xpose.msra.mxu0 0.0
  %2905 = vmatprep.subr.mxu0 0.0
  %2906 = vmatpush1.xpose.msra.mxu0 0.0
  %2907 = vmatprep.subr.mxu0 0.0
  %2908 = vmatpush1.xpose.msra.mxu0 0.0
  %2909 = vmatprep.subr.mxu0 0.0
  %2910 = vmatpush1.xpose.msra.mxu0 0.0
  %2911 = vmatprep.subr.mxu0 0.0
  %2912 = vmatpush1.xpose.msra.mxu0 0.0
  %2913 = vmatprep.subr.mxu0 0.0
  %2914 = vmatpush1.xpose.msra.mxu0 0.0
  %2915 = vmatprep.subr.mxu0 0.0
  %2916 = vmatpush1.xpose.msra.mxu0 0.0
  %2917 = vmatprep.subr.mxu0 0.0
  %2918 = vmatpush1.xpose.msra.mxu0 0.0
  %2919 = vmatprep.subr.mxu0 0.0
  %2920 = vmatpush1.xpose.msra.mxu0 0.0
  %2921 = vmatprep.subr.mxu0 0.0
  %2922 = vmatpush1.xpose.msra.mxu0 0.0
  %2923 = vmatprep.subr.mxu0 0.0
  %2924 = vmatpush1.xpose.msra.mxu0 0.0
  %2925 = vmatprep.subr.mxu0 0.0
  %2926 = vmatpush1.xpose.msra.mxu0 0.0
  %2927 = vmatprep.mubr.f32.mxu0 0.0
  %2928 = vmatmul.mubr.f32.gmra.mrb[0].mxu0 %v2858
  %v2929 = vpop.f32.mrb[0].mxu0
  %v2930 = vadd.f32 0.0, %v2929
  %v2931 = vpop.f32.mrb[0].mxu0
  %2932 = vdwg.mxu0
  %v2933 = vmul.f32 %v2854, 0.17677669
  %v2934 = vmul.f32 %v2930, 0.17677669
  %v2935 = vsel %vm679, %v2933, -inf
  %2936 = vmax.xlane.f32.xlu0 %v2935
  %v2937 = vpop.xlane.xlu0 %2936
  %v2938 = vsel %vm679, %v2934, -inf
  %2939 = vmax.xlane.f32.xlu0 %v2938
  %v2940 = vpop.xlane.xlu0 %2939
  %v2941 = vsub.f32 %v2933, %v2937
  %v2942 = vsub.f32 %v2934, %v2940
  %v2943 = vmul.f32 %v2941, 1.442695
  %v2944 = vpow.pop %v2943
  %v2945 = vmul.f32 %v2942, 1.442695
  %v2946 = vpow.pop %v2945
  %v2947 = vsel %vm679, %v2944, 0.0
  %2948 = vadd.xlane.f32.xlu0 %v2947
  %v2949 = vpop.xlane.xlu0 %2948
  %v2950 = vsel %vm679, %v2946, 0.0
  %2951 = vadd.xlane.f32.xlu0 %v2950
  %v2952 = vpop.xlane.xlu0 %2951
  %v2953 = vrcp.pop %v2949
  %v2954 = vrcp.pop %v2952
  %v2955 = vmul.f32 %v2944, %v2953
  %v2956 = vmul.f32 %v2946, %v2954
  %v2958 = vsel %vm679, %v2955, 0
  %2960 = vmatprep.subr.mxu0 0.0
  %2961 = vmatpush1.msra.mxu0 %v2773
  %2962 = vmatprep.subr.mxu0 0.0
  %2963 = vmatpush1.msra.mxu0 0.0
  %2964 = vmatprep.subr.mxu0 0.0
  %2965 = vmatpush1.msra.mxu0 0.0
  %2966 = vmatprep.subr.mxu0 0.0
  %2967 = vmatpush1.msra.mxu0 0.0
  %2968 = vmatprep.subr.mxu0 0.0
  %2969 = vmatpush1.msra.mxu0 0.0
  %2970 = vmatprep.subr.mxu0 0.0
  %2971 = vmatpush1.msra.mxu0 0.0
  %2972 = vmatprep.subr.mxu0 0.0
  %2973 = vmatpush1.msra.mxu0 0.0
  %2974 = vmatprep.subr.mxu0 0.0
  %2975 = vmatpush1.msra.mxu0 0.0
  %2976 = vmatprep.subr.mxu0 0.0
  %2977 = vmatpush1.msra.mxu0 0.0
  %2978 = vmatprep.subr.mxu0 0.0
  %2979 = vmatpush1.msra.mxu0 0.0
  %2980 = vmatprep.subr.mxu0 0.0
  %2981 = vmatpush1.msra.mxu0 0.0
  %2982 = vmatprep.subr.mxu0 0.0
  %2983 = vmatpush1.msra.mxu0 0.0
  %2984 = vmatprep.subr.mxu0 0.0
  %2985 = vmatpush1.msra.mxu0 0.0
  %2986 = vmatprep.subr.mxu0 0.0
  %2987 = vmatpush1.msra.mxu0 0.0
  %2988 = vmatprep.subr.mxu0 0.0
  %2989 = vmatpush1.msra.mxu0 0.0
  %2990 = vmatprep.subr.mxu0 0.0
  %2991 = vmatpush1.msra.mxu0 0.0
  %2992 = vmatprep.subr.mxu0 0.0
  %2993 = vmatpush1.msra.mxu0 0.0
  %2994 = vmatprep.subr.mxu0 0.0
  %2995 = vmatpush1.msra.mxu0 0.0
  %2996 = vmatprep.subr.mxu0 0.0
  %2997 = vmatpush1.msra.mxu0 0.0
  %2998 = vmatprep.subr.mxu0 0.0
  %2999 = vmatpush1.msra.mxu0 0.0
  %3000 = vmatprep.subr.mxu0 0.0
  %3001 = vmatpush1.msra.mxu0 0.0
  %3002 = vmatprep.subr.mxu0 0.0
  %3003 = vmatpush1.msra.mxu0 0.0
  %3004 = vmatprep.subr.mxu0 0.0
  %3005 = vmatpush1.msra.mxu0 0.0
  %3006 = vmatprep.subr.mxu0 0.0
  %3007 = vmatpush1.msra.mxu0 0.0
  %3008 = vmatprep.subr.mxu0 0.0
  %3009 = vmatpush1.msra.mxu0 0.0
  %3010 = vmatprep.subr.mxu0 0.0
  %3011 = vmatpush1.msra.mxu0 0.0
  %3012 = vmatprep.subr.mxu0 0.0
  %3013 = vmatpush1.msra.mxu0 0.0
  %3014 = vmatprep.subr.mxu0 0.0
  %3015 = vmatpush1.msra.mxu0 0.0
  %3016 = vmatprep.subr.mxu0 0.0
  %3017 = vmatpush1.msra.mxu0 0.0
  %3018 = vmatprep.subr.mxu0 0.0
  %3019 = vmatpush1.msra.mxu0 0.0
  %3020 = vmatprep.subr.mxu0 0.0
  %3021 = vmatpush1.msra.mxu0 0.0
  %3022 = vmatprep.subr.mxu0 0.0
  %3023 = vmatpush1.msra.mxu0 0.0
  %3024 = vmatprep.mubr.f32.mxu0 0.0
  %3025 = vmatmul.mubr.f32.gmra.mrb[0].mxu0 %v2958
  %v3026 = vpop.f32.mrb[0].mxu0
  %v3027 = vadd.f32 0.0, %v3026
  %v3028 = vpop.f32.mrb[0].mxu0
  %3029 = vdwg.mxu0
  %v3031 = vsel %vm679, %v2956, 0
  %3033 = vmatprep.subr.mxu0 0.0
  %3034 = vmatpush1.msra.mxu0 %v2778
  %3035 = vmatprep.subr.mxu0 0.0
  %3036 = vmatpush1.msra.mxu0 0.0
  %3037 = vmatprep.subr.mxu0 0.0
  %3038 = vmatpush1.msra.mxu0 0.0
  %3039 = vmatprep.subr.mxu0 0.0
  %3040 = vmatpush1.msra.mxu0 0.0
  %3041 = vmatprep.subr.mxu0 0.0
  %3042 = vmatpush1.msra.mxu0 0.0
  %3043 = vmatprep.subr.mxu0 0.0
  %3044 = vmatpush1.msra.mxu0 0.0
  %3045 = vmatprep.subr.mxu0 0.0
  %3046 = vmatpush1.msra.mxu0 0.0
  %3047 = vmatprep.subr.mxu0 0.0
  %3048 = vmatpush1.msra.mxu0 0.0
  %3049 = vmatprep.subr.mxu0 0.0
  %3050 = vmatpush1.msra.mxu0 0.0
  %3051 = vmatprep.subr.mxu0 0.0
  %3052 = vmatpush1.msra.mxu0 0.0
  %3053 = vmatprep.subr.mxu0 0.0
  %3054 = vmatpush1.msra.mxu0 0.0
  %3055 = vmatprep.subr.mxu0 0.0
  %3056 = vmatpush1.msra.mxu0 0.0
  %3057 = vmatprep.subr.mxu0 0.0
  %3058 = vmatpush1.msra.mxu0 0.0
  %3059 = vmatprep.subr.mxu0 0.0
  %3060 = vmatpush1.msra.mxu0 0.0
  %3061 = vmatprep.subr.mxu0 0.0
  %3062 = vmatpush1.msra.mxu0 0.0
  %3063 = vmatprep.subr.mxu0 0.0
  %3064 = vmatpush1.msra.mxu0 0.0
  %3065 = vmatprep.subr.mxu0 0.0
  %3066 = vmatpush1.msra.mxu0 0.0
  %3067 = vmatprep.subr.mxu0 0.0
  %3068 = vmatpush1.msra.mxu0 0.0
  %3069 = vmatprep.subr.mxu0 0.0
  %3070 = vmatpush1.msra.mxu0 0.0
  %3071 = vmatprep.subr.mxu0 0.0
  %3072 = vmatpush1.msra.mxu0 0.0
  %3073 = vmatprep.subr.mxu0 0.0
  %3074 = vmatpush1.msra.mxu0 0.0
  %3075 = vmatprep.subr.mxu0 0.0
  %3076 = vmatpush1.msra.mxu0 0.0
  %3077 = vmatprep.subr.mxu0 0.0
  %3078 = vmatpush1.msra.mxu0 0.0
  %3079 = vmatprep.subr.mxu0 0.0
  %3080 = vmatpush1.msra.mxu0 0.0
  %3081 = vmatprep.subr.mxu0 0.0
  %3082 = vmatpush1.msra.mxu0 0.0
  %3083 = vmatprep.subr.mxu0 0.0
  %3084 = vmatpush1.msra.mxu0 0.0
  %3085 = vmatprep.subr.mxu0 0.0
  %3086 = vmatpush1.msra.mxu0 0.0
  %3087 = vmatprep.subr.mxu0 0.0
  %3088 = vmatpush1.msra.mxu0 0.0
  %3089 = vmatprep.subr.mxu0 0.0
  %3090 = vmatpush1.msra.mxu0 0.0
  %3091 = vmatprep.subr.mxu0 0.0
  %3092 = vmatpush1.msra.mxu0 0.0
  %3093 = vmatprep.subr.mxu0 0.0
  %3094 = vmatpush1.msra.mxu0 0.0
  %3095 = vmatprep.subr.mxu0 0.0
  %3096 = vmatpush1.msra.mxu0 0.0
  %3097 = vmatprep.mubr.f32.mxu0 0.0
  %3098 = vmatmul.mubr.f32.gmra.mrb[0].mxu0 %v3031
  %v3099 = vpop.f32.mrb[0].mxu0
  %v3100 = vadd.f32 0.0, %v3099
  %v3101 = vpop.f32.mrb[0].mxu0
  %3102 = vdwg.mxu0
  %v3104 = vsel %vm524, %v3027, 0
  %v3107 = vsel %vm524, %v3100, 0
  %3109 = vmatprep.subr.mxu0 0.0
  %3110 = vmatpush1.msra.mxu0 %v1963
  %3111 = vmatprep.subr.mxu0 0.0
  %3112 = vmatpush1.msra.mxu0 %v1964
  %3113 = vmatprep.subr.mxu0 0.0
  %3114 = vmatpush1.msra.mxu0 %v1965
  %3115 = vmatprep.subr.mxu0 0.0
  %3116 = vmatpush1.msra.mxu0 %v1966
  %3117 = vmatprep.subr.mxu0 0.0
  %3118 = vmatpush1.msra.mxu0 0.0
  %3119 = vmatprep.subr.mxu0 0.0
  %3120 = vmatpush1.msra.mxu0 0.0
  %3121 = vmatprep.subr.mxu0 0.0
  %3122 = vmatpush1.msra.mxu0 0.0
  %3123 = vmatprep.subr.mxu0 0.0
  %3124 = vmatpush1.msra.mxu0 0.0
  %3125 = vmatprep.subr.mxu0 0.0
  %3126 = vmatpush1.msra.mxu0 0.0
  %3127 = vmatprep.subr.mxu0 0.0
  %3128 = vmatpush1.msra.mxu0 0.0
  %3129 = vmatprep.subr.mxu0 0.0
  %3130 = vmatpush1.msra.mxu0 0.0
  %3131 = vmatprep.subr.mxu0 0.0
  %3132 = vmatpush1.msra.mxu0 0.0
  %3133 = vmatprep.subr.mxu0 0.0
  %3134 = vmatpush1.msra.mxu0 0.0
  %3135 = vmatprep.subr.mxu0 0.0
  %3136 = vmatpush1.msra.mxu0 0.0
  %3137 = vmatprep.subr.mxu0 0.0
  %3138 = vmatpush1.msra.mxu0 0.0
  %3139 = vmatprep.subr.mxu0 0.0
  %3140 = vmatpush1.msra.mxu0 0.0
  %3141 = vmatprep.subr.mxu0 0.0
  %3142 = vmatpush1.msra.mxu0 0.0
  %3143 = vmatprep.subr.mxu0 0.0
  %3144 = vmatpush1.msra.mxu0 0.0
  %3145 = vmatprep.subr.mxu0 0.0
  %3146 = vmatpush1.msra.mxu0 0.0
  %3147 = vmatprep.subr.mxu0 0.0
  %3148 = vmatpush1.msra.mxu0 0.0
  %3149 = vmatprep.subr.mxu0 0.0
  %3150 = vmatpush1.msra.mxu0 0.0
  %3151 = vmatprep.subr.mxu0 0.0
  %3152 = vmatpush1.msra.mxu0 0.0
  %3153 = vmatprep.subr.mxu0 0.0
  %3154 = vmatpush1.msra.mxu0 0.0
  %3155 = vmatprep.subr.mxu0 0.0
  %3156 = vmatpush1.msra.mxu0 0.0
  %3157 = vmatprep.subr.mxu0 0.0
  %3158 = vmatpush1.msra.mxu0 0.0
  %3159 = vmatprep.subr.mxu0 0.0
  %3160 = vmatpush1.msra.mxu0 0.0
  %3161 = vmatprep.subr.mxu0 0.0
  %3162 = vmatpush1.msra.mxu0 0.0
  %3163 = vmatprep.subr.mxu0 0.0
  %3164 = vmatpush1.msra.mxu0 0.0
  %3165 = vmatprep.subr.mxu0 0.0
  %3166 = vmatpush1.msra.mxu0 0.0
  %3167 = vmatprep.subr.mxu0 0.0
  %3168 = vmatpush1.msra.mxu0 0.0
  %3169 = vmatprep.subr.mxu0 0.0
  %3170 = vmatpush1.msra.mxu0 0.0
  %3171 = vmatprep.subr.mxu0 0.0
  %3172 = vmatpush1.msra.mxu0 0.0
  %3173 = vmatprep.mubr.f32.mxu0 0.0
  %3174 = vmatmul.mubr.f32.gmra.mrb[0].mxu0 %v3104
  %v3175 = vpop.f32.mrb[0].mxu0
  %v3176 = vadd.f32 0.0, %v3175
  %v3177 = vpop.f32.mrb[0].mxu0
  %3178 = vmatprep.mubr.f32.mxu0 0.0
  %3179 = vmatmul.mubr.f32.gmra.mrb[0].mxu0 %v3107
  %v3180 = vpop.f32.mrb[0].mxu0
  %v3181 = vadd.f32 0.0, %v3180
  %v3182 = vpop.f32.mrb[0].mxu0
  %3183 = vdwg.mxu0
  %v3185 = vsel %vm524, %v2462, 0
  %v3188 = vsel %vm524, %v2535, 0
  %3190 = vmatprep.subr.mxu0 0.0
  %3191 = vmatpush1.msra.mxu0 %v1959
  %3192 = vmatprep.subr.mxu0 0.0
  %3193 = vmatpush1.msra.mxu0 %v1960
  %3194 = vmatprep.subr.mxu0 0.0
  %3195 = vmatpush1.msra.mxu0 %v1961
  %3196 = vmatprep.subr.mxu0 0.0
  %3197 = vmatpush1.msra.mxu0 %v1962
  %3198 = vmatprep.subr.mxu0 0.0
  %3199 = vmatpush1.msra.mxu0 0.0
  %3200 = vmatprep.subr.mxu0 0.0
  %3201 = vmatpush1.msra.mxu0 0.0
  %3202 = vmatprep.subr.mxu0 0.0
  %3203 = vmatpush1.msra.mxu0 0.0
  %3204 = vmatprep.subr.mxu0 0.0
  %3205 = vmatpush1.msra.mxu0 0.0
  %3206 = vmatprep.subr.mxu0 0.0
  %3207 = vmatpush1.msra.mxu0 0.0
  %3208 = vmatprep.subr.mxu0 0.0
  %3209 = vmatpush1.msra.mxu0 0.0
  %3210 = vmatprep.subr.mxu0 0.0
  %3211 = vmatpush1.msra.mxu0 0.0
  %3212 = vmatprep.subr.mxu0 0.0
  %3213 = vmatpush1.msra.mxu0 0.0
  %3214 = vmatprep.subr.mxu0 0.0
  %3215 = vmatpush1.msra.mxu0 0.0
  %3216 = vmatprep.subr.mxu0 0.0
  %3217 = vmatpush1.msra.mxu0 0.0
  %3218 = vmatprep.subr.mxu0 0.0
  %3219 = vmatpush1.msra.mxu0 0.0
  %3220 = vmatprep.subr.mxu0 0.0
  %3221 = vmatpush1.msra.mxu0 0.0
  %3222 = vmatprep.subr.mxu0 0.0
  %3223 = vmatpush1.msra.mxu0 0.0
  %3224 = vmatprep.subr.mxu0 0.0
  %3225 = vmatpush1.msra.mxu0 0.0
  %3226 = vmatprep.subr.mxu0 0.0
  %3227 = vmatpush1.msra.mxu0 0.0
  %3228 = vmatprep.subr.mxu0 0.0
  %3229 = vmatpush1.msra.mxu0 0.0
  %3230 = vmatprep.subr.mxu0 0.0
  %3231 = vmatpush1.msra.mxu0 0.0
  %3232 = vmatprep.subr.mxu0 0.0
  %3233 = vmatpush1.msra.mxu0 0.0
  %3234 = vmatprep.subr.mxu0 0.0
  %3235 = vmatpush1.msra.mxu0 0.0
  %3236 = vmatprep.subr.mxu0 0.0
  %3237 = vmatpush1.msra.mxu0 0.0
  %3238 = vmatprep.subr.mxu0 0.0
  %3239 = vmatpush1.msra.mxu0 0.0
  %3240 = vmatprep.subr.mxu0 0.0
  %3241 = vmatpush1.msra.mxu0 0.0
  %3242 = vmatprep.subr.mxu0 0.0
  %3243 = vmatpush1.msra.mxu0 0.0
  %3244 = vmatprep.subr.mxu0 0.0
  %3245 = vmatpush1.msra.mxu0 0.0
  %3246 = vmatprep.subr.mxu0 0.0
  %3247 = vmatpush1.msra.mxu0 0.0
  %3248 = vmatprep.subr.mxu0 0.0
  %3249 = vmatpush1.msra.mxu0 0.0
  %3250 = vmatprep.subr.mxu0 0.0
  %3251 = vmatpush1.msra.mxu0 0.0
  %3252 = vmatprep.subr.mxu0 0.0
  %3253 = vmatpush1.msra.mxu0 0.0
  %3254 = vmatprep.mubr.f32.mxu0 0.0
  %3255 = vmatmul.mubr.f32.gmra.mrb[0].mxu0 %v3185
  %v3256 = vpop.f32.mrb[0].mxu0
  %v3257 = vadd.f32 %v3176, %v3256
  %v3258 = vpop.f32.mrb[0].mxu0
  %3259 = vmatprep.mubr.f32.mxu0 0.0
  %3260 = vmatmul.mubr.f32.gmra.mrb[0].mxu0 %v3188
  %v3261 = vpop.f32.mrb[0].mxu0
  %v3262 = vadd.f32 %v3181, %v3261
  %v3263 = vpop.f32.mrb[0].mxu0
  %3264 = vdwg.mxu0
  %v3265 = vadd.f32 %v1856, %v3257
  %v3266 = vadd.f32 %v1857, %v3262
  %s3267 = scalar_lea.vmem %s11, 1
  %v3268 = vld [vmem:[%s3267] sm:$0x1]
  %v3270 = vlaneseq
  %v3271 = vshrl.u32 %v3270, 7
  %v3272 = vsub.s32 0, %v3271
  %v3273 = vrot.slane %v3268, %v3272
  %v3275 = vadd.f32 %v3265, %v3273
  %v3276 = vadd.f32 %v3266, %v3273
  %s3277 = scalar_lea.vmem %s12, 2
  %v3278 = vld [vmem:[%s3277] sm:$0x3]
  %v3279 = vsel %vm173, %v3275, 0.0
  %3280 = vadd.xlane.f32.xlu0 %v3279
  %v3281 = vpop.xlane.xlu0 %3280
  %v3282 = vsel %vm173, %v3276, 0.0
  %3283 = vadd.xlane.f32.xlu0 %v3282
  %v3284 = vpop.xlane.xlu0 %3283
  %v3285 = vmul.f32 %v3281, %v180
  %v3286 = vmul.f32 %v3284, %v180
  %v3287 = vsub.f32 %v3275, %v3285
  %v3288 = vsub.f32 %v3276, %v3286
  %v3289 = vmul.f32 %v3287, %v3287
  %v3290 = vmul.f32 %v3288, %v3288
  %v3291 = vsel %vm173, %v3289, 0.0
  %3292 = vadd.xlane.f32.xlu0 %v3291
  %v3293 = vpop.xlane.xlu0 %3292
  %v3294 = vsel %vm173, %v3290, 0.0
  %3295 = vadd.xlane.f32.xlu0 %v3294
  %v3296 = vpop.xlane.xlu0 %3295
  %v3297 = vmul.f32 %v3293, %v180
  %v3298 = vmul.f32 %v3296, %v180
  %v3299 = vadd.f32 %v3297, 1e-05
  %v3300 = vadd.f32 %v3298, 1e-05
  %v3301 = vrsqrt.pop %v3299
  %v3302 = vrsqrt.pop %v3300
  %v3303 = vmul.f32 %v3287, %v3301
  %v3304 = vmul.f32 %v3288, %v3302
  %v3305 = vlaneseq
  %v3306 = vshrl.u32 %v3305, 7
  %v3307 = vsub.s32 0, %v3306
  %v3308 = vrot.slane %v3278, %v3307
  %v3309 = vmul.f32 %v3303, %v3308
  %v3310 = vmul.f32 %v3304, %v3308
  %v3311 = vlaneseq
  %v3312 = vshrl.u32 %v3311, 7
  %v3313 = vsub.s32 1, %v3312
  %v3314 = vrot.slane %v3278, %v3313
  %v3315 = vadd.f32 %v3309, %v3314
  %v3316 = vadd.f32 %v3310, %v3314
  %s3317 = scalar_lea.vmem %s13, 128
  %v3318 = vld [vmem:[%s3317] sm:$0xff]
  %v3319 = vld [vmem:[%s3317 + $0x8] sm:$0xff]
  %v3320 = vld [vmem:[%s3317 + $0x10] sm:$0xff]
  %v3321 = vld [vmem:[%s3317 + $0x18] sm:$0xff]
  %v3322 = vld [vmem:[%s3317 + $0x20] sm:$0xff]
  %v3323 = vld [vmem:[%s3317 + $0x28] sm:$0xff]
  %v3324 = vld [vmem:[%s3317 + $0x30] sm:$0xff]
  %v3325 = vld [vmem:[%s3317 + $0x38] sm:$0xff]
  %v3326 = vld [vmem:[%s3317 + $0x40] sm:$0xff]
  %v3327 = vld [vmem:[%s3317 + $0x48] sm:$0xff]
  %v3328 = vld [vmem:[%s3317 + $0x50] sm:$0xff]
  %v3329 = vld [vmem:[%s3317 + $0x58] sm:$0xff]
  %v3330 = vld [vmem:[%s3317 + $0x60] sm:$0xff]
  %v3331 = vld [vmem:[%s3317 + $0x68] sm:$0xff]
  %v3332 = vld [vmem:[%s3317 + $0x70] sm:$0xff]
  %v3333 = vld [vmem:[%s3317 + $0x78] sm:$0xff]
  %s3334 = scalar_lea.vmem %s14, 2
  %v3335 = vld [vmem:[%s3334] sm:$0x3]
  %v3337 = vlaneseq
  %v3338 = vshrl.u32 %v3337, 7
  %v3339 = vsub.s32 0, %v3338
  %v3340 = vrot.slane %v3335, %v3339
  %v3341 = vlaneseq
  %v3342 = vshrl.u32 %v3341, 7
  %v3343 = vsub.s32 1, %v3342
  %v3344 = vrot.slane %v3335, %v3343
  %v3348 = vsel %vm173, %v3315, 0
  %v3351 = vsel %vm173, %v3316, 0
  %3353 = vmatprep.subr.mxu0 %v3319
  %3354 = vmatpush1.msra.mxu0 %v3318
  %3355 = vmatprep.subr.mxu0 %v3321
  %3356 = vmatpush1.msra.mxu0 %v3320
  %3357 = vmatprep.subr.mxu0 %v3323
  %3358 = vmatpush1.msra.mxu0 %v3322
  %3359 = vmatprep.subr.mxu0 %v3325
  %3360 = vmatpush1.msra.mxu0 %v3324
  %3361 = vmatprep.subr.mxu0 %v3327
  %3362 = vmatpush1.msra.mxu0 %v3326
  %3363 = vmatprep.subr.mxu0 %v3329
  %3364 = vmatpush1.msra.mxu0 %v3328
  %3365 = vmatprep.subr.mxu0 %v3331
  %3366 = vmatpush1.msra.mxu0 %v3330
  %3367 = vmatprep.subr.mxu0 %v3333
  %3368 = vmatpush1.msra.mxu0 %v3332
  %3369 = vmatprep.subr.mxu0 0.0
  %3370 = vmatpush1.msra.mxu0 0.0
  %3371 = vmatprep.subr.mxu0 0.0
  %3372 = vmatpush1.msra.mxu0 0.0
  %3373 = vmatprep.subr.mxu0 0.0
  %3374 = vmatpush1.msra.mxu0 0.0
  %3375 = vmatprep.subr.mxu0 0.0
  %3376 = vmatpush1.msra.mxu0 0.0
  %3377 = vmatprep.subr.mxu0 0.0
  %3378 = vmatpush1.msra.mxu0 0.0
  %3379 = vmatprep.subr.mxu0 0.0
  %3380 = vmatpush1.msra.mxu0 0.0
  %3381 = vmatprep.subr.mxu0 0.0
  %3382 = vmatpush1.msra.mxu0 0.0
  %3383 = vmatprep.subr.mxu0 0.0
  %3384 = vmatpush1.msra.mxu0 0.0
  %3385 = vmatprep.subr.mxu0 0.0
  %3386 = vmatpush1.msra.mxu0 0.0
  %3387 = vmatprep.subr.mxu0 0.0
  %3388 = vmatpush1.msra.mxu0 0.0
  %3389 = vmatprep.subr.mxu0 0.0
  %3390 = vmatpush1.msra.mxu0 0.0
  %3391 = vmatprep.subr.mxu0 0.0
  %3392 = vmatpush1.msra.mxu0 0.0
  %3393 = vmatprep.subr.mxu0 0.0
  %3394 = vmatpush1.msra.mxu0 0.0
  %3395 = vmatprep.subr.mxu0 0.0
  %3396 = vmatpush1.msra.mxu0 0.0
  %3397 = vmatprep.subr.mxu0 0.0
  %3398 = vmatpush1.msra.mxu0 0.0
  %3399 = vmatprep.subr.mxu0 0.0
  %3400 = vmatpush1.msra.mxu0 0.0
  %3401 = vmatprep.subr.mxu0 0.0
  %3402 = vmatpush1.msra.mxu0 0.0
  %3403 = vmatprep.subr.mxu0 0.0
  %3404 = vmatpush1.msra.mxu0 0.0
  %3405 = vmatprep.subr.mxu0 0.0
  %3406 = vmatpush1.msra.mxu0 0.0
  %3407 = vmatprep.subr.mxu0 0.0
  %3408 = vmatpush1.msra.mxu0 0.0
  %3409 = vmatprep.subr.mxu0 0.0
  %3410 = vmatpush1.msra.mxu0 0.0
  %3411 = vmatprep.subr.mxu0 0.0
  %3412 = vmatpush1.msra.mxu0 0.0
  %3413 = vmatprep.subr.mxu0 0.0
  %3414 = vmatpush1.msra.mxu0 0.0
  %3415 = vmatprep.subr.mxu0 0.0
  %3416 = vmatpush1.msra.mxu0 0.0
  %3417 = vmatprep.mubr.f32.mxu0 0.0
  %3418 = vmatmul.mubr.f32.gmra.mrb[0].mxu0 %v3348
  %v3419 = vpop.f32.mrb[0].mxu0
  %v3420 = vadd.f32 %v3340, %v3419
  %v3421 = vpop.f32.mrb[0].mxu0
  %v3422 = vadd.f32 %v3344, %v3421
  %3423 = vmatprep.mubr.f32.mxu0 0.0
  %3424 = vmatmul.mubr.f32.gmra.mrb[0].mxu0 %v3351
  %v3425 = vpop.f32.mrb[0].mxu0
  %v3426 = vadd.f32 %v3340, %v3425
  %v3427 = vpop.f32.mrb[0].mxu0
  %v3428 = vadd.f32 %v3344, %v3427
  %3429 = vdwg.mxu0
  %v3430 = vmax.f32 %v3420, 0.0
  %v3431 = vmax.f32 %v3422, 0.0
  %v3432 = vmax.f32 %v3426, 0.0
  %v3433 = vmax.f32 %v3428, 0.0
  %s3434 = scalar_lea.vmem %s15, 256
  %v3435 = vld [vmem:[%s3434] sm:$0xff]
  %v3436 = vld [vmem:[%s3434 + $0x8] sm:$0xff]
  %v3437 = vld [vmem:[%s3434 + $0x10] sm:$0xff]
  %v3438 = vld [vmem:[%s3434 + $0x18] sm:$0xff]
  %v3439 = vld [vmem:[%s3434 + $0x20] sm:$0xff]
  %v3440 = vld [vmem:[%s3434 + $0x28] sm:$0xff]
  %v3441 = vld [vmem:[%s3434 + $0x30] sm:$0xff]
  %v3442 = vld [vmem:[%s3434 + $0x38] sm:$0xff]
  %v3443 = vld [vmem:[%s3434 + $0x40] sm:$0xff]
  %v3444 = vld [vmem:[%s3434 + $0x48] sm:$0xff]
  %v3445 = vld [vmem:[%s3434 + $0x50] sm:$0xff]
  %v3446 = vld [vmem:[%s3434 + $0x58] sm:$0xff]
  %v3447 = vld [vmem:[%s3434 + $0x60] sm:$0xff]
  %v3448 = vld [vmem:[%s3434 + $0x68] sm:$0xff]
  %v3449 = vld [vmem:[%s3434 + $0x70] sm:$0xff]
  %v3450 = vld [vmem:[%s3434 + $0x78] sm:$0xff]
  %v3451 = vld [vmem:[%s3434 + $0x80] sm:$0xff]
  %v3452 = vld [vmem:[%s3434 + $0x88] sm:$0xff]
  %v3453 = vld [vmem:[%s3434 + $0x90] sm:$0xff]
  %v3454 = vld [vmem:[%s3434 + $0x98] sm:$0xff]
  %v3455 = vld [vmem:[%s3434 + $0xa0] sm:$0xff]
  %v3456 = vld [vmem:[%s3434 + $0xa8] sm:$0xff]
  %v3457 = vld [vmem:[%s3434 + $0xb0] sm:$0xff]
  %v3458 = vld [vmem:[%s3434 + $0xb8] sm:$0xff]
  %v3459 = vld [vmem:[%s3434 + $0xc0] sm:$0xff]
  %v3460 = vld [vmem:[%s3434 + $0xc8] sm:$0xff]
  %v3461 = vld [vmem:[%s3434 + $0xd0] sm:$0xff]
  %v3462 = vld [vmem:[%s3434 + $0xd8] sm:$0xff]
  %v3463 = vld [vmem:[%s3434 + $0xe0] sm:$0xff]
  %v3464 = vld [vmem:[%s3434 + $0xe8] sm:$0xff]
  %v3465 = vld [vmem:[%s3434 + $0xf0] sm:$0xff]
  %v3466 = vld [vmem:[%s3434 + $0xf8] sm:$0xff]
  %3467 = vmatprep.subr.mxu0 0.0
  %3468 = vmatpush1.msra.mxu0 %v3435
  %3469 = vmatprep.subr.mxu0 0.0
  %3470 = vmatpush1.msra.mxu0 %v3436
  %3471 = vmatprep.subr.mxu0 0.0
  %3472 = vmatpush1.msra.mxu0 %v3437
  %3473 = vmatprep.subr.mxu0 0.0
  %3474 = vmatpush1.msra.mxu0 %v3438
  %3475 = vmatprep.subr.mxu0 0.0
  %3476 = vmatpush1.msra.mxu0 %v3439
  %3477 = vmatprep.subr.mxu0 0.0
  %3478 = vmatpush1.msra.mxu0 %v3440
  %3479 = vmatprep.subr.mxu0 0.0
  %3480 = vmatpush1.msra.mxu0 %v3441
  %3481 = vmatprep.subr.mxu0 0.0
  %3482 = vmatpush1.msra.mxu0 %v3442
  %3483 = vmatprep.subr.mxu0 0.0
  %3484 = vmatpush1.msra.mxu0 %v3443
  %3485 = vmatprep.subr.mxu0 0.0
  %3486 = vmatpush1.msra.mxu0 %v3444
  %3487 = vmatprep.subr.mxu0 0.0
  %3488 = vmatpush1.msra.mxu0 %v3445
  %3489 = vmatprep.subr.mxu0 0.0
  %3490 = vmatpush1.msra.mxu0 %v3446
  %3491 = vmatprep.subr.mxu0 0.0
  %3492 = vmatpush1.msra.mxu0 %v3447
  %3493 = vmatprep.subr.mxu0 0.0
  %3494 = vmatpush1.msra.mxu0 %v3448
  %3495 = vmatprep.subr.mxu0 0.0
  %3496 = vmatpush1.msra.mxu0 %v3449
  %3497 = vmatprep.subr.mxu0 0.0
  %3498 = vmatpush1.msra.mxu0 %v3450
  %3499 = vmatprep.subr.mxu0 0.0
  %3500 = vmatpush1.msra.mxu0 %v3451
  %3501 = vmatprep.subr.mxu0 0.0
  %3502 = vmatpush1.msra.mxu0 %v3452
  %3503 = vmatprep.subr.mxu0 0.0
  %3504 = vmatpush1.msra.mxu0 %v3453
  %3505 = vmatprep.subr.mxu0 0.0
  %3506 = vmatpush1.msra.mxu0 %v3454
  %3507 = vmatprep.subr.mxu0 0.0
  %3508 = vmatpush1.msra.mxu0 %v3455
  %3509 = vmatprep.subr.mxu0 0.0
  %3510 = vmatpush1.msra.mxu0 %v3456
  %3511 = vmatprep.subr.mxu0 0.0
  %3512 = vmatpush1.msra.mxu0 %v3457
  %3513 = vmatprep.subr.mxu0 0.0
  %3514 = vmatpush1.msra.mxu0 %v3458
  %3515 = vmatprep.subr.mxu0 0.0
  %3516 = vmatpush1.msra.mxu0 %v3459
  %3517 = vmatprep.subr.mxu0 0.0
  %3518 = vmatpush1.msra.mxu0 %v3460
  %3519 = vmatprep.subr.mxu0 0.0
  %3520 = vmatpush1.msra.mxu0 %v3461
  %3521 = vmatprep.subr.mxu0 0.0
  %3522 = vmatpush1.msra.mxu0 %v3462
  %3523 = vmatprep.subr.mxu0 0.0
  %3524 = vmatpush1.msra.mxu0 %v3463
  %3525 = vmatprep.subr.mxu0 0.0
  %3526 = vmatpush1.msra.mxu0 %v3464
  %3527 = vmatprep.subr.mxu0 0.0
  %3528 = vmatpush1.msra.mxu0 %v3465
  %3529 = vmatprep.subr.mxu0 0.0
  %3530 = vmatpush1.msra.mxu0 %v3466
  %3531 = vmatprep.mubr.f32.mxu0 %v3431
  %3532 = vmatmul.mubr.f32.gmra.mrb[0].mxu0 %v3430
  %v3533 = vpop.f32.mrb[0].mxu0
  %v3534 = vadd.f32 0.0, %v3533
  %v3535 = vpop.f32.mrb[0].mxu0
  %3536 = vmatprep.mubr.f32.mxu0 %v3433
  %3537 = vmatmul.mubr.f32.gmra.mrb[0].mxu0 %v3432
  %v3538 = vpop.f32.mrb[0].mxu0
  %v3539 = vadd.f32 0.0, %v3538
  %v3540 = vpop.f32.mrb[0].mxu0
  %3541 = vdwg.mxu0
  %v3542 = vadd.f32 %v3275, %v3534
  %v3543 = vadd.f32 %v3276, %v3539
  %s3544 = scalar_lea.vmem %s16, 1
  %v3545 = vld [vmem:[%s3544] sm:$0x1]
  %v3547 = vlaneseq
  %v3548 = vshrl.u32 %v3547, 7
  %v3549 = vsub.s32 0, %v3548
  %v3550 = vrot.slane %v3545, %v3549
  %v3552 = vadd.f32 %v3542, %v3550
  %v3553 = vadd.f32 %v3543, %v3550
  %v3554 = vsel %vm173, %v3552, 0.0
  %v3555 = vrot.slane %v3554, 4
  %v3556 = vadd.f32 %v3554, %v3555
  %v3557 = vrot.slane %v3556, 2
  %v3558 = vadd.f32 %v3556, %v3557
  %v3559 = vrot.slane %v3558, 1
  %v3560 = vadd.f32 %v3558, %v3559
  %v3561 = vsel %vm173, %v3553, 0.0
  %v3562 = vrot.slane %v3561, 4
  %v3563 = vadd.f32 %v3561, %v3562
  %v3564 = vrot.slane %v3563, 2
  %v3565 = vadd.f32 %v3563, %v3564
  %v3566 = vrot.slane %v3565, 1
  %v3567 = vadd.f32 %v3565, %v3566
  %v3568 = vrcp.pop 8.0
  %v3569 = vmul.f32 %v3560, %v3568
  %v3570 = vmul.f32 %v3567, %v3568
  %v3571 = vld [vmem:[%s17] sm:$0x3]
  %vm3574 = vcmask 1041409
  %v3575 = vsel %vm3574, %v3570, %v3569
  %vm3577 = vcmask 517120
  %v3578 = vsel %vm3577, %v3575, 0.0
  %3579 = vadd.xlane.f32.xlu0 %v3578
  %v3580 = vpop.xlane.xlu0 %3579
  %v3581 = vmul.f32 %v3580, %v180
  %v3583 = vrot.slane %v3581, 1
  %v3586 = vsub.f32 %v3569, %v3581
  %v3587 = vsub.f32 %v3570, %v3583
  %v3588 = vmul.f32 %v3586, %v3586
  %v3589 = vmul.f32 %v3587, %v3587
  %v3592 = vrot.slane %v3589, 7
  %v3593 = vsel %vm3574, %v3592, %v3588
  %v3595 = vsel %vm3577, %v3593, 0.0
  %3596 = vadd.xlane.f32.xlu0 %v3595
  %v3597 = vpop.xlane.xlu0 %3596
  %v3598 = vmul.f32 %v3597, %v180
  %v3599 = vadd.f32 %v3598, 1e-05
  %v3600 = vrsqrt.pop %v3599
  %v3602 = vrot.slane %v3600, 1
  %v3605 = vmul.f32 %v3586, %v3600
  %v3606 = vmul.f32 %v3587, %v3602
  %v3607 = vlaneseq
  %v3608 = vshrl.u32 %v3607, 7
  %v3609 = vsub.s32 0, %v3608
  %v3610 = vrot.slane %v3571, %v3609
  %v3611 = vmul.f32 %v3605, %v3610
  %v3612 = vmul.f32 %v3606, %v3610
  %v3613 = vlaneseq
  %v3614 = vshrl.u32 %v3613, 7
  %v3615 = vsub.s32 1, %v3614
  %v3616 = vrot.slane %v3571, %v3615
  %v3617 = vadd.f32 %v3611, %v3616
  %v3618 = vadd.f32 %v3612, %v3616
  %v3619 = vld [vmem:[%s18] sm:$0xff]
  %v3620 = vld [vmem:[%s18 + $0x8] sm:$0xff]
  %v3621 = vld [vmem:[%s18 + $0x10] sm:$0xff]
  %v3622 = vld [vmem:[%s18 + $0x18] sm:$0xff]
  %v3623 = vld [vmem:[%s18 + $0x20] sm:$0xff]
  %v3624 = vld [vmem:[%s18 + $0x28] sm:$0xff]
  %v3625 = vld [vmem:[%s18 + $0x30] sm:$0xff]
  %v3626 = vld [vmem:[%s18 + $0x38] sm:$0xff]
  %v3627 = vld [vmem:[%s19] sm:$0x1]
  %v3629 = vlaneseq
  %v3630 = vshrl.u32 %v3629, 7
  %v3631 = vsub.s32 0, %v3630
  %v3632 = vrot.slane %v3627, %v3631
  %v3636 = vrot.slane %v3618, 7
  %v3637 = vsel %vm3574, %v3636, %v3617
  %v3638 = vsel %vm173, %v3637, 0
  %3640 = vmatprep.subr.mxu0 0.0
  %3641 = vmatpush1.msra.mxu0 %v3619
  %3642 = vmatprep.subr.mxu0 0.0
  %3643 = vmatpush1.msra.mxu0 %v3620
  %3644 = vmatprep.subr.mxu0 0.0
  %3645 = vmatpush1.msra.mxu0 %v3621
  %3646 = vmatprep.subr.mxu0 0.0
  %3647 = vmatpush1.msra.mxu0 %v3622
  %3648 = vmatprep.subr.mxu0 0.0
  %3649 = vmatpush1.msra.mxu0 %v3623
  %3650 = vmatprep.subr.mxu0 0.0
  %3651 = vmatpush1.msra.mxu0 %v3624
  %3652 = vmatprep.subr.mxu0 0.0
  %3653 = vmatpush1.msra.mxu0 %v3625
  %3654 = vmatprep.subr.mxu0 0.0
  %3655 = vmatpush1.msra.mxu0 %v3626
  %3656 = vmatprep.subr.mxu0 0.0
  %3657 = vmatpush1.msra.mxu0 0.0
  %3658 = vmatprep.subr.mxu0 0.0
  %3659 = vmatpush1.msra.mxu0 0.0
  %3660 = vmatprep.subr.mxu0 0.0
  %3661 = vmatpush1.msra.mxu0 0.0
  %3662 = vmatprep.subr.mxu0 0.0
  %3663 = vmatpush1.msra.mxu0 0.0
  %3664 = vmatprep.subr.mxu0 0.0
  %3665 = vmatpush1.msra.mxu0 0.0
  %3666 = vmatprep.subr.mxu0 0.0
  %3667 = vmatpush1.msra.mxu0 0.0
  %3668 = vmatprep.subr.mxu0 0.0
  %3669 = vmatpush1.msra.mxu0 0.0
  %3670 = vmatprep.subr.mxu0 0.0
  %3671 = vmatpush1.msra.mxu0 0.0
  %3672 = vmatprep.subr.mxu0 0.0
  %3673 = vmatpush1.msra.mxu0 0.0
  %3674 = vmatprep.subr.mxu0 0.0
  %3675 = vmatpush1.msra.mxu0 0.0
  %3676 = vmatprep.subr.mxu0 0.0
  %3677 = vmatpush1.msra.mxu0 0.0
  %3678 = vmatprep.subr.mxu0 0.0
  %3679 = vmatpush1.msra.mxu0 0.0
  %3680 = vmatprep.subr.mxu0 0.0
  %3681 = vmatpush1.msra.mxu0 0.0
  %3682 = vmatprep.subr.mxu0 0.0
  %3683 = vmatpush1.msra.mxu0 0.0
  %3684 = vmatprep.subr.mxu0 0.0
  %3685 = vmatpush1.msra.mxu0 0.0
  %3686 = vmatprep.subr.mxu0 0.0
  %3687 = vmatpush1.msra.mxu0 0.0
  %3688 = vmatprep.subr.mxu0 0.0
  %3689 = vmatpush1.msra.mxu0 0.0
  %3690 = vmatprep.subr.mxu0 0.0
  %3691 = vmatpush1.msra.mxu0 0.0
  %3692 = vmatprep.subr.mxu0 0.0
  %3693 = vmatpush1.msra.mxu0 0.0
  %3694 = vmatprep.subr.mxu0 0.0
  %3695 = vmatpush1.msra.mxu0 0.0
  %3696 = vmatprep.subr.mxu0 0.0
  %3697 = vmatpush1.msra.mxu0 0.0
  %3698 = vmatprep.subr.mxu0 0.0
  %3699 = vmatpush1.msra.mxu0 0.0
  %3700 = vmatprep.subr.mxu0 0.0
  %3701 = vmatpush1.msra.mxu0 0.0
  %3702 = vmatprep.subr.mxu0 0.0
  %3703 = vmatpush1.msra.mxu0 0.0
  %3704 = vmatprep.mubr.f32.mxu0 0.0
  %3705 = vmatmul.mubr.f32.gmra.mrb[0].mxu0 %v3638
  %v3706 = vpop.f32.mrb[0].mxu0
  %v3707 = vadd.f32 %v3632, %v3706
  %v3708 = vpop.f32.mrb[0].mxu0
  %3709 = vdwg.mxu0
  %3710 = vst [vmem:[%s20] sm:$0x3] %v3707
  // Predicated region
  $region82: #{alphago_zero_forward.1} parent=0 // pred_check
    _
  $region83: #{alphago_zero_forward.1} parent=0 // pred_check_branch
    %3712 = sbr.rel (0) target = $region85
  $region84: #{alphago_zero_forward.1} parent=0 // pred_region
    _
  $region85: #{alphago_zero_forward.1} parent=0 // pred_fallthru
    _
  // Predicated region
  $region86: #{alphago_zero_forward.1} parent=0 // pred_check
    _
  $region87: #{alphago_zero_forward.1} parent=0 // pred_check_branch
    %3714 = sbr.rel (0) target = $region89
  $region88: #{alphago_zero_forward.1} parent=0 // pred_region
    _
  $region89: #{alphago_zero_forward.1} parent=0 // pred_fallthru
    _

</llo_original>
